<compile_context>
chip_gen: v7x
topology: tpu7x:2x2x1
jax: 0.10.0
libtpu: 0.0.40
codegen_flags: <defaults>
</compile_context>

<pallas_src>
import jax
import jax.numpy as jnp
from jax.experimental import pallas as pl
from jax.experimental.pallas import tpu as pltpu

# NOTE: 1.0 - 1e-10 rounds to exactly 1.0 in float32, so the halting test is
# effectively `combined > 1.0`.  This matches float32 PyTorch behaviour, so we
# keep it as-is.
THRESHOLD = 1.0 - 1e-10
LANES = 128


def act_kernel(b_ref, state_ref, w_ref, bufs_ref, uw_ref, bufs_out_ref):
    """One grid step over a tile of TILE_R * 128 tokens.

    b_ref:        (1,)               SMEM  pondering bias
    state_ref:    (TILE_R, 128, E)   VMEM  state tile
    w_ref:        (1, E)             VMEM  pondering weight (resident)
    bufs_ref:     (4, TILE_R, 128)   VMEM  [halting, running, remainders, n_updates]
    uw_ref:       (TILE_R, 128)      VMEM  update_weights out
    bufs_out_ref: (4, TILE_R, 128)   VMEM  updated buffers (aliased with bufs)
    """
    x = state_ref[...].astype(jnp.float32)            # (TR, L, E)
    w = w_ref[...].astype(jnp.float32)                # (1, E)
    b = b_ref[0]

    # pondering Linear(E -> 1) + sigmoid (f32 accumulation).
    # TODO(synk): could be moved to the MXU via a 2-D dot; left as mul+reduce
    # since the kernel is HBM-bound and this form lowers robustly.
    logits = jnp.sum(x * w[None, :, :], axis=-1) + b  # (TR, L)
    p = jax.nn.sigmoid(logits)

    halting = bufs_ref[0]
    running = bufs_ref[1]
    remainders = bufs_ref[2]
    n_updates = bufs_ref[3]

    # Exact PyTorch update order.
    combined = halting + p * running
    new_halted = jnp.where(combined > THRESHOLD, running, 0.0)
    running_new = running - new_halted                # == (combined <= thr) * running
    halting = halting + p * running_new
    remainders_new = remainders + new_halted * (1.0 - halting)
    halting = halting + new_halted * remainders_new
    n_updates_new = n_updates + running_new + new_halted
    update_weights = p * running_new + remainders_new * new_halted

    uw_ref[...] = update_weights
    bufs_out_ref[0] = halting
    bufs_out_ref[1] = running_new
    bufs_out_ref[2] = remainders_new
    bufs_out_ref[3] = n_updates_new


def _tile_rows(n_rows, embed, itemsize, target_bytes=4 * 1024 * 1024):
    """Rows (of 128 tokens) per grid step: ~4 MiB of state per tile."""
    per_row = LANES * embed * itemsize
    tr = max(8, (target_bytes // per_row) // 8 * 8)
    tr = min(tr, ((n_rows + 7) // 8) * 8)   # do not exceed padded total rows
    return int(max(tr, 8))


@jax.jit
def adaptive_computation_time(state, w, b, halting, running, remainders, n_updates):
    """Functional ACT step.

    Args:
      state: (S, N, E);  w: (1, E) Linear weight;  b: (1,) Linear bias;
      halting/running/remainders/n_updates: (S, N) module buffers.
    Returns:
      (update_weights (S, N, 1), n_updates (S, N), remainders (S, N),
       new_halting_probability (S, N), new_still_running_mask (S, N)).
    """
    S, N, E = state.shape
    T = S * N
    f32 = jnp.float32

    R = pl.cdiv(T, LANES)
    TILE_R = _tile_rows(R, E, jnp.dtype(state.dtype).itemsize)
    R_pad = pl.cdiv(R, TILE_R) * TILE_R
    T_pad = R_pad * LANES
    grid = (R_pad // TILE_R,)

    # Lane-dense token layout: flatten tokens, pad, view as (R_pad, 128).
    state_p = jnp.pad(state.reshape(T, E), ((0, T_pad - T), (0, 0)))
    state_p = state_p.reshape(R_pad, LANES, E)

    bufs = jnp.stack([halting, running, remainders, n_updates]).astype(f32)
    bufs = jnp.pad(bufs.reshape(4, T), ((0, 0), (0, T_pad - T)))
    bufs = bufs.reshape(4, R_pad, LANES)

    w2 = w.reshape(1, E).astype(f32)
    b1 = b.reshape(1).astype(f32)

    uw_p, bufs_out = pl.pallas_call(
        act_kernel,
        grid=grid,
        out_shape=(
            jax.ShapeDtypeStruct((R_pad, LANES), f32),
            jax.ShapeDtypeStruct((4, R_pad, LANES), f32),
        ),
        in_specs=[
            pl.BlockSpec(memory_space=pltpu.SMEM),                   # bias scalar
            pl.BlockSpec((TILE_R, LANES, E), lambda i: (i, 0, 0)),   # state tile
            pl.BlockSpec((1, E), lambda i: (0, 0)),                  # weight (resident)
            pl.BlockSpec((4, TILE_R, LANES), lambda i: (0, i, 0)),   # packed ACT buffers
        ],
        out_specs=[
            pl.BlockSpec((TILE_R, LANES), lambda i: (i, 0)),         # update_weights
            pl.BlockSpec((4, TILE_R, LANES), lambda i: (0, i, 0)),   # packed buffers out
        ],
        input_output_aliases={3: 1},                                 # in-place buffers
        compiler_params=pltpu.CompilerParams(
            dimension_semantics=("parallel",),
            vmem_limit_bytes=32 * 1024 * 1024,
        ),
    )(b1, state_p, w2, bufs)

    uw = uw_p.reshape(T_pad)[:T].reshape(S, N, 1)
    bo = bufs_out.reshape(4, T_pad)[:, :T]
    halting_new = bo[0].reshape(S, N)
    running_new = bo[1].reshape(S, N)
    remainders_new = bo[2].reshape(S, N)
    n_updates_new = bo[3].reshape(S, N)
    return uw, n_updates_new, remainders_new, halting_new, running_new


def act_reference(state, w, b, halting, running, remainders, n_updates):
    """Plain-JAX reference mirroring the PyTorch forward."""
    p = jax.nn.sigmoid(jnp.einsum("sne,e->sn", state, w) + b[0])
    combined = halting + p * running
    new_halted = (combined > THRESHOLD).astype(p.dtype) * running
    running_new = (combined <= THRESHOLD).astype(p.dtype) * running
    halting = halting + p * running_new
    remainders_new = remainders + new_halted * (1.0 - halting)
    halting = halting + new_halted * remainders_new
    n_updates_new = n_updates + running_new + new_halted
    uw = (p * running_new + remainders_new * new_halted)[..., None]
    return uw, n_updates_new, remainders_new, halting, running_new


if __name__ == "__main__":
    S, N, E = 8, 2, 32  # seq_size, batch_size, hidden_size

    key = jax.random.PRNGKey(0)
    k_state, k_w, k_b, k_h, k_r = jax.random.split(key, 5)

    state = jax.random.normal(k_state, (S, N, E), dtype=jnp.float32)
    # Pondering Linear(E, 1) params (PyTorch weight is (1, E)).
    w = jax.random.normal(k_w, (E,), dtype=jnp.float32) * 0.1
    b = jax.random.normal(k_b, (1,), dtype=jnp.float32) * 0.1

    # Mid-ACT buffer state so both the newly-halted and still-running branches
    # are exercised.
    halting = jax.random.uniform(k_h, (S, N), dtype=jnp.float32)
    running = (jax.random.uniform(k_r, (S, N)) > 0.25).astype(jnp.float32)
    remainders = (1.0 - running) * (1.0 - halting)
    n_updates = jnp.full((S, N), 2.0, dtype=jnp.float32)

    outs = adaptive_computation_time(
        state, w.reshape(1, E), b, halting, running, remainders, n_updates)
    outs = jax.block_until_ready(outs)

    refs = act_reference(state, w, b, halting, running, remainders, n_updates)
    for o, r in zip(outs, refs):
        assert o.shape == r.shape, (o.shape, r.shape)
        assert jnp.allclose(o, r, atol=1e-5, rtol=1e-5)

    print("KERNEL_OK")
</pallas_src>

<mosaic_0001>
module attributes {stable_mosaic.version = 11 : i64} {
  func.func @act_kernel(%arg0: i32, %arg1: memref<1xf32, #tpu.memory_space<smem>>, %arg2: memref<8x128x32xf32, #tpu.memory_space<vmem>>, %arg3: memref<1x32xf32, #tpu.memory_space<vmem>>, %arg4: memref<4x8x128xf32, #tpu.memory_space<vmem>>, %arg5: memref<8x128xf32, #tpu.memory_space<vmem>>, %arg6: memref<4x8x128xf32, #tpu.memory_space<vmem>>) attributes {dimension_semantics = [#tpu.dimension_semantics<parallel>], iteration_bounds = array<i64: 1>, scalar_prefetch = 0 : i64, scratch_operands = 0 : i64, tpu.core_type = #tpu.core_type<tc>, window_params = [{transform_indices = @transform_0, window_bounds = array<i64: 1>}, {transform_indices = @transform_1, window_bounds = array<i64: 8, 128, 32>}, {pipeline_mode = #tpu.pipeline_mode<synchronous>, transform_indices = @transform_2, window_bounds = array<i64: 1, 32>}, {transform_indices = @transform_3, window_bounds = array<i64: 4, 8, 128>}, {transform_indices = @transform_4, window_bounds = array<i64: 8, 128>}, {transform_indices = @transform_5, window_bounds = array<i64: 4, 8, 128>}]} {
    %c0 = arith.constant 0 : index
    %c0_0 = arith.constant 0 : index
    %c0_1 = arith.constant 0 : index
    %0 = vector.load %arg2[%c0, %c0_0, %c0_1] : memref<8x128x32xf32, #tpu.memory_space<vmem>>, vector<8x128x32xf32>
    %c0_2 = arith.constant 0 : index
    %c0_3 = arith.constant 0 : index
    %1 = vector.load %arg3[%c0_2, %c0_3] : memref<1x32xf32, #tpu.memory_space<vmem>>, vector<1x32xf32>
    %c0_4 = arith.constant 0 : index
    %2 = memref.load %arg1[%c0_4] : memref<1xf32, #tpu.memory_space<smem>>
    %3 = vector.shape_cast %1 : vector<1x32xf32> to vector<1x1x32xf32>
    %4 = vector.broadcast %3 : vector<1x1x32xf32> to vector<8x128x32xf32>
    %5 = arith.mulf %0, %4 : vector<8x128x32xf32>
    %cst = arith.constant dense<0.000000e+00> : vector<8x128xf32>
    %6 = vector.multi_reduction <add>, %5, %cst [2] : vector<8x128x32xf32> to vector<8x128xf32>
    %7 = vector.broadcast %2 : f32 to vector<8x128xf32>
    %8 = arith.addf %6, %7 : vector<8x128xf32>
    %9 = arith.negf %8 : vector<8x128xf32>
    %10 = math.exp %9 : vector<8x128xf32>
    %cst_5 = arith.constant 1.000000e+00 : f32
    %11 = vector.broadcast %cst_5 : f32 to vector<8x128xf32>
    %12 = arith.addf %11, %10 : vector<8x128xf32>
    %13 = arith.divf %11, %12 : vector<8x128xf32>
    %c0_6 = arith.constant 0 : index
    %c0_7 = arith.constant 0 : index
    %c0_8 = arith.constant 0 : index
    %14 = vector.load %arg4[%c0_6, %c0_7, %c0_8] : memref<4x8x128xf32, #tpu.memory_space<vmem>>, vector<1x8x128xf32>
    %15 = vector.shape_cast %14 : vector<1x8x128xf32> to vector<8x128xf32>
    %c1 = arith.constant 1 : index
    %c0_9 = arith.constant 0 : index
    %c0_10 = arith.constant 0 : index
    %16 = vector.load %arg4[%c1, %c0_9, %c0_10] : memref<4x8x128xf32, #tpu.memory_space<vmem>>, vector<1x8x128xf32>
    %17 = vector.shape_cast %16 : vector<1x8x128xf32> to vector<8x128xf32>
    %c2 = arith.constant 2 : index
    %c0_11 = arith.constant 0 : index
    %c0_12 = arith.constant 0 : index
    %18 = vector.load %arg4[%c2, %c0_11, %c0_12] : memref<4x8x128xf32, #tpu.memory_space<vmem>>, vector<1x8x128xf32>
    %19 = vector.shape_cast %18 : vector<1x8x128xf32> to vector<8x128xf32>
    %c3 = arith.constant 3 : index
    %c0_13 = arith.constant 0 : index
    %c0_14 = arith.constant 0 : index
    %20 = vector.load %arg4[%c3, %c0_13, %c0_14] : memref<4x8x128xf32, #tpu.memory_space<vmem>>, vector<1x8x128xf32>
    %21 = vector.shape_cast %20 : vector<1x8x128xf32> to vector<8x128xf32>
    %22 = arith.mulf %13, %17 : vector<8x128xf32>
    %23 = arith.addf %15, %22 : vector<8x128xf32>
    %cst_15 = arith.constant 1.000000e+00 : f32
    %24 = vector.broadcast %cst_15 : f32 to vector<8x128xf32>
    %25 = arith.cmpf ogt, %23, %24 : vector<8x128xf32>
    %cst_16 = arith.constant 0.000000e+00 : f32
    %26 = vector.broadcast %cst_16 : f32 to vector<8x128xf32>
    %27 = arith.select %25, %17, %26 : vector<8x128xi1>, vector<8x128xf32>
    %28 = arith.subf %17, %27 : vector<8x128xf32>
    %29 = arith.mulf %13, %28 : vector<8x128xf32>
    %30 = arith.addf %15, %29 : vector<8x128xf32>
    %cst_17 = arith.constant 1.000000e+00 : f32
    %31 = vector.broadcast %cst_17 : f32 to vector<8x128xf32>
    %32 = arith.subf %31, %30 : vector<8x128xf32>
    %33 = arith.mulf %27, %32 : vector<8x128xf32>
    %34 = arith.addf %19, %33 : vector<8x128xf32>
    %35 = arith.mulf %27, %34 : vector<8x128xf32>
    %36 = arith.addf %30, %35 : vector<8x128xf32>
    %37 = arith.addf %21, %28 : vector<8x128xf32>
    %38 = arith.addf %37, %27 : vector<8x128xf32>
    %39 = arith.mulf %13, %28 : vector<8x128xf32>
    %40 = arith.mulf %34, %27 : vector<8x128xf32>
    %41 = arith.addf %39, %40 : vector<8x128xf32>
    %c0_18 = arith.constant 0 : index
    %c0_19 = arith.constant 0 : index
    %42 = vector.load %arg5[%c0_18, %c0_19] : memref<8x128xf32, #tpu.memory_space<vmem>>, vector<8x128xf32>
    tpu.vector_store %arg5[%c0_18, %c0_19], %41 {strides = array<i32>} : memref<8x128xf32, #tpu.memory_space<vmem>>, vector<8x128xf32>,
    %c0_20 = arith.constant 0 : index
    %c0_21 = arith.constant 0 : index
    %c0_22 = arith.constant 0 : index
    %43 = vector.load %arg6[%c0_20, %c0_21, %c0_22] : memref<4x8x128xf32, #tpu.memory_space<vmem>>, vector<1x8x128xf32>
    %44 = vector.shape_cast %43 : vector<1x8x128xf32> to vector<8x128xf32>
    %45 = vector.shape_cast %36 : vector<8x128xf32> to vector<1x8x128xf32>
    tpu.vector_store %arg6[%c0_20, %c0_21, %c0_22], %45 {strides = array<i32>} : memref<4x8x128xf32, #tpu.memory_space<vmem>>, vector<1x8x128xf32>,
    %c1_23 = arith.constant 1 : index
    %c0_24 = arith.constant 0 : index
    %c0_25 = arith.constant 0 : index
    %46 = vector.load %arg6[%c1_23, %c0_24, %c0_25] : memref<4x8x128xf32, #tpu.memory_space<vmem>>, vector<1x8x128xf32>
    %47 = vector.shape_cast %46 : vector<1x8x128xf32> to vector<8x128xf32>
    %48 = vector.shape_cast %28 : vector<8x128xf32> to vector<1x8x128xf32>
    tpu.vector_store %arg6[%c1_23, %c0_24, %c0_25], %48 {strides = array<i32>} : memref<4x8x128xf32, #tpu.memory_space<vmem>>, vector<1x8x128xf32>,
    %c2_26 = arith.constant 2 : index
    %c0_27 = arith.constant 0 : index
    %c0_28 = arith.constant 0 : index
    %49 = vector.load %arg6[%c2_26, %c0_27, %c0_28] : memref<4x8x128xf32, #tpu.memory_space<vmem>>, vector<1x8x128xf32>
    %50 = vector.shape_cast %49 : vector<1x8x128xf32> to vector<8x128xf32>
    %51 = vector.shape_cast %34 : vector<8x128xf32> to vector<1x8x128xf32>
    tpu.vector_store %arg6[%c2_26, %c0_27, %c0_28], %51 {strides = array<i32>} : memref<4x8x128xf32, #tpu.memory_space<vmem>>, vector<1x8x128xf32>,
    %c3_29 = arith.constant 3 : index
    %c0_30 = arith.constant 0 : index
    %c0_31 = arith.constant 0 : index
    %52 = vector.load %arg6[%c3_29, %c0_30, %c0_31] : memref<4x8x128xf32, #tpu.memory_space<vmem>>, vector<1x8x128xf32>
    %53 = vector.shape_cast %52 : vector<1x8x128xf32> to vector<8x128xf32>
    %54 = vector.shape_cast %38 : vector<8x128xf32> to vector<1x8x128xf32>
    tpu.vector_store %arg6[%c3_29, %c0_30, %c0_31], %54 {strides = array<i32>} : memref<4x8x128xf32, #tpu.memory_space<vmem>>, vector<1x8x128xf32>,
    return
  }
  func.func @transform_0(%arg0: i32) -> i32 {
    %c0_i32 = arith.constant 0 : i32
    %c0_i32_0 = arith.constant 0 : i32
    return %c0_i32 : i32
  }
  func.func @transform_1(%arg0: i32) -> (i32, i32, i32) {
    %c0_i32 = arith.constant 0 : i32
    %c0_i32_0 = arith.constant 0 : i32
    %c0_i32_1 = arith.constant 0 : i32
    return %arg0, %c0_i32, %c0_i32_0 : i32, i32, i32
  }
  func.func @transform_2(%arg0: i32) -> (i32, i32) {
    %c0_i32 = arith.constant 0 : i32
    %c0_i32_0 = arith.constant 0 : i32
    %c0_i32_1 = arith.constant 0 : i32
    return %c0_i32, %c0_i32_0 : i32, i32
  }
  func.func @transform_3(%arg0: i32) -> (i32, i32, i32) {
    %c0_i32 = arith.constant 0 : i32
    %c0_i32_0 = arith.constant 0 : i32
    %c0_i32_1 = arith.constant 0 : i32
    return %c0_i32, %arg0, %c0_i32_0 : i32, i32, i32
  }
  func.func @transform_4(%arg0: i32) -> (i32, i32) {
    %c0_i32 = arith.constant 0 : i32
    %c0_i32_0 = arith.constant 0 : i32
    return %arg0, %c0_i32 : i32, i32
  }
  func.func @transform_5(%arg0: i32) -> (i32, i32, i32) {
    %c0_i32 = arith.constant 0 : i32
    %c0_i32_0 = arith.constant 0 : i32
    %c0_i32_1 = arith.constant 0 : i32
    return %c0_i32, %arg0, %c0_i32_0 : i32, i32, i32
  }
}

</mosaic_0001>

<llo_original>
// kernel: squeeze.5
$region0: #{squeeze.5}
  %s0 = inlined_call_operand.vmem [shape: f32[16], index: 0, kind: input, shape index: {}]
  %s1 = inlined_call_operand.vmem [shape: f32[8,2], index: 1, kind: output, shape index: {}]
  $region1: #{squeeze.5} parent=0
    #allocation0 [shape = 'u8[4096]{0}', space=vmem, size = 0x1000, scoped, tag = 'scoped mem for input reshape']
    %s3 = sshllo.u32 0, 1
    %v4 = vld [vmem:[%s0] sm:%s3]
    %5 = vst [vmem:[#allocation0] sm:%s3] %v4
    %v6 = vld [vmem:[#allocation0] sm:$0x1]
    %vm7 = vcmask 15360
    %8 = vst.msk [vmem:[%s1] sm:$0x1] %vm7, %v6
    %v9 = vld [vmem:[#allocation0] sm:$0x1]
    %10 = vrot.lane.b32.xlu0 %v9, 126
    %v11 = vpop.permute.xlu0 %10
    %vm12 = vcmask 15360
    %s13 = scalar_lea.vmem %s1, 1
    %14 = vst.msk [vmem:[%s13] sm:$0x1] %vm12, %v11
    %v15 = vld [vmem:[#allocation0] sm:$0x1]
    %16 = vrot.lane.b32.xlu0 %v15, 124
    %v17 = vpop.permute.xlu0 %16
    %vm18 = vcmask 15360
    %s19 = scalar_lea.vmem %s1, 2
    %20 = vst.msk [vmem:[%s19] sm:$0x1] %vm18, %v17
    %v21 = vld [vmem:[#allocation0] sm:$0x1]
    %22 = vrot.lane.b32.xlu0 %v21, 122
    %v23 = vpop.permute.xlu0 %22
    %vm24 = vcmask 15360
    %s25 = scalar_lea.vmem %s1, 3
    %26 = vst.msk [vmem:[%s25] sm:$0x1] %vm24, %v23
    %v27 = vld [vmem:[#allocation0] sm:$0x1]
    %28 = vrot.lane.b32.xlu0 %v27, 120
    %v29 = vpop.permute.xlu0 %28
    %vm30 = vcmask 15360
    %s31 = scalar_lea.vmem %s1, 4
    %32 = vst.msk [vmem:[%s31] sm:$0x1] %vm30, %v29
    %v33 = vld [vmem:[#allocation0] sm:$0x1]
    %34 = vrot.lane.b32.xlu0 %v33, 118
    %v35 = vpop.permute.xlu0 %34
    %vm36 = vcmask 15360
    %s37 = scalar_lea.vmem %s1, 5
    %38 = vst.msk [vmem:[%s37] sm:$0x1] %vm36, %v35
    %v39 = vld [vmem:[#allocation0] sm:$0x1]
    %40 = vrot.lane.b32.xlu0 %v39, 116
    %v41 = vpop.permute.xlu0 %40
    %vm42 = vcmask 15360
    %s43 = scalar_lea.vmem %s1, 6
    %44 = vst.msk [vmem:[%s43] sm:$0x1] %vm42, %v41
    %v45 = vld [vmem:[#allocation0] sm:$0x1]
    %46 = vrot.lane.b32.xlu0 %v45, 114
    %v47 = vpop.permute.xlu0 %46
    %vm48 = vcmask 15360
    %s49 = scalar_lea.vmem %s1, 7
    %50 = vst.msk [vmem:[%s49] sm:$0x1] %vm48, %v47

// kernel: adaptive_computation_time.1
$region0: #{adaptive_computation_time.1}
  #allocation0 [shape = 'u32[]', space=smem, size = 0x4, offset = 0x4, fixed_abs, tag = 'smem constant byte address 0x4 - core index']
  #allocation1 [shape = 'u32[144,128]{1,0:T(1,128)}', space=vmem, size = 0x12000, scoped, tag = 'internal scratch']
  #allocation2 [shape = 'f32[1]{0:T(128)S(6)}', space=smem, size = 0x200, scoped, tag = 'scoped memory for adaptive_computation_time.1']
  %s0 = inlined_call_operand.<no memory space> [shape: f32[1], index: 0, kind: input, shape index: {}]
  %s1 = inlined_call_operand.vmem [shape: f32[8,128,32], index: 1, kind: input, shape index: {}]
  %s2 = inlined_call_operand.vmem [shape: f32[1,32], index: 2, kind: input, shape index: {}]
  %s3 = inlined_call_operand.vmem [shape: f32[4,8,128], index: 3, kind: input, shape index: {}, may-alias: {3,5}]
  %s4 = inlined_call_operand.vmem [shape: f32[8,128], index: 4, kind: output, shape index: {0}]
  %s5 = inlined_call_operand.vmem [shape: f32[4,8,128], index: 5, kind: output, shape index: {1}, may-alias: {3,5}]
  %6 = xla_tuple %s4, %s5
  %s7 = sld [smem:[#allocation0]]
  $region34: #{adaptive_computation_time.1} parent=0
    _
  %s9 = ssub.s32 1, %s7
  %s10 = scalar_select 0, %s9, %s7
  %11 = sst [smem:[#allocation2]] %s0
  // Predicated region
  $region2: #{adaptive_computation_time.1} parent=0 // pred_check
    _
  $region3: #{adaptive_computation_time.1} parent=0 // pred_check_branch
    %13 = sbr.rel (0) target = $region5
  $region4: #{adaptive_computation_time.1} parent=0 // pred_region
    _
  $region5: #{adaptive_computation_time.1} parent=0 // pred_fallthru
    _
  // Predicated region
  $region6: #{adaptive_computation_time.1} parent=0 // pred_check
    _
  $region7: #{adaptive_computation_time.1} parent=0 // pred_check_branch
    %15 = sbr.rel (0) target = $region9
  $region8: #{adaptive_computation_time.1} parent=0 // pred_region
    _
  $region9: #{adaptive_computation_time.1} parent=0 // pred_fallthru
    _
  // Predicated region
  $region10: #{adaptive_computation_time.1} parent=0 // pred_check
    _
  $region11: #{adaptive_computation_time.1} parent=0 // pred_check_branch
    %17 = sbr.rel (0) target = $region13
  $region12: #{adaptive_computation_time.1} parent=0 // pred_region
    _
  $region13: #{adaptive_computation_time.1} parent=0 // pred_fallthru
    _
  // Predicated region
  $region14: #{adaptive_computation_time.1} parent=0 // pred_check
    _
  $region15: #{adaptive_computation_time.1} parent=0 // pred_check_branch
    %19 = sbr.rel (0) target = $region17
  $region16: #{adaptive_computation_time.1} parent=0 // pred_region
    _
  $region17: #{adaptive_computation_time.1} parent=0 // pred_fallthru
    _
  %v20 = vld [vmem:[%s1] sm:$0xff]
  %v21 = vld [vmem:[%s1 + $0x8] sm:$0xff]
  %v22 = vld [vmem:[%s1 + $0x10] sm:$0xff]
  %v23 = vld [vmem:[%s1 + $0x18] sm:$0xff]
  %v24 = vld [vmem:[%s1 + $0x20] sm:$0xff]
  %v25 = vld [vmem:[%s1 + $0x28] sm:$0xff]
  %v26 = vld [vmem:[%s1 + $0x30] sm:$0xff]
  %v27 = vld [vmem:[%s1 + $0x38] sm:$0xff]
  %v28 = vld [vmem:[%s1 + $0x40] sm:$0xff]
  %v29 = vld [vmem:[%s1 + $0x48] sm:$0xff]
  %v30 = vld [vmem:[%s1 + $0x50] sm:$0xff]
  %v31 = vld [vmem:[%s1 + $0x58] sm:$0xff]
  %v32 = vld [vmem:[%s1 + $0x60] sm:$0xff]
  %v33 = vld [vmem:[%s1 + $0x68] sm:$0xff]
  %v34 = vld [vmem:[%s1 + $0x70] sm:$0xff]
  %v35 = vld [vmem:[%s1 + $0x78] sm:$0xff]
  %v36 = vld [vmem:[%s1 + $0x80] sm:$0xff]
  %v37 = vld [vmem:[%s1 + $0x88] sm:$0xff]
  %v38 = vld [vmem:[%s1 + $0x90] sm:$0xff]
  %v39 = vld [vmem:[%s1 + $0x98] sm:$0xff]
  %v40 = vld [vmem:[%s1 + $0xa0] sm:$0xff]
  %v41 = vld [vmem:[%s1 + $0xa8] sm:$0xff]
  %v42 = vld [vmem:[%s1 + $0xb0] sm:$0xff]
  %v43 = vld [vmem:[%s1 + $0xb8] sm:$0xff]
  %v44 = vld [vmem:[%s1 + $0xc0] sm:$0xff]
  %v45 = vld [vmem:[%s1 + $0xc8] sm:$0xff]
  %v46 = vld [vmem:[%s1 + $0xd0] sm:$0xff]
  %v47 = vld [vmem:[%s1 + $0xd8] sm:$0xff]
  %v48 = vld [vmem:[%s1 + $0xe0] sm:$0xff]
  %v49 = vld [vmem:[%s1 + $0xe8] sm:$0xff]
  %v50 = vld [vmem:[%s1 + $0xf0] sm:$0xff]
  %v51 = vld [vmem:[%s1 + $0xf8] sm:$0xff]
  %v52 = vld [vmem:[%s1 + $0x100] sm:$0xff]
  %v53 = vld [vmem:[%s1 + $0x108] sm:$0xff]
  %v54 = vld [vmem:[%s1 + $0x110] sm:$0xff]
  %v55 = vld [vmem:[%s1 + $0x118] sm:$0xff]
  %v56 = vld [vmem:[%s1 + $0x120] sm:$0xff]
  %v57 = vld [vmem:[%s1 + $0x128] sm:$0xff]
  %v58 = vld [vmem:[%s1 + $0x130] sm:$0xff]
  %v59 = vld [vmem:[%s1 + $0x138] sm:$0xff]
  %v60 = vld [vmem:[%s1 + $0x140] sm:$0xff]
  %v61 = vld [vmem:[%s1 + $0x148] sm:$0xff]
  %v62 = vld [vmem:[%s1 + $0x150] sm:$0xff]
  %v63 = vld [vmem:[%s1 + $0x158] sm:$0xff]
  %v64 = vld [vmem:[%s1 + $0x160] sm:$0xff]
  %v65 = vld [vmem:[%s1 + $0x168] sm:$0xff]
  %v66 = vld [vmem:[%s1 + $0x170] sm:$0xff]
  %v67 = vld [vmem:[%s1 + $0x178] sm:$0xff]
  %v68 = vld [vmem:[%s1 + $0x180] sm:$0xff]
  %v69 = vld [vmem:[%s1 + $0x188] sm:$0xff]
  %v70 = vld [vmem:[%s1 + $0x190] sm:$0xff]
  %v71 = vld [vmem:[%s1 + $0x198] sm:$0xff]
  %v72 = vld [vmem:[%s1 + $0x1a0] sm:$0xff]
  %v73 = vld [vmem:[%s1 + $0x1a8] sm:$0xff]
  %v74 = vld [vmem:[%s1 + $0x1b0] sm:$0xff]
  %v75 = vld [vmem:[%s1 + $0x1b8] sm:$0xff]
  %v76 = vld [vmem:[%s1 + $0x1c0] sm:$0xff]
  %v77 = vld [vmem:[%s1 + $0x1c8] sm:$0xff]
  %v78 = vld [vmem:[%s1 + $0x1d0] sm:$0xff]
  %v79 = vld [vmem:[%s1 + $0x1d8] sm:$0xff]
  %v80 = vld [vmem:[%s1 + $0x1e0] sm:$0xff]
  %v81 = vld [vmem:[%s1 + $0x1e8] sm:$0xff]
  %v82 = vld [vmem:[%s1 + $0x1f0] sm:$0xff]
  %v83 = vld [vmem:[%s1 + $0x1f8] sm:$0xff]
  %v84 = vld [vmem:[%s1 + $0x200] sm:$0xff]
  %v85 = vld [vmem:[%s1 + $0x208] sm:$0xff]
  %v86 = vld [vmem:[%s1 + $0x210] sm:$0xff]
  %v87 = vld [vmem:[%s1 + $0x218] sm:$0xff]
  %v88 = vld [vmem:[%s1 + $0x220] sm:$0xff]
  %v89 = vld [vmem:[%s1 + $0x228] sm:$0xff]
  %v90 = vld [vmem:[%s1 + $0x230] sm:$0xff]
  %v91 = vld [vmem:[%s1 + $0x238] sm:$0xff]
  %v92 = vld [vmem:[%s1 + $0x240] sm:$0xff]
  %v93 = vld [vmem:[%s1 + $0x248] sm:$0xff]
  %v94 = vld [vmem:[%s1 + $0x250] sm:$0xff]
  %v95 = vld [vmem:[%s1 + $0x258] sm:$0xff]
  %v96 = vld [vmem:[%s1 + $0x260] sm:$0xff]
  %v97 = vld [vmem:[%s1 + $0x268] sm:$0xff]
  %v98 = vld [vmem:[%s1 + $0x270] sm:$0xff]
  %v99 = vld [vmem:[%s1 + $0x278] sm:$0xff]
  %v100 = vld [vmem:[%s1 + $0x280] sm:$0xff]
  %v101 = vld [vmem:[%s1 + $0x288] sm:$0xff]
  %v102 = vld [vmem:[%s1 + $0x290] sm:$0xff]
  %v103 = vld [vmem:[%s1 + $0x298] sm:$0xff]
  %v104 = vld [vmem:[%s1 + $0x2a0] sm:$0xff]
  %v105 = vld [vmem:[%s1 + $0x2a8] sm:$0xff]
  %v106 = vld [vmem:[%s1 + $0x2b0] sm:$0xff]
  %v107 = vld [vmem:[%s1 + $0x2b8] sm:$0xff]
  %v108 = vld [vmem:[%s1 + $0x2c0] sm:$0xff]
  %v109 = vld [vmem:[%s1 + $0x2c8] sm:$0xff]
  %v110 = vld [vmem:[%s1 + $0x2d0] sm:$0xff]
  %v111 = vld [vmem:[%s1 + $0x2d8] sm:$0xff]
  %v112 = vld [vmem:[%s1 + $0x2e0] sm:$0xff]
  %v113 = vld [vmem:[%s1 + $0x2e8] sm:$0xff]
  %v114 = vld [vmem:[%s1 + $0x2f0] sm:$0xff]
  %v115 = vld [vmem:[%s1 + $0x2f8] sm:$0xff]
  %v116 = vld [vmem:[%s1 + $0x300] sm:$0xff]
  %v117 = vld [vmem:[%s1 + $0x308] sm:$0xff]
  %v118 = vld [vmem:[%s1 + $0x310] sm:$0xff]
  %v119 = vld [vmem:[%s1 + $0x318] sm:$0xff]
  %v120 = vld [vmem:[%s1 + $0x320] sm:$0xff]
  %v121 = vld [vmem:[%s1 + $0x328] sm:$0xff]
  %v122 = vld [vmem:[%s1 + $0x330] sm:$0xff]
  %v123 = vld [vmem:[%s1 + $0x338] sm:$0xff]
  %v124 = vld [vmem:[%s1 + $0x340] sm:$0xff]
  %v125 = vld [vmem:[%s1 + $0x348] sm:$0xff]
  %v126 = vld [vmem:[%s1 + $0x350] sm:$0xff]
  %v127 = vld [vmem:[%s1 + $0x358] sm:$0xff]
  %v128 = vld [vmem:[%s1 + $0x360] sm:$0xff]
  %v129 = vld [vmem:[%s1 + $0x368] sm:$0xff]
  %v130 = vld [vmem:[%s1 + $0x370] sm:$0xff]
  %v131 = vld [vmem:[%s1 + $0x378] sm:$0xff]
  %v132 = vld [vmem:[%s1 + $0x380] sm:$0xff]
  %v133 = vld [vmem:[%s1 + $0x388] sm:$0xff]
  %v134 = vld [vmem:[%s1 + $0x390] sm:$0xff]
  %v135 = vld [vmem:[%s1 + $0x398] sm:$0xff]
  %v136 = vld [vmem:[%s1 + $0x3a0] sm:$0xff]
  %v137 = vld [vmem:[%s1 + $0x3a8] sm:$0xff]
  %v138 = vld [vmem:[%s1 + $0x3b0] sm:$0xff]
  %v139 = vld [vmem:[%s1 + $0x3b8] sm:$0xff]
  %v140 = vld [vmem:[%s1 + $0x3c0] sm:$0xff]
  %v141 = vld [vmem:[%s1 + $0x3c8] sm:$0xff]
  %v142 = vld [vmem:[%s1 + $0x3d0] sm:$0xff]
  %v143 = vld [vmem:[%s1 + $0x3d8] sm:$0xff]
  %v144 = vld [vmem:[%s1 + $0x3e0] sm:$0xff]
  %v145 = vld [vmem:[%s1 + $0x3e8] sm:$0xff]
  %v146 = vld [vmem:[%s1 + $0x3f0] sm:$0xff]
  %v147 = vld [vmem:[%s1 + $0x3f8] sm:$0xff]
  %v148 = vld [vmem:[%s2] sm:$0x1]
  %s149 = sld [smem:[#allocation2]]
  %v151 = vlaneseq
  %v152 = vshrl.u32 %v151, 7
  %v153 = vsub.s32 0, %v152
  %v154 = vrot.slane %v148, %v153
  %v156 = vmul.f32 %v20, %v154
  %v157 = vmul.f32 %v21, %v154
  %v158 = vmul.f32 %v22, %v154
  %v159 = vmul.f32 %v23, %v154
  %v160 = vmul.f32 %v24, %v154
  %v161 = vmul.f32 %v25, %v154
  %v162 = vmul.f32 %v26, %v154
  %v163 = vmul.f32 %v27, %v154
  %v164 = vmul.f32 %v28, %v154
  %v165 = vmul.f32 %v29, %v154
  %v166 = vmul.f32 %v30, %v154
  %v167 = vmul.f32 %v31, %v154
  %v168 = vmul.f32 %v32, %v154
  %v169 = vmul.f32 %v33, %v154
  %v170 = vmul.f32 %v34, %v154
  %v171 = vmul.f32 %v35, %v154
  %v172 = vmul.f32 %v36, %v154
  %v173 = vmul.f32 %v37, %v154
  %v174 = vmul.f32 %v38, %v154
  %v175 = vmul.f32 %v39, %v154
  %v176 = vmul.f32 %v40, %v154
  %v177 = vmul.f32 %v41, %v154
  %v178 = vmul.f32 %v42, %v154
  %v179 = vmul.f32 %v43, %v154
  %v180 = vmul.f32 %v44, %v154
  %v181 = vmul.f32 %v45, %v154
  %v182 = vmul.f32 %v46, %v154
  %v183 = vmul.f32 %v47, %v154
  %v184 = vmul.f32 %v48, %v154
  %v185 = vmul.f32 %v49, %v154
  %v186 = vmul.f32 %v50, %v154
  %v187 = vmul.f32 %v51, %v154
  %v188 = vmul.f32 %v52, %v154
  %v189 = vmul.f32 %v53, %v154
  %v190 = vmul.f32 %v54, %v154
  %v191 = vmul.f32 %v55, %v154
  %v192 = vmul.f32 %v56, %v154
  %v193 = vmul.f32 %v57, %v154
  %v194 = vmul.f32 %v58, %v154
  %v195 = vmul.f32 %v59, %v154
  %v196 = vmul.f32 %v60, %v154
  %v197 = vmul.f32 %v61, %v154
  %v198 = vmul.f32 %v62, %v154
  %v199 = vmul.f32 %v63, %v154
  %v200 = vmul.f32 %v64, %v154
  %v201 = vmul.f32 %v65, %v154
  %v202 = vmul.f32 %v66, %v154
  %v203 = vmul.f32 %v67, %v154
  %v204 = vmul.f32 %v68, %v154
  %v205 = vmul.f32 %v69, %v154
  %v206 = vmul.f32 %v70, %v154
  %v207 = vmul.f32 %v71, %v154
  %v208 = vmul.f32 %v72, %v154
  %v209 = vmul.f32 %v73, %v154
  %v210 = vmul.f32 %v74, %v154
  %v211 = vmul.f32 %v75, %v154
  %v212 = vmul.f32 %v76, %v154
  %v213 = vmul.f32 %v77, %v154
  %v214 = vmul.f32 %v78, %v154
  %v215 = vmul.f32 %v79, %v154
  %v216 = vmul.f32 %v80, %v154
  %v217 = vmul.f32 %v81, %v154
  %v218 = vmul.f32 %v82, %v154
  %v219 = vmul.f32 %v83, %v154
  %v220 = vmul.f32 %v84, %v154
  %v221 = vmul.f32 %v85, %v154
  %v222 = vmul.f32 %v86, %v154
  %v223 = vmul.f32 %v87, %v154
  %v224 = vmul.f32 %v88, %v154
  %v225 = vmul.f32 %v89, %v154
  %v226 = vmul.f32 %v90, %v154
  %v227 = vmul.f32 %v91, %v154
  %v228 = vmul.f32 %v92, %v154
  %v229 = vmul.f32 %v93, %v154
  %v230 = vmul.f32 %v94, %v154
  %v231 = vmul.f32 %v95, %v154
  %v232 = vmul.f32 %v96, %v154
  %v233 = vmul.f32 %v97, %v154
  %v234 = vmul.f32 %v98, %v154
  %v235 = vmul.f32 %v99, %v154
  %v236 = vmul.f32 %v100, %v154
  %v237 = vmul.f32 %v101, %v154
  %v238 = vmul.f32 %v102, %v154
  %v239 = vmul.f32 %v103, %v154
  %v240 = vmul.f32 %v104, %v154
  %v241 = vmul.f32 %v105, %v154
  %v242 = vmul.f32 %v106, %v154
  %v243 = vmul.f32 %v107, %v154
  %v244 = vmul.f32 %v108, %v154
  %v245 = vmul.f32 %v109, %v154
  %v246 = vmul.f32 %v110, %v154
  %v247 = vmul.f32 %v111, %v154
  %v248 = vmul.f32 %v112, %v154
  %v249 = vmul.f32 %v113, %v154
  %v250 = vmul.f32 %v114, %v154
  %v251 = vmul.f32 %v115, %v154
  %v252 = vmul.f32 %v116, %v154
  %v253 = vmul.f32 %v117, %v154
  %v254 = vmul.f32 %v118, %v154
  %v255 = vmul.f32 %v119, %v154
  %v256 = vmul.f32 %v120, %v154
  %v257 = vmul.f32 %v121, %v154
  %v258 = vmul.f32 %v122, %v154
  %v259 = vmul.f32 %v123, %v154
  %v260 = vmul.f32 %v124, %v154
  %v261 = vmul.f32 %v125, %v154
  %v262 = vmul.f32 %v126, %v154
  %v263 = vmul.f32 %v127, %v154
  %v264 = vmul.f32 %v128, %v154
  %v265 = vmul.f32 %v129, %v154
  %v266 = vmul.f32 %v130, %v154
  %v267 = vmul.f32 %v131, %v154
  %v268 = vmul.f32 %v132, %v154
  %v269 = vmul.f32 %v133, %v154
  %v270 = vmul.f32 %v134, %v154
  %v271 = vmul.f32 %v135, %v154
  %v272 = vmul.f32 %v136, %v154
  %v273 = vmul.f32 %v137, %v154
  %v274 = vmul.f32 %v138, %v154
  %v275 = vmul.f32 %v139, %v154
  %v276 = vmul.f32 %v140, %v154
  %v277 = vmul.f32 %v141, %v154
  %v278 = vmul.f32 %v142, %v154
  %v279 = vmul.f32 %v143, %v154
  %v280 = vmul.f32 %v144, %v154
  %v281 = vmul.f32 %v145, %v154
  %v282 = vmul.f32 %v146, %v154
  %v283 = vmul.f32 %v147, %v154
  %vm284 = vcmask 261120
  %v285 = vsel %vm284, %v156, 0.0
  %286 = vadd.xlane.f32.xlu0 %v285
  %v287 = vpop.xlane.xlu0 %286
  %v288 = vsel %vm284, %v157, 0.0
  %289 = vadd.xlane.f32.xlu0 %v288
  %v290 = vpop.xlane.xlu0 %289
  %v291 = vsel %vm284, %v158, 0.0
  %292 = vadd.xlane.f32.xlu0 %v291
  %v293 = vpop.xlane.xlu0 %292
  %v294 = vsel %vm284, %v159, 0.0
  %295 = vadd.xlane.f32.xlu0 %v294
  %v296 = vpop.xlane.xlu0 %295
  %v297 = vsel %vm284, %v160, 0.0
  %298 = vadd.xlane.f32.xlu0 %v297
  %v299 = vpop.xlane.xlu0 %298
  %v300 = vsel %vm284, %v161, 0.0
  %301 = vadd.xlane.f32.xlu0 %v300
  %v302 = vpop.xlane.xlu0 %301
  %v303 = vsel %vm284, %v162, 0.0
  %304 = vadd.xlane.f32.xlu0 %v303
  %v305 = vpop.xlane.xlu0 %304
  %v306 = vsel %vm284, %v163, 0.0
  %307 = vadd.xlane.f32.xlu0 %v306
  %v308 = vpop.xlane.xlu0 %307
  %v309 = vsel %vm284, %v164, 0.0
  %310 = vadd.xlane.f32.xlu0 %v309
  %v311 = vpop.xlane.xlu0 %310
  %v312 = vsel %vm284, %v165, 0.0
  %313 = vadd.xlane.f32.xlu0 %v312
  %v314 = vpop.xlane.xlu0 %313
  %v315 = vsel %vm284, %v166, 0.0
  %316 = vadd.xlane.f32.xlu0 %v315
  %v317 = vpop.xlane.xlu0 %316
  %v318 = vsel %vm284, %v167, 0.0
  %319 = vadd.xlane.f32.xlu0 %v318
  %v320 = vpop.xlane.xlu0 %319
  %v321 = vsel %vm284, %v168, 0.0
  %322 = vadd.xlane.f32.xlu0 %v321
  %v323 = vpop.xlane.xlu0 %322
  %v324 = vsel %vm284, %v169, 0.0
  %325 = vadd.xlane.f32.xlu0 %v324
  %v326 = vpop.xlane.xlu0 %325
  %v327 = vsel %vm284, %v170, 0.0
  %328 = vadd.xlane.f32.xlu0 %v327
  %v329 = vpop.xlane.xlu0 %328
  %v330 = vsel %vm284, %v171, 0.0
  %331 = vadd.xlane.f32.xlu0 %v330
  %v332 = vpop.xlane.xlu0 %331
  %v333 = vsel %vm284, %v172, 0.0
  %334 = vadd.xlane.f32.xlu0 %v333
  %v335 = vpop.xlane.xlu0 %334
  %v336 = vsel %vm284, %v173, 0.0
  %337 = vadd.xlane.f32.xlu0 %v336
  %v338 = vpop.xlane.xlu0 %337
  %v339 = vsel %vm284, %v174, 0.0
  %340 = vadd.xlane.f32.xlu0 %v339
  %v341 = vpop.xlane.xlu0 %340
  %v342 = vsel %vm284, %v175, 0.0
  %343 = vadd.xlane.f32.xlu0 %v342
  %v344 = vpop.xlane.xlu0 %343
  %v345 = vsel %vm284, %v176, 0.0
  %346 = vadd.xlane.f32.xlu0 %v345
  %v347 = vpop.xlane.xlu0 %346
  %v348 = vsel %vm284, %v177, 0.0
  %349 = vadd.xlane.f32.xlu0 %v348
  %v350 = vpop.xlane.xlu0 %349
  %v351 = vsel %vm284, %v178, 0.0
  %352 = vadd.xlane.f32.xlu0 %v351
  %v353 = vpop.xlane.xlu0 %352
  %v354 = vsel %vm284, %v179, 0.0
  %355 = vadd.xlane.f32.xlu0 %v354
  %v356 = vpop.xlane.xlu0 %355
  %v357 = vsel %vm284, %v180, 0.0
  %358 = vadd.xlane.f32.xlu0 %v357
  %v359 = vpop.xlane.xlu0 %358
  %v360 = vsel %vm284, %v181, 0.0
  %361 = vadd.xlane.f32.xlu0 %v360
  %v362 = vpop.xlane.xlu0 %361
  %v363 = vsel %vm284, %v182, 0.0
  %364 = vadd.xlane.f32.xlu0 %v363
  %v365 = vpop.xlane.xlu0 %364
  %v366 = vsel %vm284, %v183, 0.0
  %367 = vadd.xlane.f32.xlu0 %v366
  %v368 = vpop.xlane.xlu0 %367
  %v369 = vsel %vm284, %v184, 0.0
  %370 = vadd.xlane.f32.xlu0 %v369
  %v371 = vpop.xlane.xlu0 %370
  %v372 = vsel %vm284, %v185, 0.0
  %373 = vadd.xlane.f32.xlu0 %v372
  %v374 = vpop.xlane.xlu0 %373
  %v375 = vsel %vm284, %v186, 0.0
  %376 = vadd.xlane.f32.xlu0 %v375
  %v377 = vpop.xlane.xlu0 %376
  %v378 = vsel %vm284, %v187, 0.0
  %379 = vadd.xlane.f32.xlu0 %v378
  %v380 = vpop.xlane.xlu0 %379
  %v381 = vsel %vm284, %v188, 0.0
  %382 = vadd.xlane.f32.xlu0 %v381
  %v383 = vpop.xlane.xlu0 %382
  %v384 = vsel %vm284, %v189, 0.0
  %385 = vadd.xlane.f32.xlu0 %v384
  %v386 = vpop.xlane.xlu0 %385
  %v387 = vsel %vm284, %v190, 0.0
  %388 = vadd.xlane.f32.xlu0 %v387
  %v389 = vpop.xlane.xlu0 %388
  %v390 = vsel %vm284, %v191, 0.0
  %391 = vadd.xlane.f32.xlu0 %v390
  %v392 = vpop.xlane.xlu0 %391
  %v393 = vsel %vm284, %v192, 0.0
  %394 = vadd.xlane.f32.xlu0 %v393
  %v395 = vpop.xlane.xlu0 %394
  %v396 = vsel %vm284, %v193, 0.0
  %397 = vadd.xlane.f32.xlu0 %v396
  %v398 = vpop.xlane.xlu0 %397
  %v399 = vsel %vm284, %v194, 0.0
  %400 = vadd.xlane.f32.xlu0 %v399
  %v401 = vpop.xlane.xlu0 %400
  %v402 = vsel %vm284, %v195, 0.0
  %403 = vadd.xlane.f32.xlu0 %v402
  %v404 = vpop.xlane.xlu0 %403
  %v405 = vsel %vm284, %v196, 0.0
  %406 = vadd.xlane.f32.xlu0 %v405
  %v407 = vpop.xlane.xlu0 %406
  %v408 = vsel %vm284, %v197, 0.0
  %409 = vadd.xlane.f32.xlu0 %v408
  %v410 = vpop.xlane.xlu0 %409
  %v411 = vsel %vm284, %v198, 0.0
  %412 = vadd.xlane.f32.xlu0 %v411
  %v413 = vpop.xlane.xlu0 %412
  %v414 = vsel %vm284, %v199, 0.0
  %415 = vadd.xlane.f32.xlu0 %v414
  %v416 = vpop.xlane.xlu0 %415
  %v417 = vsel %vm284, %v200, 0.0
  %418 = vadd.xlane.f32.xlu0 %v417
  %v419 = vpop.xlane.xlu0 %418
  %v420 = vsel %vm284, %v201, 0.0
  %421 = vadd.xlane.f32.xlu0 %v420
  %v422 = vpop.xlane.xlu0 %421
  %v423 = vsel %vm284, %v202, 0.0
  %424 = vadd.xlane.f32.xlu0 %v423
  %v425 = vpop.xlane.xlu0 %424
  %v426 = vsel %vm284, %v203, 0.0
  %427 = vadd.xlane.f32.xlu0 %v426
  %v428 = vpop.xlane.xlu0 %427
  %v429 = vsel %vm284, %v204, 0.0
  %430 = vadd.xlane.f32.xlu0 %v429
  %v431 = vpop.xlane.xlu0 %430
  %v432 = vsel %vm284, %v205, 0.0
  %433 = vadd.xlane.f32.xlu0 %v432
  %v434 = vpop.xlane.xlu0 %433
  %v435 = vsel %vm284, %v206, 0.0
  %436 = vadd.xlane.f32.xlu0 %v435
  %v437 = vpop.xlane.xlu0 %436
  %v438 = vsel %vm284, %v207, 0.0
  %439 = vadd.xlane.f32.xlu0 %v438
  %v440 = vpop.xlane.xlu0 %439
  %v441 = vsel %vm284, %v208, 0.0
  %442 = vadd.xlane.f32.xlu0 %v441
  %v443 = vpop.xlane.xlu0 %442
  %v444 = vsel %vm284, %v209, 0.0
  %445 = vadd.xlane.f32.xlu0 %v444
  %v446 = vpop.xlane.xlu0 %445
  %v447 = vsel %vm284, %v210, 0.0
  %448 = vadd.xlane.f32.xlu0 %v447
  %v449 = vpop.xlane.xlu0 %448
  %v450 = vsel %vm284, %v211, 0.0
  %451 = vadd.xlane.f32.xlu0 %v450
  %v452 = vpop.xlane.xlu0 %451
  %v453 = vsel %vm284, %v212, 0.0
  %454 = vadd.xlane.f32.xlu0 %v453
  %v455 = vpop.xlane.xlu0 %454
  %v456 = vsel %vm284, %v213, 0.0
  %457 = vadd.xlane.f32.xlu0 %v456
  %v458 = vpop.xlane.xlu0 %457
  %v459 = vsel %vm284, %v214, 0.0
  %460 = vadd.xlane.f32.xlu0 %v459
  %v461 = vpop.xlane.xlu0 %460
  %v462 = vsel %vm284, %v215, 0.0
  %463 = vadd.xlane.f32.xlu0 %v462
  %v464 = vpop.xlane.xlu0 %463
  %v465 = vsel %vm284, %v216, 0.0
  %466 = vadd.xlane.f32.xlu0 %v465
  %v467 = vpop.xlane.xlu0 %466
  %v468 = vsel %vm284, %v217, 0.0
  %469 = vadd.xlane.f32.xlu0 %v468
  %v470 = vpop.xlane.xlu0 %469
  %v471 = vsel %vm284, %v218, 0.0
  %472 = vadd.xlane.f32.xlu0 %v471
  %v473 = vpop.xlane.xlu0 %472
  %v474 = vsel %vm284, %v219, 0.0
  %475 = vadd.xlane.f32.xlu0 %v474
  %v476 = vpop.xlane.xlu0 %475
  %v477 = vsel %vm284, %v220, 0.0
  %478 = vadd.xlane.f32.xlu0 %v477
  %v479 = vpop.xlane.xlu0 %478
  %v480 = vsel %vm284, %v221, 0.0
  %481 = vadd.xlane.f32.xlu0 %v480
  %v482 = vpop.xlane.xlu0 %481
  %v483 = vsel %vm284, %v222, 0.0
  %484 = vadd.xlane.f32.xlu0 %v483
  %v485 = vpop.xlane.xlu0 %484
  %v486 = vsel %vm284, %v223, 0.0
  %487 = vadd.xlane.f32.xlu0 %v486
  %v488 = vpop.xlane.xlu0 %487
  %v489 = vsel %vm284, %v224, 0.0
  %490 = vadd.xlane.f32.xlu0 %v489
  %v491 = vpop.xlane.xlu0 %490
  %v492 = vsel %vm284, %v225, 0.0
  %493 = vadd.xlane.f32.xlu0 %v492
  %v494 = vpop.xlane.xlu0 %493
  %v495 = vsel %vm284, %v226, 0.0
  %496 = vadd.xlane.f32.xlu0 %v495
  %v497 = vpop.xlane.xlu0 %496
  %v498 = vsel %vm284, %v227, 0.0
  %499 = vadd.xlane.f32.xlu0 %v498
  %v500 = vpop.xlane.xlu0 %499
  %v501 = vsel %vm284, %v228, 0.0
  %502 = vadd.xlane.f32.xlu0 %v501
  %v503 = vpop.xlane.xlu0 %502
  %v504 = vsel %vm284, %v229, 0.0
  %505 = vadd.xlane.f32.xlu0 %v504
  %v506 = vpop.xlane.xlu0 %505
  %v507 = vsel %vm284, %v230, 0.0
  %508 = vadd.xlane.f32.xlu0 %v507
  %v509 = vpop.xlane.xlu0 %508
  %v510 = vsel %vm284, %v231, 0.0
  %511 = vadd.xlane.f32.xlu0 %v510
  %v512 = vpop.xlane.xlu0 %511
  %v513 = vsel %vm284, %v232, 0.0
  %514 = vadd.xlane.f32.xlu0 %v513
  %v515 = vpop.xlane.xlu0 %514
  %v516 = vsel %vm284, %v233, 0.0
  %517 = vadd.xlane.f32.xlu0 %v516
  %v518 = vpop.xlane.xlu0 %517
  %v519 = vsel %vm284, %v234, 0.0
  %520 = vadd.xlane.f32.xlu0 %v519
  %v521 = vpop.xlane.xlu0 %520
  %v522 = vsel %vm284, %v235, 0.0
  %523 = vadd.xlane.f32.xlu0 %v522
  %v524 = vpop.xlane.xlu0 %523
  %v525 = vsel %vm284, %v236, 0.0
  %526 = vadd.xlane.f32.xlu0 %v525
  %v527 = vpop.xlane.xlu0 %526
  %v528 = vsel %vm284, %v237, 0.0
  %529 = vadd.xlane.f32.xlu0 %v528
  %v530 = vpop.xlane.xlu0 %529
  %v531 = vsel %vm284, %v238, 0.0
  %532 = vadd.xlane.f32.xlu0 %v531
  %v533 = vpop.xlane.xlu0 %532
  %v534 = vsel %vm284, %v239, 0.0
  %535 = vadd.xlane.f32.xlu0 %v534
  %v536 = vpop.xlane.xlu0 %535
  %v537 = vsel %vm284, %v240, 0.0
  %538 = vadd.xlane.f32.xlu0 %v537
  %v539 = vpop.xlane.xlu0 %538
  %v540 = vsel %vm284, %v241, 0.0
  %541 = vadd.xlane.f32.xlu0 %v540
  %v542 = vpop.xlane.xlu0 %541
  %v543 = vsel %vm284, %v242, 0.0
  %544 = vadd.xlane.f32.xlu0 %v543
  %v545 = vpop.xlane.xlu0 %544
  %v546 = vsel %vm284, %v243, 0.0
  %547 = vadd.xlane.f32.xlu0 %v546
  %v548 = vpop.xlane.xlu0 %547
  %v549 = vsel %vm284, %v244, 0.0
  %550 = vadd.xlane.f32.xlu0 %v549
  %v551 = vpop.xlane.xlu0 %550
  %v552 = vsel %vm284, %v245, 0.0
  %553 = vadd.xlane.f32.xlu0 %v552
  %v554 = vpop.xlane.xlu0 %553
  %v555 = vsel %vm284, %v246, 0.0
  %556 = vadd.xlane.f32.xlu0 %v555
  %v557 = vpop.xlane.xlu0 %556
  %v558 = vsel %vm284, %v247, 0.0
  %559 = vadd.xlane.f32.xlu0 %v558
  %v560 = vpop.xlane.xlu0 %559
  %v561 = vsel %vm284, %v248, 0.0
  %562 = vadd.xlane.f32.xlu0 %v561
  %v563 = vpop.xlane.xlu0 %562
  %v564 = vsel %vm284, %v249, 0.0
  %565 = vadd.xlane.f32.xlu0 %v564
  %v566 = vpop.xlane.xlu0 %565
  %v567 = vsel %vm284, %v250, 0.0
  %568 = vadd.xlane.f32.xlu0 %v567
  %v569 = vpop.xlane.xlu0 %568
  %v570 = vsel %vm284, %v251, 0.0
  %571 = vadd.xlane.f32.xlu0 %v570
  %v572 = vpop.xlane.xlu0 %571
  %v573 = vsel %vm284, %v252, 0.0
  %574 = vadd.xlane.f32.xlu0 %v573
  %v575 = vpop.xlane.xlu0 %574
  %v576 = vsel %vm284, %v253, 0.0
  %577 = vadd.xlane.f32.xlu0 %v576
  %v578 = vpop.xlane.xlu0 %577
  %v579 = vsel %vm284, %v254, 0.0
  %580 = vadd.xlane.f32.xlu0 %v579
  %v581 = vpop.xlane.xlu0 %580
  %v582 = vsel %vm284, %v255, 0.0
  %583 = vadd.xlane.f32.xlu0 %v582
  %v584 = vpop.xlane.xlu0 %583
  %v585 = vsel %vm284, %v256, 0.0
  %586 = vadd.xlane.f32.xlu0 %v585
  %v587 = vpop.xlane.xlu0 %586
  %v588 = vsel %vm284, %v257, 0.0
  %589 = vadd.xlane.f32.xlu0 %v588
  %v590 = vpop.xlane.xlu0 %589
  %v591 = vsel %vm284, %v258, 0.0
  %592 = vadd.xlane.f32.xlu0 %v591
  %v593 = vpop.xlane.xlu0 %592
  %v594 = vsel %vm284, %v259, 0.0
  %595 = vadd.xlane.f32.xlu0 %v594
  %v596 = vpop.xlane.xlu0 %595
  %v597 = vsel %vm284, %v260, 0.0
  %598 = vadd.xlane.f32.xlu0 %v597
  %v599 = vpop.xlane.xlu0 %598
  %v600 = vsel %vm284, %v261, 0.0
  %601 = vadd.xlane.f32.xlu0 %v600
  %v602 = vpop.xlane.xlu0 %601
  %v603 = vsel %vm284, %v262, 0.0
  %604 = vadd.xlane.f32.xlu0 %v603
  %v605 = vpop.xlane.xlu0 %604
  %v606 = vsel %vm284, %v263, 0.0
  %607 = vadd.xlane.f32.xlu0 %v606
  %v608 = vpop.xlane.xlu0 %607
  %v609 = vsel %vm284, %v264, 0.0
  %610 = vadd.xlane.f32.xlu0 %v609
  %v611 = vpop.xlane.xlu0 %610
  %v612 = vsel %vm284, %v265, 0.0
  %613 = vadd.xlane.f32.xlu0 %v612
  %v614 = vpop.xlane.xlu0 %613
  %v615 = vsel %vm284, %v266, 0.0
  %616 = vadd.xlane.f32.xlu0 %v615
  %v617 = vpop.xlane.xlu0 %616
  %v618 = vsel %vm284, %v267, 0.0
  %619 = vadd.xlane.f32.xlu0 %v618
  %v620 = vpop.xlane.xlu0 %619
  %v621 = vsel %vm284, %v268, 0.0
  %622 = vadd.xlane.f32.xlu0 %v621
  %v623 = vpop.xlane.xlu0 %622
  %v624 = vsel %vm284, %v269, 0.0
  %625 = vadd.xlane.f32.xlu0 %v624
  %v626 = vpop.xlane.xlu0 %625
  %v627 = vsel %vm284, %v270, 0.0
  %628 = vadd.xlane.f32.xlu0 %v627
  %v629 = vpop.xlane.xlu0 %628
  %v630 = vsel %vm284, %v271, 0.0
  %631 = vadd.xlane.f32.xlu0 %v630
  %v632 = vpop.xlane.xlu0 %631
  %v633 = vsel %vm284, %v272, 0.0
  %634 = vadd.xlane.f32.xlu0 %v633
  %v635 = vpop.xlane.xlu0 %634
  %v636 = vsel %vm284, %v273, 0.0
  %637 = vadd.xlane.f32.xlu0 %v636
  %v638 = vpop.xlane.xlu0 %637
  %v639 = vsel %vm284, %v274, 0.0
  %640 = vadd.xlane.f32.xlu0 %v639
  %v641 = vpop.xlane.xlu0 %640
  %v642 = vsel %vm284, %v275, 0.0
  %643 = vadd.xlane.f32.xlu0 %v642
  %v644 = vpop.xlane.xlu0 %643
  %v645 = vsel %vm284, %v276, 0.0
  %646 = vadd.xlane.f32.xlu0 %v645
  %v647 = vpop.xlane.xlu0 %646
  %v648 = vsel %vm284, %v277, 0.0
  %649 = vadd.xlane.f32.xlu0 %v648
  %v650 = vpop.xlane.xlu0 %649
  %v651 = vsel %vm284, %v278, 0.0
  %652 = vadd.xlane.f32.xlu0 %v651
  %v653 = vpop.xlane.xlu0 %652
  %v654 = vsel %vm284, %v279, 0.0
  %655 = vadd.xlane.f32.xlu0 %v654
  %v656 = vpop.xlane.xlu0 %655
  %v657 = vsel %vm284, %v280, 0.0
  %658 = vadd.xlane.f32.xlu0 %v657
  %v659 = vpop.xlane.xlu0 %658
  %v660 = vsel %vm284, %v281, 0.0
  %661 = vadd.xlane.f32.xlu0 %v660
  %v662 = vpop.xlane.xlu0 %661
  %v663 = vsel %vm284, %v282, 0.0
  %664 = vadd.xlane.f32.xlu0 %v663
  %v665 = vpop.xlane.xlu0 %664
  %v666 = vsel %vm284, %v283, 0.0
  %667 = vadd.xlane.f32.xlu0 %v666
  %v668 = vpop.xlane.xlu0 %667
  %v669 = vstv %s149
  %v670 = vadd.f32 %v287, %v669
  %v671 = vadd.f32 %v290, %v669
  %v672 = vadd.f32 %v293, %v669
  %v673 = vadd.f32 %v296, %v669
  %v674 = vadd.f32 %v299, %v669
  %v675 = vadd.f32 %v302, %v669
  %v676 = vadd.f32 %v305, %v669
  %v677 = vadd.f32 %v308, %v669
  %v678 = vadd.f32 %v311, %v669
  %v679 = vadd.f32 %v314, %v669
  %v680 = vadd.f32 %v317, %v669
  %v681 = vadd.f32 %v320, %v669
  %v682 = vadd.f32 %v323, %v669
  %v683 = vadd.f32 %v326, %v669
  %v684 = vadd.f32 %v329, %v669
  %v685 = vadd.f32 %v332, %v669
  %v686 = vadd.f32 %v335, %v669
  %v687 = vadd.f32 %v338, %v669
  %v688 = vadd.f32 %v341, %v669
  %v689 = vadd.f32 %v344, %v669
  %v690 = vadd.f32 %v347, %v669
  %v691 = vadd.f32 %v350, %v669
  %v692 = vadd.f32 %v353, %v669
  %v693 = vadd.f32 %v356, %v669
  %v694 = vadd.f32 %v359, %v669
  %v695 = vadd.f32 %v362, %v669
  %v696 = vadd.f32 %v365, %v669
  %v697 = vadd.f32 %v368, %v669
  %v698 = vadd.f32 %v371, %v669
  %v699 = vadd.f32 %v374, %v669
  %v700 = vadd.f32 %v377, %v669
  %v701 = vadd.f32 %v380, %v669
  %v702 = vadd.f32 %v383, %v669
  %v703 = vadd.f32 %v386, %v669
  %v704 = vadd.f32 %v389, %v669
  %v705 = vadd.f32 %v392, %v669
  %v706 = vadd.f32 %v395, %v669
  %v707 = vadd.f32 %v398, %v669
  %v708 = vadd.f32 %v401, %v669
  %v709 = vadd.f32 %v404, %v669
  %v710 = vadd.f32 %v407, %v669
  %v711 = vadd.f32 %v410, %v669
  %v712 = vadd.f32 %v413, %v669
  %v713 = vadd.f32 %v416, %v669
  %v714 = vadd.f32 %v419, %v669
  %v715 = vadd.f32 %v422, %v669
  %v716 = vadd.f32 %v425, %v669
  %v717 = vadd.f32 %v428, %v669
  %v718 = vadd.f32 %v431, %v669
  %v719 = vadd.f32 %v434, %v669
  %v720 = vadd.f32 %v437, %v669
  %v721 = vadd.f32 %v440, %v669
  %v722 = vadd.f32 %v443, %v669
  %v723 = vadd.f32 %v446, %v669
  %v724 = vadd.f32 %v449, %v669
  %v725 = vadd.f32 %v452, %v669
  %v726 = vadd.f32 %v455, %v669
  %v727 = vadd.f32 %v458, %v669
  %v728 = vadd.f32 %v461, %v669
  %v729 = vadd.f32 %v464, %v669
  %v730 = vadd.f32 %v467, %v669
  %v731 = vadd.f32 %v470, %v669
  %v732 = vadd.f32 %v473, %v669
  %v733 = vadd.f32 %v476, %v669
  %v734 = vadd.f32 %v479, %v669
  %v735 = vadd.f32 %v482, %v669
  %v736 = vadd.f32 %v485, %v669
  %v737 = vadd.f32 %v488, %v669
  %v738 = vadd.f32 %v491, %v669
  %v739 = vadd.f32 %v494, %v669
  %v740 = vadd.f32 %v497, %v669
  %v741 = vadd.f32 %v500, %v669
  %v742 = vadd.f32 %v503, %v669
  %v743 = vadd.f32 %v506, %v669
  %v744 = vadd.f32 %v509, %v669
  %v745 = vadd.f32 %v512, %v669
  %v746 = vadd.f32 %v515, %v669
  %v747 = vadd.f32 %v518, %v669
  %v748 = vadd.f32 %v521, %v669
  %v749 = vadd.f32 %v524, %v669
  %v750 = vadd.f32 %v527, %v669
  %v751 = vadd.f32 %v530, %v669
  %v752 = vadd.f32 %v533, %v669
  %v753 = vadd.f32 %v536, %v669
  %v754 = vadd.f32 %v539, %v669
  %v755 = vadd.f32 %v542, %v669
  %v756 = vadd.f32 %v545, %v669
  %v757 = vadd.f32 %v548, %v669
  %v758 = vadd.f32 %v551, %v669
  %v759 = vadd.f32 %v554, %v669
  %v760 = vadd.f32 %v557, %v669
  %v761 = vadd.f32 %v560, %v669
  %v762 = vadd.f32 %v563, %v669
  %v763 = vadd.f32 %v566, %v669
  %v764 = vadd.f32 %v569, %v669
  %v765 = vadd.f32 %v572, %v669
  %v766 = vadd.f32 %v575, %v669
  %v767 = vadd.f32 %v578, %v669
  %v768 = vadd.f32 %v581, %v669
  %v769 = vadd.f32 %v584, %v669
  %v770 = vadd.f32 %v587, %v669
  %v771 = vadd.f32 %v590, %v669
  %v772 = vadd.f32 %v593, %v669
  %v773 = vadd.f32 %v596, %v669
  %v774 = vadd.f32 %v599, %v669
  %v775 = vadd.f32 %v602, %v669
  %v776 = vadd.f32 %v605, %v669
  %v777 = vadd.f32 %v608, %v669
  %v778 = vadd.f32 %v611, %v669
  %v779 = vadd.f32 %v614, %v669
  %v780 = vadd.f32 %v617, %v669
  %v781 = vadd.f32 %v620, %v669
  %v782 = vadd.f32 %v623, %v669
  %v783 = vadd.f32 %v626, %v669
  %v784 = vadd.f32 %v629, %v669
  %v785 = vadd.f32 %v632, %v669
  %v786 = vadd.f32 %v635, %v669
  %v787 = vadd.f32 %v638, %v669
  %v788 = vadd.f32 %v641, %v669
  %v789 = vadd.f32 %v644, %v669
  %v790 = vadd.f32 %v647, %v669
  %v791 = vadd.f32 %v650, %v669
  %v792 = vadd.f32 %v653, %v669
  %v793 = vadd.f32 %v656, %v669
  %v794 = vadd.f32 %v659, %v669
  %v795 = vadd.f32 %v662, %v669
  %v796 = vadd.f32 %v665, %v669
  %v797 = vadd.f32 %v668, %v669
  %v798 = vxor.u32 %v670, 2147483648
  %v799 = vxor.u32 %v671, 2147483648
  %v800 = vxor.u32 %v672, 2147483648
  %v801 = vxor.u32 %v673, 2147483648
  %v802 = vxor.u32 %v674, 2147483648
  %v803 = vxor.u32 %v675, 2147483648
  %v804 = vxor.u32 %v676, 2147483648
  %v805 = vxor.u32 %v677, 2147483648
  %v806 = vxor.u32 %v678, 2147483648
  %v807 = vxor.u32 %v679, 2147483648
  %v808 = vxor.u32 %v680, 2147483648
  %v809 = vxor.u32 %v681, 2147483648
  %v810 = vxor.u32 %v682, 2147483648
  %v811 = vxor.u32 %v683, 2147483648
  %v812 = vxor.u32 %v684, 2147483648
  %v813 = vxor.u32 %v685, 2147483648
  %v814 = vxor.u32 %v686, 2147483648
  %v815 = vxor.u32 %v687, 2147483648
  %v816 = vxor.u32 %v688, 2147483648
  %v817 = vxor.u32 %v689, 2147483648
  %v818 = vxor.u32 %v690, 2147483648
  %v819 = vxor.u32 %v691, 2147483648
  %v820 = vxor.u32 %v692, 2147483648
  %v821 = vxor.u32 %v693, 2147483648
  %v822 = vxor.u32 %v694, 2147483648
  %v823 = vxor.u32 %v695, 2147483648
  %v824 = vxor.u32 %v696, 2147483648
  %v825 = vxor.u32 %v697, 2147483648
  %v826 = vxor.u32 %v698, 2147483648
  %v827 = vxor.u32 %v699, 2147483648
  %v828 = vxor.u32 %v700, 2147483648
  %v829 = vxor.u32 %v701, 2147483648
  %v830 = vxor.u32 %v702, 2147483648
  %v831 = vxor.u32 %v703, 2147483648
  %v832 = vxor.u32 %v704, 2147483648
  %v833 = vxor.u32 %v705, 2147483648
  %v834 = vxor.u32 %v706, 2147483648
  %v835 = vxor.u32 %v707, 2147483648
  %v836 = vxor.u32 %v708, 2147483648
  %v837 = vxor.u32 %v709, 2147483648
  %v838 = vxor.u32 %v710, 2147483648
  %v839 = vxor.u32 %v711, 2147483648
  %v840 = vxor.u32 %v712, 2147483648
  %v841 = vxor.u32 %v713, 2147483648
  %v842 = vxor.u32 %v714, 2147483648
  %v843 = vxor.u32 %v715, 2147483648
  %v844 = vxor.u32 %v716, 2147483648
  %v845 = vxor.u32 %v717, 2147483648
  %v846 = vxor.u32 %v718, 2147483648
  %v847 = vxor.u32 %v719, 2147483648
  %v848 = vxor.u32 %v720, 2147483648
  %v849 = vxor.u32 %v721, 2147483648
  %v850 = vxor.u32 %v722, 2147483648
  %v851 = vxor.u32 %v723, 2147483648
  %v852 = vxor.u32 %v724, 2147483648
  %v853 = vxor.u32 %v725, 2147483648
  %v854 = vxor.u32 %v726, 2147483648
  %v855 = vxor.u32 %v727, 2147483648
  %v856 = vxor.u32 %v728, 2147483648
  %v857 = vxor.u32 %v729, 2147483648
  %v858 = vxor.u32 %v730, 2147483648
  %v859 = vxor.u32 %v731, 2147483648
  %v860 = vxor.u32 %v732, 2147483648
  %v861 = vxor.u32 %v733, 2147483648
  %v862 = vxor.u32 %v734, 2147483648
  %v863 = vxor.u32 %v735, 2147483648
  %v864 = vxor.u32 %v736, 2147483648
  %v865 = vxor.u32 %v737, 2147483648
  %v866 = vxor.u32 %v738, 2147483648
  %v867 = vxor.u32 %v739, 2147483648
  %v868 = vxor.u32 %v740, 2147483648
  %v869 = vxor.u32 %v741, 2147483648
  %v870 = vxor.u32 %v742, 2147483648
  %v871 = vxor.u32 %v743, 2147483648
  %v872 = vxor.u32 %v744, 2147483648
  %v873 = vxor.u32 %v745, 2147483648
  %v874 = vxor.u32 %v746, 2147483648
  %v875 = vxor.u32 %v747, 2147483648
  %v876 = vxor.u32 %v748, 2147483648
  %v877 = vxor.u32 %v749, 2147483648
  %v878 = vxor.u32 %v750, 2147483648
  %v879 = vxor.u32 %v751, 2147483648
  %v880 = vxor.u32 %v752, 2147483648
  %v881 = vxor.u32 %v753, 2147483648
  %v882 = vxor.u32 %v754, 2147483648
  %v883 = vxor.u32 %v755, 2147483648
  %v884 = vxor.u32 %v756, 2147483648
  %v885 = vxor.u32 %v757, 2147483648
  %v886 = vxor.u32 %v758, 2147483648
  %v887 = vxor.u32 %v759, 2147483648
  %v888 = vxor.u32 %v760, 2147483648
  %v889 = vxor.u32 %v761, 2147483648
  %v890 = vxor.u32 %v762, 2147483648
  %v891 = vxor.u32 %v763, 2147483648
  %v892 = vxor.u32 %v764, 2147483648
  %v893 = vxor.u32 %v765, 2147483648
  %v894 = vxor.u32 %v766, 2147483648
  %v895 = vxor.u32 %v767, 2147483648
  %v896 = vxor.u32 %v768, 2147483648
  %v897 = vxor.u32 %v769, 2147483648
  %v898 = vxor.u32 %v770, 2147483648
  %v899 = vxor.u32 %v771, 2147483648
  %v900 = vxor.u32 %v772, 2147483648
  %v901 = vxor.u32 %v773, 2147483648
  %v902 = vxor.u32 %v774, 2147483648
  %v903 = vxor.u32 %v775, 2147483648
  %v904 = vxor.u32 %v776, 2147483648
  %v905 = vxor.u32 %v777, 2147483648
  %v906 = vxor.u32 %v778, 2147483648
  %v907 = vxor.u32 %v779, 2147483648
  %v908 = vxor.u32 %v780, 2147483648
  %v909 = vxor.u32 %v781, 2147483648
  %v910 = vxor.u32 %v782, 2147483648
  %v911 = vxor.u32 %v783, 2147483648
  %v912 = vxor.u32 %v784, 2147483648
  %v913 = vxor.u32 %v785, 2147483648
  %v914 = vxor.u32 %v786, 2147483648
  %v915 = vxor.u32 %v787, 2147483648
  %v916 = vxor.u32 %v788, 2147483648
  %v917 = vxor.u32 %v789, 2147483648
  %v918 = vxor.u32 %v790, 2147483648
  %v919 = vxor.u32 %v791, 2147483648
  %v920 = vxor.u32 %v792, 2147483648
  %v921 = vxor.u32 %v793, 2147483648
  %v922 = vxor.u32 %v794, 2147483648
  %v923 = vxor.u32 %v795, 2147483648
  %v924 = vxor.u32 %v796, 2147483648
  %v925 = vxor.u32 %v797, 2147483648
  %v926 = vmul.f32 %v798, 1.442695
  %v927 = vpow.pop %v926
  %v928 = vmul.f32 %v799, 1.442695
  %v929 = vpow.pop %v928
  %v930 = vmul.f32 %v800, 1.442695
  %v931 = vpow.pop %v930
  %v932 = vmul.f32 %v801, 1.442695
  %v933 = vpow.pop %v932
  %v934 = vmul.f32 %v802, 1.442695
  %v935 = vpow.pop %v934
  %v936 = vmul.f32 %v803, 1.442695
  %v937 = vpow.pop %v936
  %v938 = vmul.f32 %v804, 1.442695
  %v939 = vpow.pop %v938
  %v940 = vmul.f32 %v805, 1.442695
  %v941 = vpow.pop %v940
  %v942 = vmul.f32 %v806, 1.442695
  %v943 = vpow.pop %v942
  %v944 = vmul.f32 %v807, 1.442695
  %v945 = vpow.pop %v944
  %v946 = vmul.f32 %v808, 1.442695
  %v947 = vpow.pop %v946
  %v948 = vmul.f32 %v809, 1.442695
  %v949 = vpow.pop %v948
  %v950 = vmul.f32 %v810, 1.442695
  %v951 = vpow.pop %v950
  %v952 = vmul.f32 %v811, 1.442695
  %v953 = vpow.pop %v952
  %v954 = vmul.f32 %v812, 1.442695
  %v955 = vpow.pop %v954
  %v956 = vmul.f32 %v813, 1.442695
  %v957 = vpow.pop %v956
  %v958 = vmul.f32 %v814, 1.442695
  %v959 = vpow.pop %v958
  %v960 = vmul.f32 %v815, 1.442695
  %v961 = vpow.pop %v960
  %v962 = vmul.f32 %v816, 1.442695
  %v963 = vpow.pop %v962
  %v964 = vmul.f32 %v817, 1.442695
  %v965 = vpow.pop %v964
  %v966 = vmul.f32 %v818, 1.442695
  %v967 = vpow.pop %v966
  %v968 = vmul.f32 %v819, 1.442695
  %v969 = vpow.pop %v968
  %v970 = vmul.f32 %v820, 1.442695
  %v971 = vpow.pop %v970
  %v972 = vmul.f32 %v821, 1.442695
  %v973 = vpow.pop %v972
  %v974 = vmul.f32 %v822, 1.442695
  %v975 = vpow.pop %v974
  %v976 = vmul.f32 %v823, 1.442695
  %v977 = vpow.pop %v976
  %v978 = vmul.f32 %v824, 1.442695
  %v979 = vpow.pop %v978
  %v980 = vmul.f32 %v825, 1.442695
  %v981 = vpow.pop %v980
  %v982 = vmul.f32 %v826, 1.442695
  %v983 = vpow.pop %v982
  %v984 = vmul.f32 %v827, 1.442695
  %v985 = vpow.pop %v984
  %v986 = vmul.f32 %v828, 1.442695
  %v987 = vpow.pop %v986
  %v988 = vmul.f32 %v829, 1.442695
  %v989 = vpow.pop %v988
  %v990 = vmul.f32 %v830, 1.442695
  %v991 = vpow.pop %v990
  %v992 = vmul.f32 %v831, 1.442695
  %v993 = vpow.pop %v992
  %v994 = vmul.f32 %v832, 1.442695
  %v995 = vpow.pop %v994
  %v996 = vmul.f32 %v833, 1.442695
  %v997 = vpow.pop %v996
  %v998 = vmul.f32 %v834, 1.442695
  %v999 = vpow.pop %v998
  %v1000 = vmul.f32 %v835, 1.442695
  %v1001 = vpow.pop %v1000
  %v1002 = vmul.f32 %v836, 1.442695
  %v1003 = vpow.pop %v1002
  %v1004 = vmul.f32 %v837, 1.442695
  %v1005 = vpow.pop %v1004
  %v1006 = vmul.f32 %v838, 1.442695
  %v1007 = vpow.pop %v1006
  %v1008 = vmul.f32 %v839, 1.442695
  %v1009 = vpow.pop %v1008
  %v1010 = vmul.f32 %v840, 1.442695
  %v1011 = vpow.pop %v1010
  %v1012 = vmul.f32 %v841, 1.442695
  %v1013 = vpow.pop %v1012
  %v1014 = vmul.f32 %v842, 1.442695
  %v1015 = vpow.pop %v1014
  %v1016 = vmul.f32 %v843, 1.442695
  %v1017 = vpow.pop %v1016
  %v1018 = vmul.f32 %v844, 1.442695
  %v1019 = vpow.pop %v1018
  %v1020 = vmul.f32 %v845, 1.442695
  %v1021 = vpow.pop %v1020
  %v1022 = vmul.f32 %v846, 1.442695
  %v1023 = vpow.pop %v1022
  %v1024 = vmul.f32 %v847, 1.442695
  %v1025 = vpow.pop %v1024
  %v1026 = vmul.f32 %v848, 1.442695
  %v1027 = vpow.pop %v1026
  %v1028 = vmul.f32 %v849, 1.442695
  %v1029 = vpow.pop %v1028
  %v1030 = vmul.f32 %v850, 1.442695
  %v1031 = vpow.pop %v1030
  %v1032 = vmul.f32 %v851, 1.442695
  %v1033 = vpow.pop %v1032
  %v1034 = vmul.f32 %v852, 1.442695
  %v1035 = vpow.pop %v1034
  %v1036 = vmul.f32 %v853, 1.442695
  %v1037 = vpow.pop %v1036
  %v1038 = vmul.f32 %v854, 1.442695
  %v1039 = vpow.pop %v1038
  %v1040 = vmul.f32 %v855, 1.442695
  %v1041 = vpow.pop %v1040
  %v1042 = vmul.f32 %v856, 1.442695
  %v1043 = vpow.pop %v1042
  %v1044 = vmul.f32 %v857, 1.442695
  %v1045 = vpow.pop %v1044
  %v1046 = vmul.f32 %v858, 1.442695
  %v1047 = vpow.pop %v1046
  %v1048 = vmul.f32 %v859, 1.442695
  %v1049 = vpow.pop %v1048
  %v1050 = vmul.f32 %v860, 1.442695
  %v1051 = vpow.pop %v1050
  %v1052 = vmul.f32 %v861, 1.442695
  %v1053 = vpow.pop %v1052
  %v1054 = vmul.f32 %v862, 1.442695
  %v1055 = vpow.pop %v1054
  %v1056 = vmul.f32 %v863, 1.442695
  %v1057 = vpow.pop %v1056
  %v1058 = vmul.f32 %v864, 1.442695
  %v1059 = vpow.pop %v1058
  %v1060 = vmul.f32 %v865, 1.442695
  %v1061 = vpow.pop %v1060
  %v1062 = vmul.f32 %v866, 1.442695
  %v1063 = vpow.pop %v1062
  %v1064 = vmul.f32 %v867, 1.442695
  %v1065 = vpow.pop %v1064
  %v1066 = vmul.f32 %v868, 1.442695
  %v1067 = vpow.pop %v1066
  %v1068 = vmul.f32 %v869, 1.442695
  %v1069 = vpow.pop %v1068
  %v1070 = vmul.f32 %v870, 1.442695
  %v1071 = vpow.pop %v1070
  %v1072 = vmul.f32 %v871, 1.442695
  %v1073 = vpow.pop %v1072
  %v1074 = vmul.f32 %v872, 1.442695
  %v1075 = vpow.pop %v1074
  %v1076 = vmul.f32 %v873, 1.442695
  %v1077 = vpow.pop %v1076
  %v1078 = vmul.f32 %v874, 1.442695
  %v1079 = vpow.pop %v1078
  %v1080 = vmul.f32 %v875, 1.442695
  %v1081 = vpow.pop %v1080
  %v1082 = vmul.f32 %v876, 1.442695
  %v1083 = vpow.pop %v1082
  %v1084 = vmul.f32 %v877, 1.442695
  %v1085 = vpow.pop %v1084
  %v1086 = vmul.f32 %v878, 1.442695
  %v1087 = vpow.pop %v1086
  %v1088 = vmul.f32 %v879, 1.442695
  %v1089 = vpow.pop %v1088
  %v1090 = vmul.f32 %v880, 1.442695
  %v1091 = vpow.pop %v1090
  %v1092 = vmul.f32 %v881, 1.442695
  %v1093 = vpow.pop %v1092
  %v1094 = vmul.f32 %v882, 1.442695
  %v1095 = vpow.pop %v1094
  %v1096 = vmul.f32 %v883, 1.442695
  %v1097 = vpow.pop %v1096
  %v1098 = vmul.f32 %v884, 1.442695
  %v1099 = vpow.pop %v1098
  %v1100 = vmul.f32 %v885, 1.442695
  %v1101 = vpow.pop %v1100
  %v1102 = vmul.f32 %v886, 1.442695
  %v1103 = vpow.pop %v1102
  %v1104 = vmul.f32 %v887, 1.442695
  %v1105 = vpow.pop %v1104
  %v1106 = vmul.f32 %v888, 1.442695
  %v1107 = vpow.pop %v1106
  %v1108 = vmul.f32 %v889, 1.442695
  %v1109 = vpow.pop %v1108
  %v1110 = vmul.f32 %v890, 1.442695
  %v1111 = vpow.pop %v1110
  %v1112 = vmul.f32 %v891, 1.442695
  %v1113 = vpow.pop %v1112
  %v1114 = vmul.f32 %v892, 1.442695
  %v1115 = vpow.pop %v1114
  %v1116 = vmul.f32 %v893, 1.442695
  %v1117 = vpow.pop %v1116
  %v1118 = vmul.f32 %v894, 1.442695
  %v1119 = vpow.pop %v1118
  %v1120 = vmul.f32 %v895, 1.442695
  %v1121 = vpow.pop %v1120
  %v1122 = vmul.f32 %v896, 1.442695
  %v1123 = vpow.pop %v1122
  %v1124 = vmul.f32 %v897, 1.442695
  %v1125 = vpow.pop %v1124
  %v1126 = vmul.f32 %v898, 1.442695
  %v1127 = vpow.pop %v1126
  %v1128 = vmul.f32 %v899, 1.442695
  %v1129 = vpow.pop %v1128
  %v1130 = vmul.f32 %v900, 1.442695
  %v1131 = vpow.pop %v1130
  %v1132 = vmul.f32 %v901, 1.442695
  %v1133 = vpow.pop %v1132
  %v1134 = vmul.f32 %v902, 1.442695
  %v1135 = vpow.pop %v1134
  %v1136 = vmul.f32 %v903, 1.442695
  %v1137 = vpow.pop %v1136
  %v1138 = vmul.f32 %v904, 1.442695
  %v1139 = vpow.pop %v1138
  %v1140 = vmul.f32 %v905, 1.442695
  %v1141 = vpow.pop %v1140
  %v1142 = vmul.f32 %v906, 1.442695
  %v1143 = vpow.pop %v1142
  %v1144 = vmul.f32 %v907, 1.442695
  %v1145 = vpow.pop %v1144
  %v1146 = vmul.f32 %v908, 1.442695
  %v1147 = vpow.pop %v1146
  %v1148 = vmul.f32 %v909, 1.442695
  %v1149 = vpow.pop %v1148
  %v1150 = vmul.f32 %v910, 1.442695
  %v1151 = vpow.pop %v1150
  %v1152 = vmul.f32 %v911, 1.442695
  %v1153 = vpow.pop %v1152
  %v1154 = vmul.f32 %v912, 1.442695
  %v1155 = vpow.pop %v1154
  %v1156 = vmul.f32 %v913, 1.442695
  %v1157 = vpow.pop %v1156
  %v1158 = vmul.f32 %v914, 1.442695
  %v1159 = vpow.pop %v1158
  %v1160 = vmul.f32 %v915, 1.442695
  %v1161 = vpow.pop %v1160
  %v1162 = vmul.f32 %v916, 1.442695
  %v1163 = vpow.pop %v1162
  %v1164 = vmul.f32 %v917, 1.442695
  %v1165 = vpow.pop %v1164
  %v1166 = vmul.f32 %v918, 1.442695
  %v1167 = vpow.pop %v1166
  %v1168 = vmul.f32 %v919, 1.442695
  %v1169 = vpow.pop %v1168
  %v1170 = vmul.f32 %v920, 1.442695
  %v1171 = vpow.pop %v1170
  %v1172 = vmul.f32 %v921, 1.442695
  %v1173 = vpow.pop %v1172
  %v1174 = vmul.f32 %v922, 1.442695
  %v1175 = vpow.pop %v1174
  %v1176 = vmul.f32 %v923, 1.442695
  %v1177 = vpow.pop %v1176
  %v1178 = vmul.f32 %v924, 1.442695
  %v1179 = vpow.pop %v1178
  %v1180 = vmul.f32 %v925, 1.442695
  %v1181 = vpow.pop %v1180
  %v1182 = vadd.f32 %v927, 1.0
  %v1183 = vadd.f32 %v929, 1.0
  %v1184 = vadd.f32 %v931, 1.0
  %v1185 = vadd.f32 %v933, 1.0
  %v1186 = vadd.f32 %v935, 1.0
  %v1187 = vadd.f32 %v937, 1.0
  %v1188 = vadd.f32 %v939, 1.0
  %v1189 = vadd.f32 %v941, 1.0
  %v1190 = vadd.f32 %v943, 1.0
  %v1191 = vadd.f32 %v945, 1.0
  %v1192 = vadd.f32 %v947, 1.0
  %v1193 = vadd.f32 %v949, 1.0
  %v1194 = vadd.f32 %v951, 1.0
  %v1195 = vadd.f32 %v953, 1.0
  %v1196 = vadd.f32 %v955, 1.0
  %v1197 = vadd.f32 %v957, 1.0
  %v1198 = vadd.f32 %v959, 1.0
  %v1199 = vadd.f32 %v961, 1.0
  %v1200 = vadd.f32 %v963, 1.0
  %v1201 = vadd.f32 %v965, 1.0
  %v1202 = vadd.f32 %v967, 1.0
  %v1203 = vadd.f32 %v969, 1.0
  %v1204 = vadd.f32 %v971, 1.0
  %v1205 = vadd.f32 %v973, 1.0
  %v1206 = vadd.f32 %v975, 1.0
  %v1207 = vadd.f32 %v977, 1.0
  %v1208 = vadd.f32 %v979, 1.0
  %v1209 = vadd.f32 %v981, 1.0
  %v1210 = vadd.f32 %v983, 1.0
  %v1211 = vadd.f32 %v985, 1.0
  %v1212 = vadd.f32 %v987, 1.0
  %v1213 = vadd.f32 %v989, 1.0
  %v1214 = vadd.f32 %v991, 1.0
  %v1215 = vadd.f32 %v993, 1.0
  %v1216 = vadd.f32 %v995, 1.0
  %v1217 = vadd.f32 %v997, 1.0
  %v1218 = vadd.f32 %v999, 1.0
  %v1219 = vadd.f32 %v1001, 1.0
  %v1220 = vadd.f32 %v1003, 1.0
  %v1221 = vadd.f32 %v1005, 1.0
  %v1222 = vadd.f32 %v1007, 1.0
  %v1223 = vadd.f32 %v1009, 1.0
  %v1224 = vadd.f32 %v1011, 1.0
  %v1225 = vadd.f32 %v1013, 1.0
  %v1226 = vadd.f32 %v1015, 1.0
  %v1227 = vadd.f32 %v1017, 1.0
  %v1228 = vadd.f32 %v1019, 1.0
  %v1229 = vadd.f32 %v1021, 1.0
  %v1230 = vadd.f32 %v1023, 1.0
  %v1231 = vadd.f32 %v1025, 1.0
  %v1232 = vadd.f32 %v1027, 1.0
  %v1233 = vadd.f32 %v1029, 1.0
  %v1234 = vadd.f32 %v1031, 1.0
  %v1235 = vadd.f32 %v1033, 1.0
  %v1236 = vadd.f32 %v1035, 1.0
  %v1237 = vadd.f32 %v1037, 1.0
  %v1238 = vadd.f32 %v1039, 1.0
  %v1239 = vadd.f32 %v1041, 1.0
  %v1240 = vadd.f32 %v1043, 1.0
  %v1241 = vadd.f32 %v1045, 1.0
  %v1242 = vadd.f32 %v1047, 1.0
  %v1243 = vadd.f32 %v1049, 1.0
  %v1244 = vadd.f32 %v1051, 1.0
  %v1245 = vadd.f32 %v1053, 1.0
  %v1246 = vadd.f32 %v1055, 1.0
  %v1247 = vadd.f32 %v1057, 1.0
  %v1248 = vadd.f32 %v1059, 1.0
  %v1249 = vadd.f32 %v1061, 1.0
  %v1250 = vadd.f32 %v1063, 1.0
  %v1251 = vadd.f32 %v1065, 1.0
  %v1252 = vadd.f32 %v1067, 1.0
  %v1253 = vadd.f32 %v1069, 1.0
  %v1254 = vadd.f32 %v1071, 1.0
  %v1255 = vadd.f32 %v1073, 1.0
  %v1256 = vadd.f32 %v1075, 1.0
  %v1257 = vadd.f32 %v1077, 1.0
  %v1258 = vadd.f32 %v1079, 1.0
  %v1259 = vadd.f32 %v1081, 1.0
  %v1260 = vadd.f32 %v1083, 1.0
  %v1261 = vadd.f32 %v1085, 1.0
  %v1262 = vadd.f32 %v1087, 1.0
  %v1263 = vadd.f32 %v1089, 1.0
  %v1264 = vadd.f32 %v1091, 1.0
  %v1265 = vadd.f32 %v1093, 1.0
  %v1266 = vadd.f32 %v1095, 1.0
  %v1267 = vadd.f32 %v1097, 1.0
  %v1268 = vadd.f32 %v1099, 1.0
  %v1269 = vadd.f32 %v1101, 1.0
  %v1270 = vadd.f32 %v1103, 1.0
  %v1271 = vadd.f32 %v1105, 1.0
  %v1272 = vadd.f32 %v1107, 1.0
  %v1273 = vadd.f32 %v1109, 1.0
  %v1274 = vadd.f32 %v1111, 1.0
  %v1275 = vadd.f32 %v1113, 1.0
  %v1276 = vadd.f32 %v1115, 1.0
  %v1277 = vadd.f32 %v1117, 1.0
  %v1278 = vadd.f32 %v1119, 1.0
  %v1279 = vadd.f32 %v1121, 1.0
  %v1280 = vadd.f32 %v1123, 1.0
  %v1281 = vadd.f32 %v1125, 1.0
  %v1282 = vadd.f32 %v1127, 1.0
  %v1283 = vadd.f32 %v1129, 1.0
  %v1284 = vadd.f32 %v1131, 1.0
  %v1285 = vadd.f32 %v1133, 1.0
  %v1286 = vadd.f32 %v1135, 1.0
  %v1287 = vadd.f32 %v1137, 1.0
  %v1288 = vadd.f32 %v1139, 1.0
  %v1289 = vadd.f32 %v1141, 1.0
  %v1290 = vadd.f32 %v1143, 1.0
  %v1291 = vadd.f32 %v1145, 1.0
  %v1292 = vadd.f32 %v1147, 1.0
  %v1293 = vadd.f32 %v1149, 1.0
  %v1294 = vadd.f32 %v1151, 1.0
  %v1295 = vadd.f32 %v1153, 1.0
  %v1296 = vadd.f32 %v1155, 1.0
  %v1297 = vadd.f32 %v1157, 1.0
  %v1298 = vadd.f32 %v1159, 1.0
  %v1299 = vadd.f32 %v1161, 1.0
  %v1300 = vadd.f32 %v1163, 1.0
  %v1301 = vadd.f32 %v1165, 1.0
  %v1302 = vadd.f32 %v1167, 1.0
  %v1303 = vadd.f32 %v1169, 1.0
  %v1304 = vadd.f32 %v1171, 1.0
  %v1305 = vadd.f32 %v1173, 1.0
  %v1306 = vadd.f32 %v1175, 1.0
  %v1307 = vadd.f32 %v1177, 1.0
  %v1308 = vadd.f32 %v1179, 1.0
  %v1309 = vadd.f32 %v1181, 1.0
  %v1310 = vrcp.pop %v1182
  %v1311 = vmul.f32 1.0, %v1310
  %v1312 = vrcp.pop %v1183
  %v1313 = vmul.f32 1.0, %v1312
  %v1314 = vrcp.pop %v1184
  %v1315 = vmul.f32 1.0, %v1314
  %v1316 = vrcp.pop %v1185
  %v1317 = vmul.f32 1.0, %v1316
  %v1318 = vrcp.pop %v1186
  %v1319 = vmul.f32 1.0, %v1318
  %v1320 = vrcp.pop %v1187
  %v1321 = vmul.f32 1.0, %v1320
  %v1322 = vrcp.pop %v1188
  %v1323 = vmul.f32 1.0, %v1322
  %v1324 = vrcp.pop %v1189
  %v1325 = vmul.f32 1.0, %v1324
  %v1326 = vrcp.pop %v1190
  %v1327 = vmul.f32 1.0, %v1326
  %v1328 = vrcp.pop %v1191
  %v1329 = vmul.f32 1.0, %v1328
  %v1330 = vrcp.pop %v1192
  %v1331 = vmul.f32 1.0, %v1330
  %v1332 = vrcp.pop %v1193
  %v1333 = vmul.f32 1.0, %v1332
  %v1334 = vrcp.pop %v1194
  %v1335 = vmul.f32 1.0, %v1334
  %v1336 = vrcp.pop %v1195
  %v1337 = vmul.f32 1.0, %v1336
  %v1338 = vrcp.pop %v1196
  %v1339 = vmul.f32 1.0, %v1338
  %v1340 = vrcp.pop %v1197
  %v1341 = vmul.f32 1.0, %v1340
  %v1342 = vrcp.pop %v1198
  %v1343 = vmul.f32 1.0, %v1342
  %v1344 = vrcp.pop %v1199
  %v1345 = vmul.f32 1.0, %v1344
  %v1346 = vrcp.pop %v1200
  %v1347 = vmul.f32 1.0, %v1346
  %v1348 = vrcp.pop %v1201
  %v1349 = vmul.f32 1.0, %v1348
  %v1350 = vrcp.pop %v1202
  %v1351 = vmul.f32 1.0, %v1350
  %v1352 = vrcp.pop %v1203
  %v1353 = vmul.f32 1.0, %v1352
  %v1354 = vrcp.pop %v1204
  %v1355 = vmul.f32 1.0, %v1354
  %v1356 = vrcp.pop %v1205
  %v1357 = vmul.f32 1.0, %v1356
  %v1358 = vrcp.pop %v1206
  %v1359 = vmul.f32 1.0, %v1358
  %v1360 = vrcp.pop %v1207
  %v1361 = vmul.f32 1.0, %v1360
  %v1362 = vrcp.pop %v1208
  %v1363 = vmul.f32 1.0, %v1362
  %v1364 = vrcp.pop %v1209
  %v1365 = vmul.f32 1.0, %v1364
  %v1366 = vrcp.pop %v1210
  %v1367 = vmul.f32 1.0, %v1366
  %v1368 = vrcp.pop %v1211
  %v1369 = vmul.f32 1.0, %v1368
  %v1370 = vrcp.pop %v1212
  %v1371 = vmul.f32 1.0, %v1370
  %v1372 = vrcp.pop %v1213
  %v1373 = vmul.f32 1.0, %v1372
  %v1374 = vrcp.pop %v1214
  %v1375 = vmul.f32 1.0, %v1374
  %v1376 = vrcp.pop %v1215
  %v1377 = vmul.f32 1.0, %v1376
  %v1378 = vrcp.pop %v1216
  %v1379 = vmul.f32 1.0, %v1378
  %v1380 = vrcp.pop %v1217
  %v1381 = vmul.f32 1.0, %v1380
  %v1382 = vrcp.pop %v1218
  %v1383 = vmul.f32 1.0, %v1382
  %v1384 = vrcp.pop %v1219
  %v1385 = vmul.f32 1.0, %v1384
  %v1386 = vrcp.pop %v1220
  %v1387 = vmul.f32 1.0, %v1386
  %v1388 = vrcp.pop %v1221
  %v1389 = vmul.f32 1.0, %v1388
  %v1390 = vrcp.pop %v1222
  %v1391 = vmul.f32 1.0, %v1390
  %v1392 = vrcp.pop %v1223
  %v1393 = vmul.f32 1.0, %v1392
  %v1394 = vrcp.pop %v1224
  %v1395 = vmul.f32 1.0, %v1394
  %v1396 = vrcp.pop %v1225
  %v1397 = vmul.f32 1.0, %v1396
  %v1398 = vrcp.pop %v1226
  %v1399 = vmul.f32 1.0, %v1398
  %v1400 = vrcp.pop %v1227
  %v1401 = vmul.f32 1.0, %v1400
  %v1402 = vrcp.pop %v1228
  %v1403 = vmul.f32 1.0, %v1402
  %v1404 = vrcp.pop %v1229
  %v1405 = vmul.f32 1.0, %v1404
  %v1406 = vrcp.pop %v1230
  %v1407 = vmul.f32 1.0, %v1406
  %v1408 = vrcp.pop %v1231
  %v1409 = vmul.f32 1.0, %v1408
  %v1410 = vrcp.pop %v1232
  %v1411 = vmul.f32 1.0, %v1410
  %v1412 = vrcp.pop %v1233
  %v1413 = vmul.f32 1.0, %v1412
  %v1414 = vrcp.pop %v1234
  %v1415 = vmul.f32 1.0, %v1414
  %v1416 = vrcp.pop %v1235
  %v1417 = vmul.f32 1.0, %v1416
  %v1418 = vrcp.pop %v1236
  %v1419 = vmul.f32 1.0, %v1418
  %v1420 = vrcp.pop %v1237
  %v1421 = vmul.f32 1.0, %v1420
  %v1422 = vrcp.pop %v1238
  %v1423 = vmul.f32 1.0, %v1422
  %v1424 = vrcp.pop %v1239
  %v1425 = vmul.f32 1.0, %v1424
  %v1426 = vrcp.pop %v1240
  %v1427 = vmul.f32 1.0, %v1426
  %v1428 = vrcp.pop %v1241
  %v1429 = vmul.f32 1.0, %v1428
  %v1430 = vrcp.pop %v1242
  %v1431 = vmul.f32 1.0, %v1430
  %v1432 = vrcp.pop %v1243
  %v1433 = vmul.f32 1.0, %v1432
  %v1434 = vrcp.pop %v1244
  %v1435 = vmul.f32 1.0, %v1434
  %v1436 = vrcp.pop %v1245
  %v1437 = vmul.f32 1.0, %v1436
  %v1438 = vrcp.pop %v1246
  %v1439 = vmul.f32 1.0, %v1438
  %v1440 = vrcp.pop %v1247
  %v1441 = vmul.f32 1.0, %v1440
  %v1442 = vrcp.pop %v1248
  %v1443 = vmul.f32 1.0, %v1442
  %v1444 = vrcp.pop %v1249
  %v1445 = vmul.f32 1.0, %v1444
  %v1446 = vrcp.pop %v1250
  %v1447 = vmul.f32 1.0, %v1446
  %v1448 = vrcp.pop %v1251
  %v1449 = vmul.f32 1.0, %v1448
  %v1450 = vrcp.pop %v1252
  %v1451 = vmul.f32 1.0, %v1450
  %v1452 = vrcp.pop %v1253
  %v1453 = vmul.f32 1.0, %v1452
  %v1454 = vrcp.pop %v1254
  %v1455 = vmul.f32 1.0, %v1454
  %v1456 = vrcp.pop %v1255
  %v1457 = vmul.f32 1.0, %v1456
  %v1458 = vrcp.pop %v1256
  %v1459 = vmul.f32 1.0, %v1458
  %v1460 = vrcp.pop %v1257
  %v1461 = vmul.f32 1.0, %v1460
  %v1462 = vrcp.pop %v1258
  %v1463 = vmul.f32 1.0, %v1462
  %v1464 = vrcp.pop %v1259
  %v1465 = vmul.f32 1.0, %v1464
  %v1466 = vrcp.pop %v1260
  %v1467 = vmul.f32 1.0, %v1466
  %v1468 = vrcp.pop %v1261
  %v1469 = vmul.f32 1.0, %v1468
  %v1470 = vrcp.pop %v1262
  %v1471 = vmul.f32 1.0, %v1470
  %v1472 = vrcp.pop %v1263
  %v1473 = vmul.f32 1.0, %v1472
  %v1474 = vrcp.pop %v1264
  %v1475 = vmul.f32 1.0, %v1474
  %v1476 = vrcp.pop %v1265
  %v1477 = vmul.f32 1.0, %v1476
  %v1478 = vrcp.pop %v1266
  %v1479 = vmul.f32 1.0, %v1478
  %v1480 = vrcp.pop %v1267
  %v1481 = vmul.f32 1.0, %v1480
  %v1482 = vrcp.pop %v1268
  %v1483 = vmul.f32 1.0, %v1482
  %v1484 = vrcp.pop %v1269
  %v1485 = vmul.f32 1.0, %v1484
  %v1486 = vrcp.pop %v1270
  %v1487 = vmul.f32 1.0, %v1486
  %v1488 = vrcp.pop %v1271
  %v1489 = vmul.f32 1.0, %v1488
  %v1490 = vrcp.pop %v1272
  %v1491 = vmul.f32 1.0, %v1490
  %v1492 = vrcp.pop %v1273
  %v1493 = vmul.f32 1.0, %v1492
  %v1494 = vrcp.pop %v1274
  %v1495 = vmul.f32 1.0, %v1494
  %v1496 = vrcp.pop %v1275
  %v1497 = vmul.f32 1.0, %v1496
  %v1498 = vrcp.pop %v1276
  %v1499 = vmul.f32 1.0, %v1498
  %v1500 = vrcp.pop %v1277
  %v1501 = vmul.f32 1.0, %v1500
  %v1502 = vrcp.pop %v1278
  %v1503 = vmul.f32 1.0, %v1502
  %v1504 = vrcp.pop %v1279
  %v1505 = vmul.f32 1.0, %v1504
  %v1506 = vrcp.pop %v1280
  %v1507 = vmul.f32 1.0, %v1506
  %v1508 = vrcp.pop %v1281
  %v1509 = vmul.f32 1.0, %v1508
  %v1510 = vrcp.pop %v1282
  %v1511 = vmul.f32 1.0, %v1510
  %v1512 = vrcp.pop %v1283
  %v1513 = vmul.f32 1.0, %v1512
  %v1514 = vrcp.pop %v1284
  %v1515 = vmul.f32 1.0, %v1514
  %v1516 = vrcp.pop %v1285
  %v1517 = vmul.f32 1.0, %v1516
  %v1518 = vrcp.pop %v1286
  %v1519 = vmul.f32 1.0, %v1518
  %v1520 = vrcp.pop %v1287
  %v1521 = vmul.f32 1.0, %v1520
  %v1522 = vrcp.pop %v1288
  %v1523 = vmul.f32 1.0, %v1522
  %v1524 = vrcp.pop %v1289
  %v1525 = vmul.f32 1.0, %v1524
  %v1526 = vrcp.pop %v1290
  %v1527 = vmul.f32 1.0, %v1526
  %v1528 = vrcp.pop %v1291
  %v1529 = vmul.f32 1.0, %v1528
  %v1530 = vrcp.pop %v1292
  %v1531 = vmul.f32 1.0, %v1530
  %v1532 = vrcp.pop %v1293
  %v1533 = vmul.f32 1.0, %v1532
  %v1534 = vrcp.pop %v1294
  %v1535 = vmul.f32 1.0, %v1534
  %v1536 = vrcp.pop %v1295
  %v1537 = vmul.f32 1.0, %v1536
  %v1538 = vrcp.pop %v1296
  %v1539 = vmul.f32 1.0, %v1538
  %v1540 = vrcp.pop %v1297
  %v1541 = vmul.f32 1.0, %v1540
  %v1542 = vrcp.pop %v1298
  %v1543 = vmul.f32 1.0, %v1542
  %v1544 = vrcp.pop %v1299
  %v1545 = vmul.f32 1.0, %v1544
  %v1546 = vrcp.pop %v1300
  %v1547 = vmul.f32 1.0, %v1546
  %v1548 = vrcp.pop %v1301
  %v1549 = vmul.f32 1.0, %v1548
  %v1550 = vrcp.pop %v1302
  %v1551 = vmul.f32 1.0, %v1550
  %v1552 = vrcp.pop %v1303
  %v1553 = vmul.f32 1.0, %v1552
  %v1554 = vrcp.pop %v1304
  %v1555 = vmul.f32 1.0, %v1554
  %v1556 = vrcp.pop %v1305
  %v1557 = vmul.f32 1.0, %v1556
  %v1558 = vrcp.pop %v1306
  %v1559 = vmul.f32 1.0, %v1558
  %v1560 = vrcp.pop %v1307
  %v1561 = vmul.f32 1.0, %v1560
  %v1562 = vrcp.pop %v1308
  %v1563 = vmul.f32 1.0, %v1562
  %v1564 = vrcp.pop %v1309
  %v1565 = vmul.f32 1.0, %v1564
  %v1566 = vld [vmem:[%s3] sm:$0xff]
  %s1567 = scalar_lea.vmem %s3, 8
  %v1568 = vld [vmem:[%s1567] sm:$0xff]
  %s1569 = scalar_lea.vmem %s3, 16
  %v1570 = vld [vmem:[%s1569] sm:$0xff]
  %s1571 = scalar_lea.vmem %s3, 24
  %v1572 = vld [vmem:[%s1571] sm:$0xff]
  %v1574 = vlaneseq
  %v1575 = vshrl.u32 %v1574, 7
  %v1576 = vsub.s32 0, %v1575
  %v1577 = vrot.slane %v1568, %v1576
  %1579 = vbcast.lane.b32.xlu0 %v1577, 256
  %v1580 = vpop.permute.xlu0 %1579
  %s1582 = sor.u32 256, 8
  %1583 = vbcast.lane.b32.xlu0 %v1577, %s1582
  %v1584 = vpop.permute.xlu0 %1583
  %s1586 = sor.u32 256, 16
  %1587 = vbcast.lane.b32.xlu0 %v1577, %s1586
  %v1588 = vpop.permute.xlu0 %1587
  %s1590 = sor.u32 256, 24
  %1591 = vbcast.lane.b32.xlu0 %v1577, %s1590
  %v1592 = vpop.permute.xlu0 %1591
  %s1594 = sor.u32 256, 32
  %1595 = vbcast.lane.b32.xlu0 %v1577, %s1594
  %v1596 = vpop.permute.xlu0 %1595
  %s1598 = sor.u32 256, 40
  %1599 = vbcast.lane.b32.xlu0 %v1577, %s1598
  %v1600 = vpop.permute.xlu0 %1599
  %s1602 = sor.u32 256, 48
  %1603 = vbcast.lane.b32.xlu0 %v1577, %s1602
  %v1604 = vpop.permute.xlu0 %1603
  %s1606 = sor.u32 256, 56
  %1607 = vbcast.lane.b32.xlu0 %v1577, %s1606
  %v1608 = vpop.permute.xlu0 %1607
  %s1610 = sor.u32 256, 64
  %1611 = vbcast.lane.b32.xlu0 %v1577, %s1610
  %v1612 = vpop.permute.xlu0 %1611
  %s1614 = sor.u32 256, 72
  %1615 = vbcast.lane.b32.xlu0 %v1577, %s1614
  %v1616 = vpop.permute.xlu0 %1615
  %s1618 = sor.u32 256, 80
  %1619 = vbcast.lane.b32.xlu0 %v1577, %s1618
  %v1620 = vpop.permute.xlu0 %1619
  %s1622 = sor.u32 256, 88
  %1623 = vbcast.lane.b32.xlu0 %v1577, %s1622
  %v1624 = vpop.permute.xlu0 %1623
  %s1626 = sor.u32 256, 96
  %1627 = vbcast.lane.b32.xlu0 %v1577, %s1626
  %v1628 = vpop.permute.xlu0 %1627
  %s1630 = sor.u32 256, 104
  %1631 = vbcast.lane.b32.xlu0 %v1577, %s1630
  %v1632 = vpop.permute.xlu0 %1631
  %s1634 = sor.u32 256, 112
  %1635 = vbcast.lane.b32.xlu0 %v1577, %s1634
  %v1636 = vpop.permute.xlu0 %1635
  %s1638 = sor.u32 256, 120
  %1639 = vbcast.lane.b32.xlu0 %v1577, %s1638
  %v1640 = vpop.permute.xlu0 %1639
  %v1641 = vlaneseq
  %v1642 = vshrl.u32 %v1641, 7
  %v1643 = vsub.s32 1, %v1642
  %v1644 = vrot.slane %v1568, %v1643
  %1646 = vbcast.lane.b32.xlu0 %v1644, 256
  %v1647 = vpop.permute.xlu0 %1646
  %s1649 = sor.u32 256, 8
  %1650 = vbcast.lane.b32.xlu0 %v1644, %s1649
  %v1651 = vpop.permute.xlu0 %1650
  %s1653 = sor.u32 256, 16
  %1654 = vbcast.lane.b32.xlu0 %v1644, %s1653
  %v1655 = vpop.permute.xlu0 %1654
  %s1657 = sor.u32 256, 24
  %1658 = vbcast.lane.b32.xlu0 %v1644, %s1657
  %v1659 = vpop.permute.xlu0 %1658
  %s1661 = sor.u32 256, 32
  %1662 = vbcast.lane.b32.xlu0 %v1644, %s1661
  %v1663 = vpop.permute.xlu0 %1662
  %s1665 = sor.u32 256, 40
  %1666 = vbcast.lane.b32.xlu0 %v1644, %s1665
  %v1667 = vpop.permute.xlu0 %1666
  %s1669 = sor.u32 256, 48
  %1670 = vbcast.lane.b32.xlu0 %v1644, %s1669
  %v1671 = vpop.permute.xlu0 %1670
  %s1673 = sor.u32 256, 56
  %1674 = vbcast.lane.b32.xlu0 %v1644, %s1673
  %v1675 = vpop.permute.xlu0 %1674
  %s1677 = sor.u32 256, 64
  %1678 = vbcast.lane.b32.xlu0 %v1644, %s1677
  %v1679 = vpop.permute.xlu0 %1678
  %s1681 = sor.u32 256, 72
  %1682 = vbcast.lane.b32.xlu0 %v1644, %s1681
  %v1683 = vpop.permute.xlu0 %1682
  %s1685 = sor.u32 256, 80
  %1686 = vbcast.lane.b32.xlu0 %v1644, %s1685
  %v1687 = vpop.permute.xlu0 %1686
  %s1689 = sor.u32 256, 88
  %1690 = vbcast.lane.b32.xlu0 %v1644, %s1689
  %v1691 = vpop.permute.xlu0 %1690
  %s1693 = sor.u32 256, 96
  %1694 = vbcast.lane.b32.xlu0 %v1644, %s1693
  %v1695 = vpop.permute.xlu0 %1694
  %s1697 = sor.u32 256, 104
  %1698 = vbcast.lane.b32.xlu0 %v1644, %s1697
  %v1699 = vpop.permute.xlu0 %1698
  %s1701 = sor.u32 256, 112
  %1702 = vbcast.lane.b32.xlu0 %v1644, %s1701
  %v1703 = vpop.permute.xlu0 %1702
  %s1705 = sor.u32 256, 120
  %1706 = vbcast.lane.b32.xlu0 %v1644, %s1705
  %v1707 = vpop.permute.xlu0 %1706
  %v1708 = vlaneseq
  %v1709 = vshrl.u32 %v1708, 7
  %v1710 = vsub.s32 2, %v1709
  %v1711 = vrot.slane %v1568, %v1710
  %1713 = vbcast.lane.b32.xlu0 %v1711, 256
  %v1714 = vpop.permute.xlu0 %1713
  %s1716 = sor.u32 256, 8
  %1717 = vbcast.lane.b32.xlu0 %v1711, %s1716
  %v1718 = vpop.permute.xlu0 %1717
  %s1720 = sor.u32 256, 16
  %1721 = vbcast.lane.b32.xlu0 %v1711, %s1720
  %v1722 = vpop.permute.xlu0 %1721
  %s1724 = sor.u32 256, 24
  %1725 = vbcast.lane.b32.xlu0 %v1711, %s1724
  %v1726 = vpop.permute.xlu0 %1725
  %s1728 = sor.u32 256, 32
  %1729 = vbcast.lane.b32.xlu0 %v1711, %s1728
  %v1730 = vpop.permute.xlu0 %1729
  %s1732 = sor.u32 256, 40
  %1733 = vbcast.lane.b32.xlu0 %v1711, %s1732
  %v1734 = vpop.permute.xlu0 %1733
  %s1736 = sor.u32 256, 48
  %1737 = vbcast.lane.b32.xlu0 %v1711, %s1736
  %v1738 = vpop.permute.xlu0 %1737
  %s1740 = sor.u32 256, 56
  %1741 = vbcast.lane.b32.xlu0 %v1711, %s1740
  %v1742 = vpop.permute.xlu0 %1741
  %s1744 = sor.u32 256, 64
  %1745 = vbcast.lane.b32.xlu0 %v1711, %s1744
  %v1746 = vpop.permute.xlu0 %1745
  %s1748 = sor.u32 256, 72
  %1749 = vbcast.lane.b32.xlu0 %v1711, %s1748
  %v1750 = vpop.permute.xlu0 %1749
  %s1752 = sor.u32 256, 80
  %1753 = vbcast.lane.b32.xlu0 %v1711, %s1752
  %v1754 = vpop.permute.xlu0 %1753
  %s1756 = sor.u32 256, 88
  %1757 = vbcast.lane.b32.xlu0 %v1711, %s1756
  %v1758 = vpop.permute.xlu0 %1757
  %s1760 = sor.u32 256, 96
  %1761 = vbcast.lane.b32.xlu0 %v1711, %s1760
  %v1762 = vpop.permute.xlu0 %1761
  %s1764 = sor.u32 256, 104
  %1765 = vbcast.lane.b32.xlu0 %v1711, %s1764
  %v1766 = vpop.permute.xlu0 %1765
  %s1768 = sor.u32 256, 112
  %1769 = vbcast.lane.b32.xlu0 %v1711, %s1768
  %v1770 = vpop.permute.xlu0 %1769
  %s1772 = sor.u32 256, 120
  %1773 = vbcast.lane.b32.xlu0 %v1711, %s1772
  %v1774 = vpop.permute.xlu0 %1773
  %v1775 = vlaneseq
  %v1776 = vshrl.u32 %v1775, 7
  %v1777 = vsub.s32 3, %v1776
  %v1778 = vrot.slane %v1568, %v1777
  %1780 = vbcast.lane.b32.xlu0 %v1778, 256
  %v1781 = vpop.permute.xlu0 %1780
  %s1783 = sor.u32 256, 8
  %1784 = vbcast.lane.b32.xlu0 %v1778, %s1783
  %v1785 = vpop.permute.xlu0 %1784
  %s1787 = sor.u32 256, 16
  %1788 = vbcast.lane.b32.xlu0 %v1778, %s1787
  %v1789 = vpop.permute.xlu0 %1788
  %s1791 = sor.u32 256, 24
  %1792 = vbcast.lane.b32.xlu0 %v1778, %s1791
  %v1793 = vpop.permute.xlu0 %1792
  %s1795 = sor.u32 256, 32
  %1796 = vbcast.lane.b32.xlu0 %v1778, %s1795
  %v1797 = vpop.permute.xlu0 %1796
  %s1799 = sor.u32 256, 40
  %1800 = vbcast.lane.b32.xlu0 %v1778, %s1799
  %v1801 = vpop.permute.xlu0 %1800
  %s1803 = sor.u32 256, 48
  %1804 = vbcast.lane.b32.xlu0 %v1778, %s1803
  %v1805 = vpop.permute.xlu0 %1804
  %s1807 = sor.u32 256, 56
  %1808 = vbcast.lane.b32.xlu0 %v1778, %s1807
  %v1809 = vpop.permute.xlu0 %1808
  %s1811 = sor.u32 256, 64
  %1812 = vbcast.lane.b32.xlu0 %v1778, %s1811
  %v1813 = vpop.permute.xlu0 %1812
  %s1815 = sor.u32 256, 72
  %1816 = vbcast.lane.b32.xlu0 %v1778, %s1815
  %v1817 = vpop.permute.xlu0 %1816
  %s1819 = sor.u32 256, 80
  %1820 = vbcast.lane.b32.xlu0 %v1778, %s1819
  %v1821 = vpop.permute.xlu0 %1820
  %s1823 = sor.u32 256, 88
  %1824 = vbcast.lane.b32.xlu0 %v1778, %s1823
  %v1825 = vpop.permute.xlu0 %1824
  %s1827 = sor.u32 256, 96
  %1828 = vbcast.lane.b32.xlu0 %v1778, %s1827
  %v1829 = vpop.permute.xlu0 %1828
  %s1831 = sor.u32 256, 104
  %1832 = vbcast.lane.b32.xlu0 %v1778, %s1831
  %v1833 = vpop.permute.xlu0 %1832
  %s1835 = sor.u32 256, 112
  %1836 = vbcast.lane.b32.xlu0 %v1778, %s1835
  %v1837 = vpop.permute.xlu0 %1836
  %s1839 = sor.u32 256, 120
  %1840 = vbcast.lane.b32.xlu0 %v1778, %s1839
  %v1841 = vpop.permute.xlu0 %1840
  %v1842 = vlaneseq
  %v1843 = vshrl.u32 %v1842, 7
  %v1844 = vsub.s32 4, %v1843
  %v1845 = vrot.slane %v1568, %v1844
  %1847 = vbcast.lane.b32.xlu0 %v1845, 256
  %v1848 = vpop.permute.xlu0 %1847
  %s1850 = sor.u32 256, 8
  %1851 = vbcast.lane.b32.xlu0 %v1845, %s1850
  %v1852 = vpop.permute.xlu0 %1851
  %s1854 = sor.u32 256, 16
  %1855 = vbcast.lane.b32.xlu0 %v1845, %s1854
  %v1856 = vpop.permute.xlu0 %1855
  %s1858 = sor.u32 256, 24
  %1859 = vbcast.lane.b32.xlu0 %v1845, %s1858
  %v1860 = vpop.permute.xlu0 %1859
  %s1862 = sor.u32 256, 32
  %1863 = vbcast.lane.b32.xlu0 %v1845, %s1862
  %v1864 = vpop.permute.xlu0 %1863
  %s1866 = sor.u32 256, 40
  %1867 = vbcast.lane.b32.xlu0 %v1845, %s1866
  %v1868 = vpop.permute.xlu0 %1867
  %s1870 = sor.u32 256, 48
  %1871 = vbcast.lane.b32.xlu0 %v1845, %s1870
  %v1872 = vpop.permute.xlu0 %1871
  %s1874 = sor.u32 256, 56
  %1875 = vbcast.lane.b32.xlu0 %v1845, %s1874
  %v1876 = vpop.permute.xlu0 %1875
  %s1878 = sor.u32 256, 64
  %1879 = vbcast.lane.b32.xlu0 %v1845, %s1878
  %v1880 = vpop.permute.xlu0 %1879
  %s1882 = sor.u32 256, 72
  %1883 = vbcast.lane.b32.xlu0 %v1845, %s1882
  %v1884 = vpop.permute.xlu0 %1883
  %s1886 = sor.u32 256, 80
  %1887 = vbcast.lane.b32.xlu0 %v1845, %s1886
  %v1888 = vpop.permute.xlu0 %1887
  %s1890 = sor.u32 256, 88
  %1891 = vbcast.lane.b32.xlu0 %v1845, %s1890
  %v1892 = vpop.permute.xlu0 %1891
  %s1894 = sor.u32 256, 96
  %1895 = vbcast.lane.b32.xlu0 %v1845, %s1894
  %v1896 = vpop.permute.xlu0 %1895
  %s1898 = sor.u32 256, 104
  %1899 = vbcast.lane.b32.xlu0 %v1845, %s1898
  %v1900 = vpop.permute.xlu0 %1899
  %s1902 = sor.u32 256, 112
  %1903 = vbcast.lane.b32.xlu0 %v1845, %s1902
  %v1904 = vpop.permute.xlu0 %1903
  %s1906 = sor.u32 256, 120
  %1907 = vbcast.lane.b32.xlu0 %v1845, %s1906
  %v1908 = vpop.permute.xlu0 %1907
  %v1909 = vlaneseq
  %v1910 = vshrl.u32 %v1909, 7
  %v1911 = vsub.s32 5, %v1910
  %v1912 = vrot.slane %v1568, %v1911
  %1914 = vbcast.lane.b32.xlu0 %v1912, 256
  %v1915 = vpop.permute.xlu0 %1914
  %s1917 = sor.u32 256, 8
  %1918 = vbcast.lane.b32.xlu0 %v1912, %s1917
  %v1919 = vpop.permute.xlu0 %1918
  %s1921 = sor.u32 256, 16
  %1922 = vbcast.lane.b32.xlu0 %v1912, %s1921
  %v1923 = vpop.permute.xlu0 %1922
  %s1925 = sor.u32 256, 24
  %1926 = vbcast.lane.b32.xlu0 %v1912, %s1925
  %v1927 = vpop.permute.xlu0 %1926
  %s1929 = sor.u32 256, 32
  %1930 = vbcast.lane.b32.xlu0 %v1912, %s1929
  %v1931 = vpop.permute.xlu0 %1930
  %s1933 = sor.u32 256, 40
  %1934 = vbcast.lane.b32.xlu0 %v1912, %s1933
  %v1935 = vpop.permute.xlu0 %1934
  %s1937 = sor.u32 256, 48
  %1938 = vbcast.lane.b32.xlu0 %v1912, %s1937
  %v1939 = vpop.permute.xlu0 %1938
  %s1941 = sor.u32 256, 56
  %1942 = vbcast.lane.b32.xlu0 %v1912, %s1941
  %v1943 = vpop.permute.xlu0 %1942
  %s1945 = sor.u32 256, 64
  %1946 = vbcast.lane.b32.xlu0 %v1912, %s1945
  %v1947 = vpop.permute.xlu0 %1946
  %s1949 = sor.u32 256, 72
  %1950 = vbcast.lane.b32.xlu0 %v1912, %s1949
  %v1951 = vpop.permute.xlu0 %1950
  %s1953 = sor.u32 256, 80
  %1954 = vbcast.lane.b32.xlu0 %v1912, %s1953
  %v1955 = vpop.permute.xlu0 %1954
  %s1957 = sor.u32 256, 88
  %1958 = vbcast.lane.b32.xlu0 %v1912, %s1957
  %v1959 = vpop.permute.xlu0 %1958
  %s1961 = sor.u32 256, 96
  %1962 = vbcast.lane.b32.xlu0 %v1912, %s1961
  %v1963 = vpop.permute.xlu0 %1962
  %s1965 = sor.u32 256, 104
  %1966 = vbcast.lane.b32.xlu0 %v1912, %s1965
  %v1967 = vpop.permute.xlu0 %1966
  %s1969 = sor.u32 256, 112
  %1970 = vbcast.lane.b32.xlu0 %v1912, %s1969
  %v1971 = vpop.permute.xlu0 %1970
  %s1973 = sor.u32 256, 120
  %1974 = vbcast.lane.b32.xlu0 %v1912, %s1973
  %v1975 = vpop.permute.xlu0 %1974
  %v1976 = vlaneseq
  %v1977 = vshrl.u32 %v1976, 7
  %v1978 = vsub.s32 6, %v1977
  %v1979 = vrot.slane %v1568, %v1978
  %1981 = vbcast.lane.b32.xlu0 %v1979, 256
  %v1982 = vpop.permute.xlu0 %1981
  %s1984 = sor.u32 256, 8
  %1985 = vbcast.lane.b32.xlu0 %v1979, %s1984
  %v1986 = vpop.permute.xlu0 %1985
  %s1988 = sor.u32 256, 16
  %1989 = vbcast.lane.b32.xlu0 %v1979, %s1988
  %v1990 = vpop.permute.xlu0 %1989
  %s1992 = sor.u32 256, 24
  %1993 = vbcast.lane.b32.xlu0 %v1979, %s1992
  %v1994 = vpop.permute.xlu0 %1993
  %s1996 = sor.u32 256, 32
  %1997 = vbcast.lane.b32.xlu0 %v1979, %s1996
  %v1998 = vpop.permute.xlu0 %1997
  %s2000 = sor.u32 256, 40
  %2001 = vbcast.lane.b32.xlu0 %v1979, %s2000
  %v2002 = vpop.permute.xlu0 %2001
  %s2004 = sor.u32 256, 48
  %2005 = vbcast.lane.b32.xlu0 %v1979, %s2004
  %v2006 = vpop.permute.xlu0 %2005
  %s2008 = sor.u32 256, 56
  %2009 = vbcast.lane.b32.xlu0 %v1979, %s2008
  %v2010 = vpop.permute.xlu0 %2009
  %s2012 = sor.u32 256, 64
  %2013 = vbcast.lane.b32.xlu0 %v1979, %s2012
  %v2014 = vpop.permute.xlu0 %2013
  %s2016 = sor.u32 256, 72
  %2017 = vbcast.lane.b32.xlu0 %v1979, %s2016
  %v2018 = vpop.permute.xlu0 %2017
  %s2020 = sor.u32 256, 80
  %2021 = vbcast.lane.b32.xlu0 %v1979, %s2020
  %v2022 = vpop.permute.xlu0 %2021
  %s2024 = sor.u32 256, 88
  %2025 = vbcast.lane.b32.xlu0 %v1979, %s2024
  %v2026 = vpop.permute.xlu0 %2025
  %s2028 = sor.u32 256, 96
  %2029 = vbcast.lane.b32.xlu0 %v1979, %s2028
  %v2030 = vpop.permute.xlu0 %2029
  %s2032 = sor.u32 256, 104
  %2033 = vbcast.lane.b32.xlu0 %v1979, %s2032
  %v2034 = vpop.permute.xlu0 %2033
  %s2036 = sor.u32 256, 112
  %2037 = vbcast.lane.b32.xlu0 %v1979, %s2036
  %v2038 = vpop.permute.xlu0 %2037
  %s2040 = sor.u32 256, 120
  %2041 = vbcast.lane.b32.xlu0 %v1979, %s2040
  %v2042 = vpop.permute.xlu0 %2041
  %v2043 = vlaneseq
  %v2044 = vshrl.u32 %v2043, 7
  %v2045 = vsub.s32 7, %v2044
  %v2046 = vrot.slane %v1568, %v2045
  %2048 = vbcast.lane.b32.xlu0 %v2046, 256
  %v2049 = vpop.permute.xlu0 %2048
  %s2051 = sor.u32 256, 8
  %2052 = vbcast.lane.b32.xlu0 %v2046, %s2051
  %v2053 = vpop.permute.xlu0 %2052
  %s2055 = sor.u32 256, 16
  %2056 = vbcast.lane.b32.xlu0 %v2046, %s2055
  %v2057 = vpop.permute.xlu0 %2056
  %s2059 = sor.u32 256, 24
  %2060 = vbcast.lane.b32.xlu0 %v2046, %s2059
  %v2061 = vpop.permute.xlu0 %2060
  %s2063 = sor.u32 256, 32
  %2064 = vbcast.lane.b32.xlu0 %v2046, %s2063
  %v2065 = vpop.permute.xlu0 %2064
  %s2067 = sor.u32 256, 40
  %2068 = vbcast.lane.b32.xlu0 %v2046, %s2067
  %v2069 = vpop.permute.xlu0 %2068
  %s2071 = sor.u32 256, 48
  %2072 = vbcast.lane.b32.xlu0 %v2046, %s2071
  %v2073 = vpop.permute.xlu0 %2072
  %s2075 = sor.u32 256, 56
  %2076 = vbcast.lane.b32.xlu0 %v2046, %s2075
  %v2077 = vpop.permute.xlu0 %2076
  %s2079 = sor.u32 256, 64
  %2080 = vbcast.lane.b32.xlu0 %v2046, %s2079
  %v2081 = vpop.permute.xlu0 %2080
  %s2083 = sor.u32 256, 72
  %2084 = vbcast.lane.b32.xlu0 %v2046, %s2083
  %v2085 = vpop.permute.xlu0 %2084
  %s2087 = sor.u32 256, 80
  %2088 = vbcast.lane.b32.xlu0 %v2046, %s2087
  %v2089 = vpop.permute.xlu0 %2088
  %s2091 = sor.u32 256, 88
  %2092 = vbcast.lane.b32.xlu0 %v2046, %s2091
  %v2093 = vpop.permute.xlu0 %2092
  %s2095 = sor.u32 256, 96
  %2096 = vbcast.lane.b32.xlu0 %v2046, %s2095
  %v2097 = vpop.permute.xlu0 %2096
  %s2099 = sor.u32 256, 104
  %2100 = vbcast.lane.b32.xlu0 %v2046, %s2099
  %v2101 = vpop.permute.xlu0 %2100
  %s2103 = sor.u32 256, 112
  %2104 = vbcast.lane.b32.xlu0 %v2046, %s2103
  %v2105 = vpop.permute.xlu0 %2104
  %s2107 = sor.u32 256, 120
  %2108 = vbcast.lane.b32.xlu0 %v2046, %s2107
  %v2109 = vpop.permute.xlu0 %2108
  %v2238 = vmul.f32 %v1311, %v1580
  %v2239 = vmul.f32 %v1313, %v1584
  %v2240 = vmul.f32 %v1315, %v1588
  %v2241 = vmul.f32 %v1317, %v1592
  %v2242 = vmul.f32 %v1319, %v1596
  %v2243 = vmul.f32 %v1321, %v1600
  %v2244 = vmul.f32 %v1323, %v1604
  %v2245 = vmul.f32 %v1325, %v1608
  %v2246 = vmul.f32 %v1327, %v1612
  %v2247 = vmul.f32 %v1329, %v1616
  %v2248 = vmul.f32 %v1331, %v1620
  %v2249 = vmul.f32 %v1333, %v1624
  %v2250 = vmul.f32 %v1335, %v1628
  %v2251 = vmul.f32 %v1337, %v1632
  %v2252 = vmul.f32 %v1339, %v1636
  %v2253 = vmul.f32 %v1341, %v1640
  %v2254 = vmul.f32 %v1343, %v1647
  %v2255 = vmul.f32 %v1345, %v1651
  %v2256 = vmul.f32 %v1347, %v1655
  %v2257 = vmul.f32 %v1349, %v1659
  %v2258 = vmul.f32 %v1351, %v1663
  %v2259 = vmul.f32 %v1353, %v1667
  %v2260 = vmul.f32 %v1355, %v1671
  %v2261 = vmul.f32 %v1357, %v1675
  %v2262 = vmul.f32 %v1359, %v1679
  %v2263 = vmul.f32 %v1361, %v1683
  %v2264 = vmul.f32 %v1363, %v1687
  %v2265 = vmul.f32 %v1365, %v1691
  %v2266 = vmul.f32 %v1367, %v1695
  %v2267 = vmul.f32 %v1369, %v1699
  %v2268 = vmul.f32 %v1371, %v1703
  %v2269 = vmul.f32 %v1373, %v1707
  %v2270 = vmul.f32 %v1375, %v1714
  %v2271 = vmul.f32 %v1377, %v1718
  %v2272 = vmul.f32 %v1379, %v1722
  %v2273 = vmul.f32 %v1381, %v1726
  %v2274 = vmul.f32 %v1383, %v1730
  %v2275 = vmul.f32 %v1385, %v1734
  %v2276 = vmul.f32 %v1387, %v1738
  %v2277 = vmul.f32 %v1389, %v1742
  %v2278 = vmul.f32 %v1391, %v1746
  %v2279 = vmul.f32 %v1393, %v1750
  %v2280 = vmul.f32 %v1395, %v1754
  %v2281 = vmul.f32 %v1397, %v1758
  %v2282 = vmul.f32 %v1399, %v1762
  %v2283 = vmul.f32 %v1401, %v1766
  %v2284 = vmul.f32 %v1403, %v1770
  %v2285 = vmul.f32 %v1405, %v1774
  %v2286 = vmul.f32 %v1407, %v1781
  %v2287 = vmul.f32 %v1409, %v1785
  %v2288 = vmul.f32 %v1411, %v1789
  %v2289 = vmul.f32 %v1413, %v1793
  %v2290 = vmul.f32 %v1415, %v1797
  %v2291 = vmul.f32 %v1417, %v1801
  %v2292 = vmul.f32 %v1419, %v1805
  %v2293 = vmul.f32 %v1421, %v1809
  %v2294 = vmul.f32 %v1423, %v1813
  %v2295 = vmul.f32 %v1425, %v1817
  %v2296 = vmul.f32 %v1427, %v1821
  %v2297 = vmul.f32 %v1429, %v1825
  %v2298 = vmul.f32 %v1431, %v1829
  %v2299 = vmul.f32 %v1433, %v1833
  %v2300 = vmul.f32 %v1435, %v1837
  %v2301 = vmul.f32 %v1437, %v1841
  %v2302 = vmul.f32 %v1439, %v1848
  %v2303 = vmul.f32 %v1441, %v1852
  %v2304 = vmul.f32 %v1443, %v1856
  %v2305 = vmul.f32 %v1445, %v1860
  %v2306 = vmul.f32 %v1447, %v1864
  %v2307 = vmul.f32 %v1449, %v1868
  %v2308 = vmul.f32 %v1451, %v1872
  %v2309 = vmul.f32 %v1453, %v1876
  %v2310 = vmul.f32 %v1455, %v1880
  %v2311 = vmul.f32 %v1457, %v1884
  %v2312 = vmul.f32 %v1459, %v1888
  %v2313 = vmul.f32 %v1461, %v1892
  %v2314 = vmul.f32 %v1463, %v1896
  %v2315 = vmul.f32 %v1465, %v1900
  %v2316 = vmul.f32 %v1467, %v1904
  %v2317 = vmul.f32 %v1469, %v1908
  %v2318 = vmul.f32 %v1471, %v1915
  %v2319 = vmul.f32 %v1473, %v1919
  %v2320 = vmul.f32 %v1475, %v1923
  %v2321 = vmul.f32 %v1477, %v1927
  %v2322 = vmul.f32 %v1479, %v1931
  %v2323 = vmul.f32 %v1481, %v1935
  %v2324 = vmul.f32 %v1483, %v1939
  %v2325 = vmul.f32 %v1485, %v1943
  %v2326 = vmul.f32 %v1487, %v1947
  %v2327 = vmul.f32 %v1489, %v1951
  %v2328 = vmul.f32 %v1491, %v1955
  %v2329 = vmul.f32 %v1493, %v1959
  %v2330 = vmul.f32 %v1495, %v1963
  %v2331 = vmul.f32 %v1497, %v1967
  %v2332 = vmul.f32 %v1499, %v1971
  %v2333 = vmul.f32 %v1501, %v1975
  %v2334 = vmul.f32 %v1503, %v1982
  %v2335 = vmul.f32 %v1505, %v1986
  %v2336 = vmul.f32 %v1507, %v1990
  %v2337 = vmul.f32 %v1509, %v1994
  %v2338 = vmul.f32 %v1511, %v1998
  %v2339 = vmul.f32 %v1513, %v2002
  %v2340 = vmul.f32 %v1515, %v2006
  %v2341 = vmul.f32 %v1517, %v2010
  %v2342 = vmul.f32 %v1519, %v2014
  %v2343 = vmul.f32 %v1521, %v2018
  %v2344 = vmul.f32 %v1523, %v2022
  %v2345 = vmul.f32 %v1525, %v2026
  %v2346 = vmul.f32 %v1527, %v2030
  %v2347 = vmul.f32 %v1529, %v2034
  %v2348 = vmul.f32 %v1531, %v2038
  %v2349 = vmul.f32 %v1533, %v2042
  %v2350 = vmul.f32 %v1535, %v2049
  %v2351 = vmul.f32 %v1537, %v2053
  %v2352 = vmul.f32 %v1539, %v2057
  %v2353 = vmul.f32 %v1541, %v2061
  %v2354 = vmul.f32 %v1543, %v2065
  %v2355 = vmul.f32 %v1545, %v2069
  %v2356 = vmul.f32 %v1547, %v2073
  %v2357 = vmul.f32 %v1549, %v2077
  %v2358 = vmul.f32 %v1551, %v2081
  %v2359 = vmul.f32 %v1553, %v2085
  %v2360 = vmul.f32 %v1555, %v2089
  %v2361 = vmul.f32 %v1557, %v2093
  %v2362 = vmul.f32 %v1559, %v2097
  %v2363 = vmul.f32 %v1561, %v2101
  %v2364 = vmul.f32 %v1563, %v2105
  %v2365 = vmul.f32 %v1565, %v2109
  %2494 = vset.pattern.permute.xlu0 0
  %2495 = vperm.xlu0 %2494, %v2238
  %v2496 = vpop.permute.xlu0 %2495
  %2497 = vset.pattern.permute.xlu0 0
  %2498 = vperm.xlu0 %2497, %v2239
  %v2499 = vpop.permute.xlu0 %2498
  %2500 = vset.pattern.permute.xlu0 0
  %2501 = vperm.xlu0 %2500, %v2240
  %v2502 = vpop.permute.xlu0 %2501
  %2503 = vset.pattern.permute.xlu0 0
  %2504 = vperm.xlu0 %2503, %v2241
  %v2505 = vpop.permute.xlu0 %2504
  %2506 = vset.pattern.permute.xlu0 0
  %2507 = vperm.xlu0 %2506, %v2242
  %v2508 = vpop.permute.xlu0 %2507
  %2509 = vset.pattern.permute.xlu0 0
  %2510 = vperm.xlu0 %2509, %v2243
  %v2511 = vpop.permute.xlu0 %2510
  %2512 = vset.pattern.permute.xlu0 0
  %2513 = vperm.xlu0 %2512, %v2244
  %v2514 = vpop.permute.xlu0 %2513
  %2515 = vset.pattern.permute.xlu0 0
  %2516 = vperm.xlu0 %2515, %v2245
  %v2517 = vpop.permute.xlu0 %2516
  %2518 = vset.pattern.permute.xlu0 0
  %2519 = vperm.xlu0 %2518, %v2246
  %v2520 = vpop.permute.xlu0 %2519
  %2521 = vset.pattern.permute.xlu0 0
  %2522 = vperm.xlu0 %2521, %v2247
  %v2523 = vpop.permute.xlu0 %2522
  %2524 = vset.pattern.permute.xlu0 0
  %2525 = vperm.xlu0 %2524, %v2248
  %v2526 = vpop.permute.xlu0 %2525
  %2527 = vset.pattern.permute.xlu0 0
  %2528 = vperm.xlu0 %2527, %v2249
  %v2529 = vpop.permute.xlu0 %2528
  %2530 = vset.pattern.permute.xlu0 0
  %2531 = vperm.xlu0 %2530, %v2250
  %v2532 = vpop.permute.xlu0 %2531
  %2533 = vset.pattern.permute.xlu0 0
  %2534 = vperm.xlu0 %2533, %v2251
  %v2535 = vpop.permute.xlu0 %2534
  %2536 = vset.pattern.permute.xlu0 0
  %2537 = vperm.xlu0 %2536, %v2252
  %v2538 = vpop.permute.xlu0 %2537
  %2539 = vset.pattern.permute.xlu0 0
  %2540 = vperm.xlu0 %2539, %v2253
  %v2541 = vpop.permute.xlu0 %2540
  %2542 = vset.pattern.permute.xlu0 0
  %2543 = vperm.xlu0 %2542, %v2254
  %v2544 = vpop.permute.xlu0 %2543
  %2545 = vset.pattern.permute.xlu0 0
  %2546 = vperm.xlu0 %2545, %v2255
  %v2547 = vpop.permute.xlu0 %2546
  %2548 = vset.pattern.permute.xlu0 0
  %2549 = vperm.xlu0 %2548, %v2256
  %v2550 = vpop.permute.xlu0 %2549
  %2551 = vset.pattern.permute.xlu0 0
  %2552 = vperm.xlu0 %2551, %v2257
  %v2553 = vpop.permute.xlu0 %2552
  %2554 = vset.pattern.permute.xlu0 0
  %2555 = vperm.xlu0 %2554, %v2258
  %v2556 = vpop.permute.xlu0 %2555
  %2557 = vset.pattern.permute.xlu0 0
  %2558 = vperm.xlu0 %2557, %v2259
  %v2559 = vpop.permute.xlu0 %2558
  %2560 = vset.pattern.permute.xlu0 0
  %2561 = vperm.xlu0 %2560, %v2260
  %v2562 = vpop.permute.xlu0 %2561
  %2563 = vset.pattern.permute.xlu0 0
  %2564 = vperm.xlu0 %2563, %v2261
  %v2565 = vpop.permute.xlu0 %2564
  %2566 = vset.pattern.permute.xlu0 0
  %2567 = vperm.xlu0 %2566, %v2262
  %v2568 = vpop.permute.xlu0 %2567
  %2569 = vset.pattern.permute.xlu0 0
  %2570 = vperm.xlu0 %2569, %v2263
  %v2571 = vpop.permute.xlu0 %2570
  %2572 = vset.pattern.permute.xlu0 0
  %2573 = vperm.xlu0 %2572, %v2264
  %v2574 = vpop.permute.xlu0 %2573
  %2575 = vset.pattern.permute.xlu0 0
  %2576 = vperm.xlu0 %2575, %v2265
  %v2577 = vpop.permute.xlu0 %2576
  %2578 = vset.pattern.permute.xlu0 0
  %2579 = vperm.xlu0 %2578, %v2266
  %v2580 = vpop.permute.xlu0 %2579
  %2581 = vset.pattern.permute.xlu0 0
  %2582 = vperm.xlu0 %2581, %v2267
  %v2583 = vpop.permute.xlu0 %2582
  %2584 = vset.pattern.permute.xlu0 0
  %2585 = vperm.xlu0 %2584, %v2268
  %v2586 = vpop.permute.xlu0 %2585
  %2587 = vset.pattern.permute.xlu0 0
  %2588 = vperm.xlu0 %2587, %v2269
  %v2589 = vpop.permute.xlu0 %2588
  %2590 = vset.pattern.permute.xlu0 0
  %2591 = vperm.xlu0 %2590, %v2270
  %v2592 = vpop.permute.xlu0 %2591
  %2593 = vset.pattern.permute.xlu0 0
  %2594 = vperm.xlu0 %2593, %v2271
  %v2595 = vpop.permute.xlu0 %2594
  %2596 = vset.pattern.permute.xlu0 0
  %2597 = vperm.xlu0 %2596, %v2272
  %v2598 = vpop.permute.xlu0 %2597
  %2599 = vset.pattern.permute.xlu0 0
  %2600 = vperm.xlu0 %2599, %v2273
  %v2601 = vpop.permute.xlu0 %2600
  %2602 = vset.pattern.permute.xlu0 0
  %2603 = vperm.xlu0 %2602, %v2274
  %v2604 = vpop.permute.xlu0 %2603
  %2605 = vset.pattern.permute.xlu0 0
  %2606 = vperm.xlu0 %2605, %v2275
  %v2607 = vpop.permute.xlu0 %2606
  %2608 = vset.pattern.permute.xlu0 0
  %2609 = vperm.xlu0 %2608, %v2276
  %v2610 = vpop.permute.xlu0 %2609
  %2611 = vset.pattern.permute.xlu0 0
  %2612 = vperm.xlu0 %2611, %v2277
  %v2613 = vpop.permute.xlu0 %2612
  %2614 = vset.pattern.permute.xlu0 0
  %2615 = vperm.xlu0 %2614, %v2278
  %v2616 = vpop.permute.xlu0 %2615
  %2617 = vset.pattern.permute.xlu0 0
  %2618 = vperm.xlu0 %2617, %v2279
  %v2619 = vpop.permute.xlu0 %2618
  %2620 = vset.pattern.permute.xlu0 0
  %2621 = vperm.xlu0 %2620, %v2280
  %v2622 = vpop.permute.xlu0 %2621
  %2623 = vset.pattern.permute.xlu0 0
  %2624 = vperm.xlu0 %2623, %v2281
  %v2625 = vpop.permute.xlu0 %2624
  %2626 = vset.pattern.permute.xlu0 0
  %2627 = vperm.xlu0 %2626, %v2282
  %v2628 = vpop.permute.xlu0 %2627
  %2629 = vset.pattern.permute.xlu0 0
  %2630 = vperm.xlu0 %2629, %v2283
  %v2631 = vpop.permute.xlu0 %2630
  %2632 = vset.pattern.permute.xlu0 0
  %2633 = vperm.xlu0 %2632, %v2284
  %v2634 = vpop.permute.xlu0 %2633
  %2635 = vset.pattern.permute.xlu0 0
  %2636 = vperm.xlu0 %2635, %v2285
  %v2637 = vpop.permute.xlu0 %2636
  %2638 = vset.pattern.permute.xlu0 0
  %2639 = vperm.xlu0 %2638, %v2286
  %v2640 = vpop.permute.xlu0 %2639
  %2641 = vset.pattern.permute.xlu0 0
  %2642 = vperm.xlu0 %2641, %v2287
  %v2643 = vpop.permute.xlu0 %2642
  %2644 = vset.pattern.permute.xlu0 0
  %2645 = vperm.xlu0 %2644, %v2288
  %v2646 = vpop.permute.xlu0 %2645
  %2647 = vset.pattern.permute.xlu0 0
  %2648 = vperm.xlu0 %2647, %v2289
  %v2649 = vpop.permute.xlu0 %2648
  %2650 = vset.pattern.permute.xlu0 0
  %2651 = vperm.xlu0 %2650, %v2290
  %v2652 = vpop.permute.xlu0 %2651
  %2653 = vset.pattern.permute.xlu0 0
  %2654 = vperm.xlu0 %2653, %v2291
  %v2655 = vpop.permute.xlu0 %2654
  %2656 = vset.pattern.permute.xlu0 0
  %2657 = vperm.xlu0 %2656, %v2292
  %v2658 = vpop.permute.xlu0 %2657
  %2659 = vset.pattern.permute.xlu0 0
  %2660 = vperm.xlu0 %2659, %v2293
  %v2661 = vpop.permute.xlu0 %2660
  %2662 = vset.pattern.permute.xlu0 0
  %2663 = vperm.xlu0 %2662, %v2294
  %v2664 = vpop.permute.xlu0 %2663
  %2665 = vset.pattern.permute.xlu0 0
  %2666 = vperm.xlu0 %2665, %v2295
  %v2667 = vpop.permute.xlu0 %2666
  %2668 = vset.pattern.permute.xlu0 0
  %2669 = vperm.xlu0 %2668, %v2296
  %v2670 = vpop.permute.xlu0 %2669
  %2671 = vset.pattern.permute.xlu0 0
  %2672 = vperm.xlu0 %2671, %v2297
  %v2673 = vpop.permute.xlu0 %2672
  %2674 = vset.pattern.permute.xlu0 0
  %2675 = vperm.xlu0 %2674, %v2298
  %v2676 = vpop.permute.xlu0 %2675
  %2677 = vset.pattern.permute.xlu0 0
  %2678 = vperm.xlu0 %2677, %v2299
  %v2679 = vpop.permute.xlu0 %2678
  %2680 = vset.pattern.permute.xlu0 0
  %2681 = vperm.xlu0 %2680, %v2300
  %v2682 = vpop.permute.xlu0 %2681
  %2683 = vset.pattern.permute.xlu0 0
  %2684 = vperm.xlu0 %2683, %v2301
  %v2685 = vpop.permute.xlu0 %2684
  %2686 = vset.pattern.permute.xlu0 0
  %2687 = vperm.xlu0 %2686, %v2302
  %v2688 = vpop.permute.xlu0 %2687
  %2689 = vset.pattern.permute.xlu0 0
  %2690 = vperm.xlu0 %2689, %v2303
  %v2691 = vpop.permute.xlu0 %2690
  %2692 = vset.pattern.permute.xlu0 0
  %2693 = vperm.xlu0 %2692, %v2304
  %v2694 = vpop.permute.xlu0 %2693
  %2695 = vset.pattern.permute.xlu0 0
  %2696 = vperm.xlu0 %2695, %v2305
  %v2697 = vpop.permute.xlu0 %2696
  %2698 = vset.pattern.permute.xlu0 0
  %2699 = vperm.xlu0 %2698, %v2306
  %v2700 = vpop.permute.xlu0 %2699
  %2701 = vset.pattern.permute.xlu0 0
  %2702 = vperm.xlu0 %2701, %v2307
  %v2703 = vpop.permute.xlu0 %2702
  %2704 = vset.pattern.permute.xlu0 0
  %2705 = vperm.xlu0 %2704, %v2308
  %v2706 = vpop.permute.xlu0 %2705
  %2707 = vset.pattern.permute.xlu0 0
  %2708 = vperm.xlu0 %2707, %v2309
  %v2709 = vpop.permute.xlu0 %2708
  %2710 = vset.pattern.permute.xlu0 0
  %2711 = vperm.xlu0 %2710, %v2310
  %v2712 = vpop.permute.xlu0 %2711
  %2713 = vset.pattern.permute.xlu0 0
  %2714 = vperm.xlu0 %2713, %v2311
  %v2715 = vpop.permute.xlu0 %2714
  %2716 = vset.pattern.permute.xlu0 0
  %2717 = vperm.xlu0 %2716, %v2312
  %v2718 = vpop.permute.xlu0 %2717
  %2719 = vset.pattern.permute.xlu0 0
  %2720 = vperm.xlu0 %2719, %v2313
  %v2721 = vpop.permute.xlu0 %2720
  %2722 = vset.pattern.permute.xlu0 0
  %2723 = vperm.xlu0 %2722, %v2314
  %v2724 = vpop.permute.xlu0 %2723
  %2725 = vset.pattern.permute.xlu0 0
  %2726 = vperm.xlu0 %2725, %v2315
  %v2727 = vpop.permute.xlu0 %2726
  %2728 = vset.pattern.permute.xlu0 0
  %2729 = vperm.xlu0 %2728, %v2316
  %v2730 = vpop.permute.xlu0 %2729
  %2731 = vset.pattern.permute.xlu0 0
  %2732 = vperm.xlu0 %2731, %v2317
  %v2733 = vpop.permute.xlu0 %2732
  %2734 = vset.pattern.permute.xlu0 0
  %2735 = vperm.xlu0 %2734, %v2318
  %v2736 = vpop.permute.xlu0 %2735
  %2737 = vset.pattern.permute.xlu0 0
  %2738 = vperm.xlu0 %2737, %v2319
  %v2739 = vpop.permute.xlu0 %2738
  %2740 = vset.pattern.permute.xlu0 0
  %2741 = vperm.xlu0 %2740, %v2320
  %v2742 = vpop.permute.xlu0 %2741
  %2743 = vset.pattern.permute.xlu0 0
  %2744 = vperm.xlu0 %2743, %v2321
  %v2745 = vpop.permute.xlu0 %2744
  %2746 = vset.pattern.permute.xlu0 0
  %2747 = vperm.xlu0 %2746, %v2322
  %v2748 = vpop.permute.xlu0 %2747
  %2749 = vset.pattern.permute.xlu0 0
  %2750 = vperm.xlu0 %2749, %v2323
  %v2751 = vpop.permute.xlu0 %2750
  %2752 = vset.pattern.permute.xlu0 0
  %2753 = vperm.xlu0 %2752, %v2324
  %v2754 = vpop.permute.xlu0 %2753
  %2755 = vset.pattern.permute.xlu0 0
  %2756 = vperm.xlu0 %2755, %v2325
  %v2757 = vpop.permute.xlu0 %2756
  %2758 = vset.pattern.permute.xlu0 0
  %2759 = vperm.xlu0 %2758, %v2326
  %v2760 = vpop.permute.xlu0 %2759
  %2761 = vset.pattern.permute.xlu0 0
  %2762 = vperm.xlu0 %2761, %v2327
  %v2763 = vpop.permute.xlu0 %2762
  %2764 = vset.pattern.permute.xlu0 0
  %2765 = vperm.xlu0 %2764, %v2328
  %v2766 = vpop.permute.xlu0 %2765
  %2767 = vset.pattern.permute.xlu0 0
  %2768 = vperm.xlu0 %2767, %v2329
  %v2769 = vpop.permute.xlu0 %2768
  %2770 = vset.pattern.permute.xlu0 0
  %2771 = vperm.xlu0 %2770, %v2330
  %v2772 = vpop.permute.xlu0 %2771
  %2773 = vset.pattern.permute.xlu0 0
  %2774 = vperm.xlu0 %2773, %v2331
  %v2775 = vpop.permute.xlu0 %2774
  %2776 = vset.pattern.permute.xlu0 0
  %2777 = vperm.xlu0 %2776, %v2332
  %v2778 = vpop.permute.xlu0 %2777
  %2779 = vset.pattern.permute.xlu0 0
  %2780 = vperm.xlu0 %2779, %v2333
  %v2781 = vpop.permute.xlu0 %2780
  %2782 = vset.pattern.permute.xlu0 0
  %2783 = vperm.xlu0 %2782, %v2334
  %v2784 = vpop.permute.xlu0 %2783
  %2785 = vset.pattern.permute.xlu0 0
  %2786 = vperm.xlu0 %2785, %v2335
  %v2787 = vpop.permute.xlu0 %2786
  %2788 = vset.pattern.permute.xlu0 0
  %2789 = vperm.xlu0 %2788, %v2336
  %v2790 = vpop.permute.xlu0 %2789
  %2791 = vset.pattern.permute.xlu0 0
  %2792 = vperm.xlu0 %2791, %v2337
  %v2793 = vpop.permute.xlu0 %2792
  %2794 = vset.pattern.permute.xlu0 0
  %2795 = vperm.xlu0 %2794, %v2338
  %v2796 = vpop.permute.xlu0 %2795
  %2797 = vset.pattern.permute.xlu0 0
  %2798 = vperm.xlu0 %2797, %v2339
  %v2799 = vpop.permute.xlu0 %2798
  %2800 = vset.pattern.permute.xlu0 0
  %2801 = vperm.xlu0 %2800, %v2340
  %v2802 = vpop.permute.xlu0 %2801
  %2803 = vset.pattern.permute.xlu0 0
  %2804 = vperm.xlu0 %2803, %v2341
  %v2805 = vpop.permute.xlu0 %2804
  %2806 = vset.pattern.permute.xlu0 0
  %2807 = vperm.xlu0 %2806, %v2342
  %v2808 = vpop.permute.xlu0 %2807
  %2809 = vset.pattern.permute.xlu0 0
  %2810 = vperm.xlu0 %2809, %v2343
  %v2811 = vpop.permute.xlu0 %2810
  %2812 = vset.pattern.permute.xlu0 0
  %2813 = vperm.xlu0 %2812, %v2344
  %v2814 = vpop.permute.xlu0 %2813
  %2815 = vset.pattern.permute.xlu0 0
  %2816 = vperm.xlu0 %2815, %v2345
  %v2817 = vpop.permute.xlu0 %2816
  %2818 = vset.pattern.permute.xlu0 0
  %2819 = vperm.xlu0 %2818, %v2346
  %v2820 = vpop.permute.xlu0 %2819
  %2821 = vset.pattern.permute.xlu0 0
  %2822 = vperm.xlu0 %2821, %v2347
  %v2823 = vpop.permute.xlu0 %2822
  %2824 = vset.pattern.permute.xlu0 0
  %2825 = vperm.xlu0 %2824, %v2348
  %v2826 = vpop.permute.xlu0 %2825
  %2827 = vset.pattern.permute.xlu0 0
  %2828 = vperm.xlu0 %2827, %v2349
  %v2829 = vpop.permute.xlu0 %2828
  %2830 = vset.pattern.permute.xlu0 0
  %2831 = vperm.xlu0 %2830, %v2350
  %v2832 = vpop.permute.xlu0 %2831
  %2833 = vset.pattern.permute.xlu0 0
  %2834 = vperm.xlu0 %2833, %v2351
  %v2835 = vpop.permute.xlu0 %2834
  %2836 = vset.pattern.permute.xlu0 0
  %2837 = vperm.xlu0 %2836, %v2352
  %v2838 = vpop.permute.xlu0 %2837
  %2839 = vset.pattern.permute.xlu0 0
  %2840 = vperm.xlu0 %2839, %v2353
  %v2841 = vpop.permute.xlu0 %2840
  %2842 = vset.pattern.permute.xlu0 0
  %2843 = vperm.xlu0 %2842, %v2354
  %v2844 = vpop.permute.xlu0 %2843
  %2845 = vset.pattern.permute.xlu0 0
  %2846 = vperm.xlu0 %2845, %v2355
  %v2847 = vpop.permute.xlu0 %2846
  %2848 = vset.pattern.permute.xlu0 0
  %2849 = vperm.xlu0 %2848, %v2356
  %v2850 = vpop.permute.xlu0 %2849
  %2851 = vset.pattern.permute.xlu0 0
  %2852 = vperm.xlu0 %2851, %v2357
  %v2853 = vpop.permute.xlu0 %2852
  %2854 = vset.pattern.permute.xlu0 0
  %2855 = vperm.xlu0 %2854, %v2358
  %v2856 = vpop.permute.xlu0 %2855
  %2857 = vset.pattern.permute.xlu0 0
  %2858 = vperm.xlu0 %2857, %v2359
  %v2859 = vpop.permute.xlu0 %2858
  %2860 = vset.pattern.permute.xlu0 0
  %2861 = vperm.xlu0 %2860, %v2360
  %v2862 = vpop.permute.xlu0 %2861
  %2863 = vset.pattern.permute.xlu0 0
  %2864 = vperm.xlu0 %2863, %v2361
  %v2865 = vpop.permute.xlu0 %2864
  %2866 = vset.pattern.permute.xlu0 0
  %2867 = vperm.xlu0 %2866, %v2362
  %v2868 = vpop.permute.xlu0 %2867
  %2869 = vset.pattern.permute.xlu0 0
  %2870 = vperm.xlu0 %2869, %v2363
  %v2871 = vpop.permute.xlu0 %2870
  %2872 = vset.pattern.permute.xlu0 0
  %2873 = vperm.xlu0 %2872, %v2364
  %v2874 = vpop.permute.xlu0 %2873
  %2875 = vset.pattern.permute.xlu0 0
  %2876 = vperm.xlu0 %2875, %v2365
  %v2877 = vpop.permute.xlu0 %2876
  %v2878 = vlaneseq
  %v2879 = vand.u32 %v2878, 127
  %v2880 = vlaneseq
  %v2881 = vshrl.u32 %v2880, 7
  %v2882 = vsub.s32 %v2879, %v2881
  %v2883 = vrot.slane %v2496, %v2882
  %v2884 = vadd.s32 %v2879, 4294967288
  %v2885 = vlaneseq
  %v2886 = vshrl.u32 %v2885, 7
  %v2887 = vsub.s32 %v2884, %v2886
  %v2888 = vrot.slane %v2499, %v2887
  %vm2889 = vcmask 130112
  %v2890 = vsel %vm2889, %v2888, %v2883
  %v2891 = vadd.s32 %v2879, 4294967280
  %v2892 = vlaneseq
  %v2893 = vshrl.u32 %v2892, 7
  %v2894 = vsub.s32 %v2891, %v2893
  %v2895 = vrot.slane %v2502, %v2894
  %vm2896 = vcmask 195712
  %v2897 = vsel %vm2896, %v2895, %v2890
  %v2898 = vadd.s32 %v2879, 4294967272
  %v2899 = vlaneseq
  %v2900 = vshrl.u32 %v2899, 7
  %v2901 = vsub.s32 %v2898, %v2900
  %v2902 = vrot.slane %v2505, %v2901
  %vm2903 = vcmask 261312
  %v2904 = vsel %vm2903, %v2902, %v2897
  %v2905 = vadd.s32 %v2879, 4294967264
  %v2906 = vlaneseq
  %v2907 = vshrl.u32 %v2906, 7
  %v2908 = vsub.s32 %v2905, %v2907
  %v2909 = vrot.slane %v2508, %v2908
  %vm2910 = vcmask 326912
  %v2911 = vsel %vm2910, %v2909, %v2904
  %v2912 = vadd.s32 %v2879, 4294967256
  %v2913 = vlaneseq
  %v2914 = vshrl.u32 %v2913, 7
  %v2915 = vsub.s32 %v2912, %v2914
  %v2916 = vrot.slane %v2511, %v2915
  %vm2917 = vcmask 392512
  %v2918 = vsel %vm2917, %v2916, %v2911
  %v2919 = vadd.s32 %v2879, 4294967248
  %v2920 = vlaneseq
  %v2921 = vshrl.u32 %v2920, 7
  %v2922 = vsub.s32 %v2919, %v2921
  %v2923 = vrot.slane %v2514, %v2922
  %vm2924 = vcmask 458112
  %v2925 = vsel %vm2924, %v2923, %v2918
  %v2926 = vadd.s32 %v2879, 4294967240
  %v2927 = vlaneseq
  %v2928 = vshrl.u32 %v2927, 7
  %v2929 = vsub.s32 %v2926, %v2928
  %v2930 = vrot.slane %v2517, %v2929
  %vm2931 = vcmask 523712
  %v2932 = vsel %vm2931, %v2930, %v2925
  %v2933 = vadd.s32 %v2879, 4294967232
  %v2934 = vlaneseq
  %v2935 = vshrl.u32 %v2934, 7
  %v2936 = vsub.s32 %v2933, %v2935
  %v2937 = vrot.slane %v2520, %v2936
  %vm2938 = vcmask 589312
  %v2939 = vsel %vm2938, %v2937, %v2932
  %v2940 = vadd.s32 %v2879, 4294967224
  %v2941 = vlaneseq
  %v2942 = vshrl.u32 %v2941, 7
  %v2943 = vsub.s32 %v2940, %v2942
  %v2944 = vrot.slane %v2523, %v2943
  %vm2945 = vcmask 654912
  %v2946 = vsel %vm2945, %v2944, %v2939
  %v2947 = vadd.s32 %v2879, 4294967216
  %v2948 = vlaneseq
  %v2949 = vshrl.u32 %v2948, 7
  %v2950 = vsub.s32 %v2947, %v2949
  %v2951 = vrot.slane %v2526, %v2950
  %vm2952 = vcmask 720512
  %v2953 = vsel %vm2952, %v2951, %v2946
  %v2954 = vadd.s32 %v2879, 4294967208
  %v2955 = vlaneseq
  %v2956 = vshrl.u32 %v2955, 7
  %v2957 = vsub.s32 %v2954, %v2956
  %v2958 = vrot.slane %v2529, %v2957
  %vm2959 = vcmask 786112
  %v2960 = vsel %vm2959, %v2958, %v2953
  %v2961 = vadd.s32 %v2879, 4294967200
  %v2962 = vlaneseq
  %v2963 = vshrl.u32 %v2962, 7
  %v2964 = vsub.s32 %v2961, %v2963
  %v2965 = vrot.slane %v2532, %v2964
  %vm2966 = vcmask 851712
  %v2967 = vsel %vm2966, %v2965, %v2960
  %v2968 = vadd.s32 %v2879, 4294967192
  %v2969 = vlaneseq
  %v2970 = vshrl.u32 %v2969, 7
  %v2971 = vsub.s32 %v2968, %v2970
  %v2972 = vrot.slane %v2535, %v2971
  %vm2973 = vcmask 917312
  %v2974 = vsel %vm2973, %v2972, %v2967
  %v2975 = vadd.s32 %v2879, 4294967184
  %v2976 = vlaneseq
  %v2977 = vshrl.u32 %v2976, 7
  %v2978 = vsub.s32 %v2975, %v2977
  %v2979 = vrot.slane %v2538, %v2978
  %vm2980 = vcmask 982912
  %v2981 = vsel %vm2980, %v2979, %v2974
  %v2982 = vadd.s32 %v2879, 4294967176
  %v2983 = vlaneseq
  %v2984 = vshrl.u32 %v2983, 7
  %v2985 = vsub.s32 %v2982, %v2984
  %v2986 = vrot.slane %v2541, %v2985
  %vm2987 = vcmask 1048512
  %v2988 = vsel %vm2987, %v2986, %v2981
  %v2989 = vlaneseq
  %v2990 = vshrl.u32 %v2989, 7
  %v2991 = vsub.s32 %v2879, %v2990
  %v2992 = vrot.slane %v2544, %v2991
  %v2993 = vlaneseq
  %v2994 = vshrl.u32 %v2993, 7
  %v2995 = vsub.s32 %v2884, %v2994
  %v2996 = vrot.slane %v2547, %v2995
  %v2997 = vsel %vm2889, %v2996, %v2992
  %v2998 = vlaneseq
  %v2999 = vshrl.u32 %v2998, 7
  %v3000 = vsub.s32 %v2891, %v2999
  %v3001 = vrot.slane %v2550, %v3000
  %v3002 = vsel %vm2896, %v3001, %v2997
  %v3003 = vlaneseq
  %v3004 = vshrl.u32 %v3003, 7
  %v3005 = vsub.s32 %v2898, %v3004
  %v3006 = vrot.slane %v2553, %v3005
  %v3007 = vsel %vm2903, %v3006, %v3002
  %v3008 = vlaneseq
  %v3009 = vshrl.u32 %v3008, 7
  %v3010 = vsub.s32 %v2905, %v3009
  %v3011 = vrot.slane %v2556, %v3010
  %v3012 = vsel %vm2910, %v3011, %v3007
  %v3013 = vlaneseq
  %v3014 = vshrl.u32 %v3013, 7
  %v3015 = vsub.s32 %v2912, %v3014
  %v3016 = vrot.slane %v2559, %v3015
  %v3017 = vsel %vm2917, %v3016, %v3012
  %v3018 = vlaneseq
  %v3019 = vshrl.u32 %v3018, 7
  %v3020 = vsub.s32 %v2919, %v3019
  %v3021 = vrot.slane %v2562, %v3020
  %v3022 = vsel %vm2924, %v3021, %v3017
  %v3023 = vlaneseq
  %v3024 = vshrl.u32 %v3023, 7
  %v3025 = vsub.s32 %v2926, %v3024
  %v3026 = vrot.slane %v2565, %v3025
  %v3027 = vsel %vm2931, %v3026, %v3022
  %v3028 = vlaneseq
  %v3029 = vshrl.u32 %v3028, 7
  %v3030 = vsub.s32 %v2933, %v3029
  %v3031 = vrot.slane %v2568, %v3030
  %v3032 = vsel %vm2938, %v3031, %v3027
  %v3033 = vlaneseq
  %v3034 = vshrl.u32 %v3033, 7
  %v3035 = vsub.s32 %v2940, %v3034
  %v3036 = vrot.slane %v2571, %v3035
  %v3037 = vsel %vm2945, %v3036, %v3032
  %v3038 = vlaneseq
  %v3039 = vshrl.u32 %v3038, 7
  %v3040 = vsub.s32 %v2947, %v3039
  %v3041 = vrot.slane %v2574, %v3040
  %v3042 = vsel %vm2952, %v3041, %v3037
  %v3043 = vlaneseq
  %v3044 = vshrl.u32 %v3043, 7
  %v3045 = vsub.s32 %v2954, %v3044
  %v3046 = vrot.slane %v2577, %v3045
  %v3047 = vsel %vm2959, %v3046, %v3042
  %v3048 = vlaneseq
  %v3049 = vshrl.u32 %v3048, 7
  %v3050 = vsub.s32 %v2961, %v3049
  %v3051 = vrot.slane %v2580, %v3050
  %v3052 = vsel %vm2966, %v3051, %v3047
  %v3053 = vlaneseq
  %v3054 = vshrl.u32 %v3053, 7
  %v3055 = vsub.s32 %v2968, %v3054
  %v3056 = vrot.slane %v2583, %v3055
  %v3057 = vsel %vm2973, %v3056, %v3052
  %v3058 = vlaneseq
  %v3059 = vshrl.u32 %v3058, 7
  %v3060 = vsub.s32 %v2975, %v3059
  %v3061 = vrot.slane %v2586, %v3060
  %v3062 = vsel %vm2980, %v3061, %v3057
  %v3063 = vlaneseq
  %v3064 = vshrl.u32 %v3063, 7
  %v3065 = vsub.s32 %v2982, %v3064
  %v3066 = vrot.slane %v2589, %v3065
  %v3067 = vsel %vm2987, %v3066, %v3062
  %v3068 = vlaneseq
  %v3069 = vshrl.u32 %v3068, 7
  %v3070 = vsub.s32 %v2879, %v3069
  %v3071 = vrot.slane %v2592, %v3070
  %v3072 = vlaneseq
  %v3073 = vshrl.u32 %v3072, 7
  %v3074 = vsub.s32 %v2884, %v3073
  %v3075 = vrot.slane %v2595, %v3074
  %v3076 = vsel %vm2889, %v3075, %v3071
  %v3077 = vlaneseq
  %v3078 = vshrl.u32 %v3077, 7
  %v3079 = vsub.s32 %v2891, %v3078
  %v3080 = vrot.slane %v2598, %v3079
  %v3081 = vsel %vm2896, %v3080, %v3076
  %v3082 = vlaneseq
  %v3083 = vshrl.u32 %v3082, 7
  %v3084 = vsub.s32 %v2898, %v3083
  %v3085 = vrot.slane %v2601, %v3084
  %v3086 = vsel %vm2903, %v3085, %v3081
  %v3087 = vlaneseq
  %v3088 = vshrl.u32 %v3087, 7
  %v3089 = vsub.s32 %v2905, %v3088
  %v3090 = vrot.slane %v2604, %v3089
  %v3091 = vsel %vm2910, %v3090, %v3086
  %v3092 = vlaneseq
  %v3093 = vshrl.u32 %v3092, 7
  %v3094 = vsub.s32 %v2912, %v3093
  %v3095 = vrot.slane %v2607, %v3094
  %v3096 = vsel %vm2917, %v3095, %v3091
  %v3097 = vlaneseq
  %v3098 = vshrl.u32 %v3097, 7
  %v3099 = vsub.s32 %v2919, %v3098
  %v3100 = vrot.slane %v2610, %v3099
  %v3101 = vsel %vm2924, %v3100, %v3096
  %v3102 = vlaneseq
  %v3103 = vshrl.u32 %v3102, 7
  %v3104 = vsub.s32 %v2926, %v3103
  %v3105 = vrot.slane %v2613, %v3104
  %v3106 = vsel %vm2931, %v3105, %v3101
  %v3107 = vlaneseq
  %v3108 = vshrl.u32 %v3107, 7
  %v3109 = vsub.s32 %v2933, %v3108
  %v3110 = vrot.slane %v2616, %v3109
  %v3111 = vsel %vm2938, %v3110, %v3106
  %v3112 = vlaneseq
  %v3113 = vshrl.u32 %v3112, 7
  %v3114 = vsub.s32 %v2940, %v3113
  %v3115 = vrot.slane %v2619, %v3114
  %v3116 = vsel %vm2945, %v3115, %v3111
  %v3117 = vlaneseq
  %v3118 = vshrl.u32 %v3117, 7
  %v3119 = vsub.s32 %v2947, %v3118
  %v3120 = vrot.slane %v2622, %v3119
  %v3121 = vsel %vm2952, %v3120, %v3116
  %v3122 = vlaneseq
  %v3123 = vshrl.u32 %v3122, 7
  %v3124 = vsub.s32 %v2954, %v3123
  %v3125 = vrot.slane %v2625, %v3124
  %v3126 = vsel %vm2959, %v3125, %v3121
  %v3127 = vlaneseq
  %v3128 = vshrl.u32 %v3127, 7
  %v3129 = vsub.s32 %v2961, %v3128
  %v3130 = vrot.slane %v2628, %v3129
  %v3131 = vsel %vm2966, %v3130, %v3126
  %v3132 = vlaneseq
  %v3133 = vshrl.u32 %v3132, 7
  %v3134 = vsub.s32 %v2968, %v3133
  %v3135 = vrot.slane %v2631, %v3134
  %v3136 = vsel %vm2973, %v3135, %v3131
  %v3137 = vlaneseq
  %v3138 = vshrl.u32 %v3137, 7
  %v3139 = vsub.s32 %v2975, %v3138
  %v3140 = vrot.slane %v2634, %v3139
  %v3141 = vsel %vm2980, %v3140, %v3136
  %v3142 = vlaneseq
  %v3143 = vshrl.u32 %v3142, 7
  %v3144 = vsub.s32 %v2982, %v3143
  %v3145 = vrot.slane %v2637, %v3144
  %v3146 = vsel %vm2987, %v3145, %v3141
  %v3147 = vlaneseq
  %v3148 = vshrl.u32 %v3147, 7
  %v3149 = vsub.s32 %v2879, %v3148
  %v3150 = vrot.slane %v2640, %v3149
  %v3151 = vlaneseq
  %v3152 = vshrl.u32 %v3151, 7
  %v3153 = vsub.s32 %v2884, %v3152
  %v3154 = vrot.slane %v2643, %v3153
  %v3155 = vsel %vm2889, %v3154, %v3150
  %v3156 = vlaneseq
  %v3157 = vshrl.u32 %v3156, 7
  %v3158 = vsub.s32 %v2891, %v3157
  %v3159 = vrot.slane %v2646, %v3158
  %v3160 = vsel %vm2896, %v3159, %v3155
  %v3161 = vlaneseq
  %v3162 = vshrl.u32 %v3161, 7
  %v3163 = vsub.s32 %v2898, %v3162
  %v3164 = vrot.slane %v2649, %v3163
  %v3165 = vsel %vm2903, %v3164, %v3160
  %v3166 = vlaneseq
  %v3167 = vshrl.u32 %v3166, 7
  %v3168 = vsub.s32 %v2905, %v3167
  %v3169 = vrot.slane %v2652, %v3168
  %v3170 = vsel %vm2910, %v3169, %v3165
  %v3171 = vlaneseq
  %v3172 = vshrl.u32 %v3171, 7
  %v3173 = vsub.s32 %v2912, %v3172
  %v3174 = vrot.slane %v2655, %v3173
  %v3175 = vsel %vm2917, %v3174, %v3170
  %v3176 = vlaneseq
  %v3177 = vshrl.u32 %v3176, 7
  %v3178 = vsub.s32 %v2919, %v3177
  %v3179 = vrot.slane %v2658, %v3178
  %v3180 = vsel %vm2924, %v3179, %v3175
  %v3181 = vlaneseq
  %v3182 = vshrl.u32 %v3181, 7
  %v3183 = vsub.s32 %v2926, %v3182
  %v3184 = vrot.slane %v2661, %v3183
  %v3185 = vsel %vm2931, %v3184, %v3180
  %v3186 = vlaneseq
  %v3187 = vshrl.u32 %v3186, 7
  %v3188 = vsub.s32 %v2933, %v3187
  %v3189 = vrot.slane %v2664, %v3188
  %v3190 = vsel %vm2938, %v3189, %v3185
  %v3191 = vlaneseq
  %v3192 = vshrl.u32 %v3191, 7
  %v3193 = vsub.s32 %v2940, %v3192
  %v3194 = vrot.slane %v2667, %v3193
  %v3195 = vsel %vm2945, %v3194, %v3190
  %v3196 = vlaneseq
  %v3197 = vshrl.u32 %v3196, 7
  %v3198 = vsub.s32 %v2947, %v3197
  %v3199 = vrot.slane %v2670, %v3198
  %v3200 = vsel %vm2952, %v3199, %v3195
  %v3201 = vlaneseq
  %v3202 = vshrl.u32 %v3201, 7
  %v3203 = vsub.s32 %v2954, %v3202
  %v3204 = vrot.slane %v2673, %v3203
  %v3205 = vsel %vm2959, %v3204, %v3200
  %v3206 = vlaneseq
  %v3207 = vshrl.u32 %v3206, 7
  %v3208 = vsub.s32 %v2961, %v3207
  %v3209 = vrot.slane %v2676, %v3208
  %v3210 = vsel %vm2966, %v3209, %v3205
  %v3211 = vlaneseq
  %v3212 = vshrl.u32 %v3211, 7
  %v3213 = vsub.s32 %v2968, %v3212
  %v3214 = vrot.slane %v2679, %v3213
  %v3215 = vsel %vm2973, %v3214, %v3210
  %v3216 = vlaneseq
  %v3217 = vshrl.u32 %v3216, 7
  %v3218 = vsub.s32 %v2975, %v3217
  %v3219 = vrot.slane %v2682, %v3218
  %v3220 = vsel %vm2980, %v3219, %v3215
  %v3221 = vlaneseq
  %v3222 = vshrl.u32 %v3221, 7
  %v3223 = vsub.s32 %v2982, %v3222
  %v3224 = vrot.slane %v2685, %v3223
  %v3225 = vsel %vm2987, %v3224, %v3220
  %v3226 = vlaneseq
  %v3227 = vshrl.u32 %v3226, 7
  %v3228 = vsub.s32 %v2879, %v3227
  %v3229 = vrot.slane %v2688, %v3228
  %v3230 = vlaneseq
  %v3231 = vshrl.u32 %v3230, 7
  %v3232 = vsub.s32 %v2884, %v3231
  %v3233 = vrot.slane %v2691, %v3232
  %v3234 = vsel %vm2889, %v3233, %v3229
  %v3235 = vlaneseq
  %v3236 = vshrl.u32 %v3235, 7
  %v3237 = vsub.s32 %v2891, %v3236
  %v3238 = vrot.slane %v2694, %v3237
  %v3239 = vsel %vm2896, %v3238, %v3234
  %v3240 = vlaneseq
  %v3241 = vshrl.u32 %v3240, 7
  %v3242 = vsub.s32 %v2898, %v3241
  %v3243 = vrot.slane %v2697, %v3242
  %v3244 = vsel %vm2903, %v3243, %v3239
  %v3245 = vlaneseq
  %v3246 = vshrl.u32 %v3245, 7
  %v3247 = vsub.s32 %v2905, %v3246
  %v3248 = vrot.slane %v2700, %v3247
  %v3249 = vsel %vm2910, %v3248, %v3244
  %v3250 = vlaneseq
  %v3251 = vshrl.u32 %v3250, 7
  %v3252 = vsub.s32 %v2912, %v3251
  %v3253 = vrot.slane %v2703, %v3252
  %v3254 = vsel %vm2917, %v3253, %v3249
  %v3255 = vlaneseq
  %v3256 = vshrl.u32 %v3255, 7
  %v3257 = vsub.s32 %v2919, %v3256
  %v3258 = vrot.slane %v2706, %v3257
  %v3259 = vsel %vm2924, %v3258, %v3254
  %v3260 = vlaneseq
  %v3261 = vshrl.u32 %v3260, 7
  %v3262 = vsub.s32 %v2926, %v3261
  %v3263 = vrot.slane %v2709, %v3262
  %v3264 = vsel %vm2931, %v3263, %v3259
  %v3265 = vlaneseq
  %v3266 = vshrl.u32 %v3265, 7
  %v3267 = vsub.s32 %v2933, %v3266
  %v3268 = vrot.slane %v2712, %v3267
  %v3269 = vsel %vm2938, %v3268, %v3264
  %v3270 = vlaneseq
  %v3271 = vshrl.u32 %v3270, 7
  %v3272 = vsub.s32 %v2940, %v3271
  %v3273 = vrot.slane %v2715, %v3272
  %v3274 = vsel %vm2945, %v3273, %v3269
  %v3275 = vlaneseq
  %v3276 = vshrl.u32 %v3275, 7
  %v3277 = vsub.s32 %v2947, %v3276
  %v3278 = vrot.slane %v2718, %v3277
  %v3279 = vsel %vm2952, %v3278, %v3274
  %v3280 = vlaneseq
  %v3281 = vshrl.u32 %v3280, 7
  %v3282 = vsub.s32 %v2954, %v3281
  %v3283 = vrot.slane %v2721, %v3282
  %v3284 = vsel %vm2959, %v3283, %v3279
  %v3285 = vlaneseq
  %v3286 = vshrl.u32 %v3285, 7
  %v3287 = vsub.s32 %v2961, %v3286
  %v3288 = vrot.slane %v2724, %v3287
  %v3289 = vsel %vm2966, %v3288, %v3284
  %v3290 = vlaneseq
  %v3291 = vshrl.u32 %v3290, 7
  %v3292 = vsub.s32 %v2968, %v3291
  %v3293 = vrot.slane %v2727, %v3292
  %v3294 = vsel %vm2973, %v3293, %v3289
  %v3295 = vlaneseq
  %v3296 = vshrl.u32 %v3295, 7
  %v3297 = vsub.s32 %v2975, %v3296
  %v3298 = vrot.slane %v2730, %v3297
  %v3299 = vsel %vm2980, %v3298, %v3294
  %v3300 = vlaneseq
  %v3301 = vshrl.u32 %v3300, 7
  %v3302 = vsub.s32 %v2982, %v3301
  %v3303 = vrot.slane %v2733, %v3302
  %v3304 = vsel %vm2987, %v3303, %v3299
  %v3305 = vlaneseq
  %v3306 = vshrl.u32 %v3305, 7
  %v3307 = vsub.s32 %v2879, %v3306
  %v3308 = vrot.slane %v2736, %v3307
  %v3309 = vlaneseq
  %v3310 = vshrl.u32 %v3309, 7
  %v3311 = vsub.s32 %v2884, %v3310
  %v3312 = vrot.slane %v2739, %v3311
  %v3313 = vsel %vm2889, %v3312, %v3308
  %v3314 = vlaneseq
  %v3315 = vshrl.u32 %v3314, 7
  %v3316 = vsub.s32 %v2891, %v3315
  %v3317 = vrot.slane %v2742, %v3316
  %v3318 = vsel %vm2896, %v3317, %v3313
  %v3319 = vlaneseq
  %v3320 = vshrl.u32 %v3319, 7
  %v3321 = vsub.s32 %v2898, %v3320
  %v3322 = vrot.slane %v2745, %v3321
  %v3323 = vsel %vm2903, %v3322, %v3318
  %v3324 = vlaneseq
  %v3325 = vshrl.u32 %v3324, 7
  %v3326 = vsub.s32 %v2905, %v3325
  %v3327 = vrot.slane %v2748, %v3326
  %v3328 = vsel %vm2910, %v3327, %v3323
  %v3329 = vlaneseq
  %v3330 = vshrl.u32 %v3329, 7
  %v3331 = vsub.s32 %v2912, %v3330
  %v3332 = vrot.slane %v2751, %v3331
  %v3333 = vsel %vm2917, %v3332, %v3328
  %v3334 = vlaneseq
  %v3335 = vshrl.u32 %v3334, 7
  %v3336 = vsub.s32 %v2919, %v3335
  %v3337 = vrot.slane %v2754, %v3336
  %v3338 = vsel %vm2924, %v3337, %v3333
  %v3339 = vlaneseq
  %v3340 = vshrl.u32 %v3339, 7
  %v3341 = vsub.s32 %v2926, %v3340
  %v3342 = vrot.slane %v2757, %v3341
  %v3343 = vsel %vm2931, %v3342, %v3338
  %v3344 = vlaneseq
  %v3345 = vshrl.u32 %v3344, 7
  %v3346 = vsub.s32 %v2933, %v3345
  %v3347 = vrot.slane %v2760, %v3346
  %v3348 = vsel %vm2938, %v3347, %v3343
  %v3349 = vlaneseq
  %v3350 = vshrl.u32 %v3349, 7
  %v3351 = vsub.s32 %v2940, %v3350
  %v3352 = vrot.slane %v2763, %v3351
  %v3353 = vsel %vm2945, %v3352, %v3348
  %v3354 = vlaneseq
  %v3355 = vshrl.u32 %v3354, 7
  %v3356 = vsub.s32 %v2947, %v3355
  %v3357 = vrot.slane %v2766, %v3356
  %v3358 = vsel %vm2952, %v3357, %v3353
  %v3359 = vlaneseq
  %v3360 = vshrl.u32 %v3359, 7
  %v3361 = vsub.s32 %v2954, %v3360
  %v3362 = vrot.slane %v2769, %v3361
  %v3363 = vsel %vm2959, %v3362, %v3358
  %v3364 = vlaneseq
  %v3365 = vshrl.u32 %v3364, 7
  %v3366 = vsub.s32 %v2961, %v3365
  %v3367 = vrot.slane %v2772, %v3366
  %v3368 = vsel %vm2966, %v3367, %v3363
  %v3369 = vlaneseq
  %v3370 = vshrl.u32 %v3369, 7
  %v3371 = vsub.s32 %v2968, %v3370
  %v3372 = vrot.slane %v2775, %v3371
  %v3373 = vsel %vm2973, %v3372, %v3368
  %v3374 = vlaneseq
  %v3375 = vshrl.u32 %v3374, 7
  %v3376 = vsub.s32 %v2975, %v3375
  %v3377 = vrot.slane %v2778, %v3376
  %v3378 = vsel %vm2980, %v3377, %v3373
  %v3379 = vlaneseq
  %v3380 = vshrl.u32 %v3379, 7
  %v3381 = vsub.s32 %v2982, %v3380
  %v3382 = vrot.slane %v2781, %v3381
  %v3383 = vsel %vm2987, %v3382, %v3378
  %v3384 = vlaneseq
  %v3385 = vshrl.u32 %v3384, 7
  %v3386 = vsub.s32 %v2879, %v3385
  %v3387 = vrot.slane %v2784, %v3386
  %v3388 = vlaneseq
  %v3389 = vshrl.u32 %v3388, 7
  %v3390 = vsub.s32 %v2884, %v3389
  %v3391 = vrot.slane %v2787, %v3390
  %v3392 = vsel %vm2889, %v3391, %v3387
  %v3393 = vlaneseq
  %v3394 = vshrl.u32 %v3393, 7
  %v3395 = vsub.s32 %v2891, %v3394
  %v3396 = vrot.slane %v2790, %v3395
  %v3397 = vsel %vm2896, %v3396, %v3392
  %v3398 = vlaneseq
  %v3399 = vshrl.u32 %v3398, 7
  %v3400 = vsub.s32 %v2898, %v3399
  %v3401 = vrot.slane %v2793, %v3400
  %v3402 = vsel %vm2903, %v3401, %v3397
  %v3403 = vlaneseq
  %v3404 = vshrl.u32 %v3403, 7
  %v3405 = vsub.s32 %v2905, %v3404
  %v3406 = vrot.slane %v2796, %v3405
  %v3407 = vsel %vm2910, %v3406, %v3402
  %v3408 = vlaneseq
  %v3409 = vshrl.u32 %v3408, 7
  %v3410 = vsub.s32 %v2912, %v3409
  %v3411 = vrot.slane %v2799, %v3410
  %v3412 = vsel %vm2917, %v3411, %v3407
  %v3413 = vlaneseq
  %v3414 = vshrl.u32 %v3413, 7
  %v3415 = vsub.s32 %v2919, %v3414
  %v3416 = vrot.slane %v2802, %v3415
  %v3417 = vsel %vm2924, %v3416, %v3412
  %v3418 = vlaneseq
  %v3419 = vshrl.u32 %v3418, 7
  %v3420 = vsub.s32 %v2926, %v3419
  %v3421 = vrot.slane %v2805, %v3420
  %v3422 = vsel %vm2931, %v3421, %v3417
  %v3423 = vlaneseq
  %v3424 = vshrl.u32 %v3423, 7
  %v3425 = vsub.s32 %v2933, %v3424
  %v3426 = vrot.slane %v2808, %v3425
  %v3427 = vsel %vm2938, %v3426, %v3422
  %v3428 = vlaneseq
  %v3429 = vshrl.u32 %v3428, 7
  %v3430 = vsub.s32 %v2940, %v3429
  %v3431 = vrot.slane %v2811, %v3430
  %v3432 = vsel %vm2945, %v3431, %v3427
  %v3433 = vlaneseq
  %v3434 = vshrl.u32 %v3433, 7
  %v3435 = vsub.s32 %v2947, %v3434
  %v3436 = vrot.slane %v2814, %v3435
  %v3437 = vsel %vm2952, %v3436, %v3432
  %v3438 = vlaneseq
  %v3439 = vshrl.u32 %v3438, 7
  %v3440 = vsub.s32 %v2954, %v3439
  %v3441 = vrot.slane %v2817, %v3440
  %v3442 = vsel %vm2959, %v3441, %v3437
  %v3443 = vlaneseq
  %v3444 = vshrl.u32 %v3443, 7
  %v3445 = vsub.s32 %v2961, %v3444
  %v3446 = vrot.slane %v2820, %v3445
  %v3447 = vsel %vm2966, %v3446, %v3442
  %v3448 = vlaneseq
  %v3449 = vshrl.u32 %v3448, 7
  %v3450 = vsub.s32 %v2968, %v3449
  %v3451 = vrot.slane %v2823, %v3450
  %v3452 = vsel %vm2973, %v3451, %v3447
  %v3453 = vlaneseq
  %v3454 = vshrl.u32 %v3453, 7
  %v3455 = vsub.s32 %v2975, %v3454
  %v3456 = vrot.slane %v2826, %v3455
  %v3457 = vsel %vm2980, %v3456, %v3452
  %v3458 = vlaneseq
  %v3459 = vshrl.u32 %v3458, 7
  %v3460 = vsub.s32 %v2982, %v3459
  %v3461 = vrot.slane %v2829, %v3460
  %v3462 = vsel %vm2987, %v3461, %v3457
  %v3463 = vlaneseq
  %v3464 = vshrl.u32 %v3463, 7
  %v3465 = vsub.s32 %v2879, %v3464
  %v3466 = vrot.slane %v2832, %v3465
  %v3467 = vlaneseq
  %v3468 = vshrl.u32 %v3467, 7
  %v3469 = vsub.s32 %v2884, %v3468
  %v3470 = vrot.slane %v2835, %v3469
  %v3471 = vsel %vm2889, %v3470, %v3466
  %v3472 = vlaneseq
  %v3473 = vshrl.u32 %v3472, 7
  %v3474 = vsub.s32 %v2891, %v3473
  %v3475 = vrot.slane %v2838, %v3474
  %v3476 = vsel %vm2896, %v3475, %v3471
  %v3477 = vlaneseq
  %v3478 = vshrl.u32 %v3477, 7
  %v3479 = vsub.s32 %v2898, %v3478
  %v3480 = vrot.slane %v2841, %v3479
  %v3481 = vsel %vm2903, %v3480, %v3476
  %v3482 = vlaneseq
  %v3483 = vshrl.u32 %v3482, 7
  %v3484 = vsub.s32 %v2905, %v3483
  %v3485 = vrot.slane %v2844, %v3484
  %v3486 = vsel %vm2910, %v3485, %v3481
  %v3487 = vlaneseq
  %v3488 = vshrl.u32 %v3487, 7
  %v3489 = vsub.s32 %v2912, %v3488
  %v3490 = vrot.slane %v2847, %v3489
  %v3491 = vsel %vm2917, %v3490, %v3486
  %v3492 = vlaneseq
  %v3493 = vshrl.u32 %v3492, 7
  %v3494 = vsub.s32 %v2919, %v3493
  %v3495 = vrot.slane %v2850, %v3494
  %v3496 = vsel %vm2924, %v3495, %v3491
  %v3497 = vlaneseq
  %v3498 = vshrl.u32 %v3497, 7
  %v3499 = vsub.s32 %v2926, %v3498
  %v3500 = vrot.slane %v2853, %v3499
  %v3501 = vsel %vm2931, %v3500, %v3496
  %v3502 = vlaneseq
  %v3503 = vshrl.u32 %v3502, 7
  %v3504 = vsub.s32 %v2933, %v3503
  %v3505 = vrot.slane %v2856, %v3504
  %v3506 = vsel %vm2938, %v3505, %v3501
  %v3507 = vlaneseq
  %v3508 = vshrl.u32 %v3507, 7
  %v3509 = vsub.s32 %v2940, %v3508
  %v3510 = vrot.slane %v2859, %v3509
  %v3511 = vsel %vm2945, %v3510, %v3506
  %v3512 = vlaneseq
  %v3513 = vshrl.u32 %v3512, 7
  %v3514 = vsub.s32 %v2947, %v3513
  %v3515 = vrot.slane %v2862, %v3514
  %v3516 = vsel %vm2952, %v3515, %v3511
  %v3517 = vlaneseq
  %v3518 = vshrl.u32 %v3517, 7
  %v3519 = vsub.s32 %v2954, %v3518
  %v3520 = vrot.slane %v2865, %v3519
  %v3521 = vsel %vm2959, %v3520, %v3516
  %v3522 = vlaneseq
  %v3523 = vshrl.u32 %v3522, 7
  %v3524 = vsub.s32 %v2961, %v3523
  %v3525 = vrot.slane %v2868, %v3524
  %v3526 = vsel %vm2966, %v3525, %v3521
  %v3527 = vlaneseq
  %v3528 = vshrl.u32 %v3527, 7
  %v3529 = vsub.s32 %v2968, %v3528
  %v3530 = vrot.slane %v2871, %v3529
  %v3531 = vsel %vm2973, %v3530, %v3526
  %v3532 = vlaneseq
  %v3533 = vshrl.u32 %v3532, 7
  %v3534 = vsub.s32 %v2975, %v3533
  %v3535 = vrot.slane %v2874, %v3534
  %v3536 = vsel %vm2980, %v3535, %v3531
  %v3537 = vlaneseq
  %v3538 = vshrl.u32 %v3537, 7
  %v3539 = vsub.s32 %v2982, %v3538
  %v3540 = vrot.slane %v2877, %v3539
  %v3541 = vsel %vm2987, %v3540, %v3536
  %vm3542 = vcmask 1041409
  %v3543 = vsel %vm3542, %v3067, %v2988
  %vm3544 = vcmask 1042434
  %v3545 = vsel %vm3544, %v3146, %v3543
  %vm3546 = vcmask 1043459
  %v3547 = vsel %vm3546, %v3225, %v3545
  %vm3548 = vcmask 1044484
  %v3549 = vsel %vm3548, %v3304, %v3547
  %vm3550 = vcmask 1045509
  %v3551 = vsel %vm3550, %v3383, %v3549
  %vm3552 = vcmask 1046534
  %v3553 = vsel %vm3552, %v3462, %v3551
  %vm3554 = vcmask 1047559
  %v3555 = vsel %vm3554, %v3541, %v3553
  %v3557 = vadd.f32 %v1566, %v3555
  %vm3558 = vcmp.gt.f32.partialorder %v3557, 1.0
  %v3559 = vsel %vm3558, %v1568, 0.0
  %v3560 = vsub.f32 %v1568, %v3559
  %v3562 = vlaneseq
  %v3563 = vshrl.u32 %v3562, 7
  %v3564 = vsub.s32 0, %v3563
  %v3565 = vrot.slane %v3560, %v3564
  %3567 = vbcast.lane.b32.xlu0 %v3565, 256
  %v3568 = vpop.permute.xlu0 %3567
  %s3570 = sor.u32 256, 8
  %3571 = vbcast.lane.b32.xlu0 %v3565, %s3570
  %v3572 = vpop.permute.xlu0 %3571
  %s3574 = sor.u32 256, 16
  %3575 = vbcast.lane.b32.xlu0 %v3565, %s3574
  %v3576 = vpop.permute.xlu0 %3575
  %s3578 = sor.u32 256, 24
  %3579 = vbcast.lane.b32.xlu0 %v3565, %s3578
  %v3580 = vpop.permute.xlu0 %3579
  %s3582 = sor.u32 256, 32
  %3583 = vbcast.lane.b32.xlu0 %v3565, %s3582
  %v3584 = vpop.permute.xlu0 %3583
  %s3586 = sor.u32 256, 40
  %3587 = vbcast.lane.b32.xlu0 %v3565, %s3586
  %v3588 = vpop.permute.xlu0 %3587
  %s3590 = sor.u32 256, 48
  %3591 = vbcast.lane.b32.xlu0 %v3565, %s3590
  %v3592 = vpop.permute.xlu0 %3591
  %s3594 = sor.u32 256, 56
  %3595 = vbcast.lane.b32.xlu0 %v3565, %s3594
  %v3596 = vpop.permute.xlu0 %3595
  %s3598 = sor.u32 256, 64
  %3599 = vbcast.lane.b32.xlu0 %v3565, %s3598
  %v3600 = vpop.permute.xlu0 %3599
  %s3602 = sor.u32 256, 72
  %3603 = vbcast.lane.b32.xlu0 %v3565, %s3602
  %v3604 = vpop.permute.xlu0 %3603
  %s3606 = sor.u32 256, 80
  %3607 = vbcast.lane.b32.xlu0 %v3565, %s3606
  %v3608 = vpop.permute.xlu0 %3607
  %s3610 = sor.u32 256, 88
  %3611 = vbcast.lane.b32.xlu0 %v3565, %s3610
  %v3612 = vpop.permute.xlu0 %3611
  %s3614 = sor.u32 256, 96
  %3615 = vbcast.lane.b32.xlu0 %v3565, %s3614
  %v3616 = vpop.permute.xlu0 %3615
  %s3618 = sor.u32 256, 104
  %3619 = vbcast.lane.b32.xlu0 %v3565, %s3618
  %v3620 = vpop.permute.xlu0 %3619
  %s3622 = sor.u32 256, 112
  %3623 = vbcast.lane.b32.xlu0 %v3565, %s3622
  %v3624 = vpop.permute.xlu0 %3623
  %s3626 = sor.u32 256, 120
  %3627 = vbcast.lane.b32.xlu0 %v3565, %s3626
  %v3628 = vpop.permute.xlu0 %3627
  %v3629 = vlaneseq
  %v3630 = vshrl.u32 %v3629, 7
  %v3631 = vsub.s32 1, %v3630
  %v3632 = vrot.slane %v3560, %v3631
  %3634 = vbcast.lane.b32.xlu0 %v3632, 256
  %v3635 = vpop.permute.xlu0 %3634
  %s3637 = sor.u32 256, 8
  %3638 = vbcast.lane.b32.xlu0 %v3632, %s3637
  %v3639 = vpop.permute.xlu0 %3638
  %s3641 = sor.u32 256, 16
  %3642 = vbcast.lane.b32.xlu0 %v3632, %s3641
  %v3643 = vpop.permute.xlu0 %3642
  %s3645 = sor.u32 256, 24
  %3646 = vbcast.lane.b32.xlu0 %v3632, %s3645
  %v3647 = vpop.permute.xlu0 %3646
  %s3649 = sor.u32 256, 32
  %3650 = vbcast.lane.b32.xlu0 %v3632, %s3649
  %v3651 = vpop.permute.xlu0 %3650
  %s3653 = sor.u32 256, 40
  %3654 = vbcast.lane.b32.xlu0 %v3632, %s3653
  %v3655 = vpop.permute.xlu0 %3654
  %s3657 = sor.u32 256, 48
  %3658 = vbcast.lane.b32.xlu0 %v3632, %s3657
  %v3659 = vpop.permute.xlu0 %3658
  %s3661 = sor.u32 256, 56
  %3662 = vbcast.lane.b32.xlu0 %v3632, %s3661
  %v3663 = vpop.permute.xlu0 %3662
  %s3665 = sor.u32 256, 64
  %3666 = vbcast.lane.b32.xlu0 %v3632, %s3665
  %v3667 = vpop.permute.xlu0 %3666
  %s3669 = sor.u32 256, 72
  %3670 = vbcast.lane.b32.xlu0 %v3632, %s3669
  %v3671 = vpop.permute.xlu0 %3670
  %s3673 = sor.u32 256, 80
  %3674 = vbcast.lane.b32.xlu0 %v3632, %s3673
  %v3675 = vpop.permute.xlu0 %3674
  %s3677 = sor.u32 256, 88
  %3678 = vbcast.lane.b32.xlu0 %v3632, %s3677
  %v3679 = vpop.permute.xlu0 %3678
  %s3681 = sor.u32 256, 96
  %3682 = vbcast.lane.b32.xlu0 %v3632, %s3681
  %v3683 = vpop.permute.xlu0 %3682
  %s3685 = sor.u32 256, 104
  %3686 = vbcast.lane.b32.xlu0 %v3632, %s3685
  %v3687 = vpop.permute.xlu0 %3686
  %s3689 = sor.u32 256, 112
  %3690 = vbcast.lane.b32.xlu0 %v3632, %s3689
  %v3691 = vpop.permute.xlu0 %3690
  %s3693 = sor.u32 256, 120
  %3694 = vbcast.lane.b32.xlu0 %v3632, %s3693
  %v3695 = vpop.permute.xlu0 %3694
  %v3696 = vlaneseq
  %v3697 = vshrl.u32 %v3696, 7
  %v3698 = vsub.s32 2, %v3697
  %v3699 = vrot.slane %v3560, %v3698
  %3701 = vbcast.lane.b32.xlu0 %v3699, 256
  %v3702 = vpop.permute.xlu0 %3701
  %s3704 = sor.u32 256, 8
  %3705 = vbcast.lane.b32.xlu0 %v3699, %s3704
  %v3706 = vpop.permute.xlu0 %3705
  %s3708 = sor.u32 256, 16
  %3709 = vbcast.lane.b32.xlu0 %v3699, %s3708
  %v3710 = vpop.permute.xlu0 %3709
  %s3712 = sor.u32 256, 24
  %3713 = vbcast.lane.b32.xlu0 %v3699, %s3712
  %v3714 = vpop.permute.xlu0 %3713
  %s3716 = sor.u32 256, 32
  %3717 = vbcast.lane.b32.xlu0 %v3699, %s3716
  %v3718 = vpop.permute.xlu0 %3717
  %s3720 = sor.u32 256, 40
  %3721 = vbcast.lane.b32.xlu0 %v3699, %s3720
  %v3722 = vpop.permute.xlu0 %3721
  %s3724 = sor.u32 256, 48
  %3725 = vbcast.lane.b32.xlu0 %v3699, %s3724
  %v3726 = vpop.permute.xlu0 %3725
  %s3728 = sor.u32 256, 56
  %3729 = vbcast.lane.b32.xlu0 %v3699, %s3728
  %v3730 = vpop.permute.xlu0 %3729
  %s3732 = sor.u32 256, 64
  %3733 = vbcast.lane.b32.xlu0 %v3699, %s3732
  %v3734 = vpop.permute.xlu0 %3733
  %s3736 = sor.u32 256, 72
  %3737 = vbcast.lane.b32.xlu0 %v3699, %s3736
  %v3738 = vpop.permute.xlu0 %3737
  %s3740 = sor.u32 256, 80
  %3741 = vbcast.lane.b32.xlu0 %v3699, %s3740
  %v3742 = vpop.permute.xlu0 %3741
  %s3744 = sor.u32 256, 88
  %3745 = vbcast.lane.b32.xlu0 %v3699, %s3744
  %v3746 = vpop.permute.xlu0 %3745
  %s3748 = sor.u32 256, 96
  %3749 = vbcast.lane.b32.xlu0 %v3699, %s3748
  %v3750 = vpop.permute.xlu0 %3749
  %s3752 = sor.u32 256, 104
  %3753 = vbcast.lane.b32.xlu0 %v3699, %s3752
  %v3754 = vpop.permute.xlu0 %3753
  %s3756 = sor.u32 256, 112
  %3757 = vbcast.lane.b32.xlu0 %v3699, %s3756
  %v3758 = vpop.permute.xlu0 %3757
  %s3760 = sor.u32 256, 120
  %3761 = vbcast.lane.b32.xlu0 %v3699, %s3760
  %v3762 = vpop.permute.xlu0 %3761
  %v3763 = vlaneseq
  %v3764 = vshrl.u32 %v3763, 7
  %v3765 = vsub.s32 3, %v3764
  %v3766 = vrot.slane %v3560, %v3765
  %3768 = vbcast.lane.b32.xlu0 %v3766, 256
  %v3769 = vpop.permute.xlu0 %3768
  %s3771 = sor.u32 256, 8
  %3772 = vbcast.lane.b32.xlu0 %v3766, %s3771
  %v3773 = vpop.permute.xlu0 %3772
  %s3775 = sor.u32 256, 16
  %3776 = vbcast.lane.b32.xlu0 %v3766, %s3775
  %v3777 = vpop.permute.xlu0 %3776
  %s3779 = sor.u32 256, 24
  %3780 = vbcast.lane.b32.xlu0 %v3766, %s3779
  %v3781 = vpop.permute.xlu0 %3780
  %s3783 = sor.u32 256, 32
  %3784 = vbcast.lane.b32.xlu0 %v3766, %s3783
  %v3785 = vpop.permute.xlu0 %3784
  %s3787 = sor.u32 256, 40
  %3788 = vbcast.lane.b32.xlu0 %v3766, %s3787
  %v3789 = vpop.permute.xlu0 %3788
  %s3791 = sor.u32 256, 48
  %3792 = vbcast.lane.b32.xlu0 %v3766, %s3791
  %v3793 = vpop.permute.xlu0 %3792
  %s3795 = sor.u32 256, 56
  %3796 = vbcast.lane.b32.xlu0 %v3766, %s3795
  %v3797 = vpop.permute.xlu0 %3796
  %s3799 = sor.u32 256, 64
  %3800 = vbcast.lane.b32.xlu0 %v3766, %s3799
  %v3801 = vpop.permute.xlu0 %3800
  %s3803 = sor.u32 256, 72
  %3804 = vbcast.lane.b32.xlu0 %v3766, %s3803
  %v3805 = vpop.permute.xlu0 %3804
  %s3807 = sor.u32 256, 80
  %3808 = vbcast.lane.b32.xlu0 %v3766, %s3807
  %v3809 = vpop.permute.xlu0 %3808
  %s3811 = sor.u32 256, 88
  %3812 = vbcast.lane.b32.xlu0 %v3766, %s3811
  %v3813 = vpop.permute.xlu0 %3812
  %s3815 = sor.u32 256, 96
  %3816 = vbcast.lane.b32.xlu0 %v3766, %s3815
  %v3817 = vpop.permute.xlu0 %3816
  %s3819 = sor.u32 256, 104
  %3820 = vbcast.lane.b32.xlu0 %v3766, %s3819
  %v3821 = vpop.permute.xlu0 %3820
  %s3823 = sor.u32 256, 112
  %3824 = vbcast.lane.b32.xlu0 %v3766, %s3823
  %v3825 = vpop.permute.xlu0 %3824
  %s3827 = sor.u32 256, 120
  %3828 = vbcast.lane.b32.xlu0 %v3766, %s3827
  %v3829 = vpop.permute.xlu0 %3828
  %v3830 = vlaneseq
  %v3831 = vshrl.u32 %v3830, 7
  %v3832 = vsub.s32 4, %v3831
  %v3833 = vrot.slane %v3560, %v3832
  %3835 = vbcast.lane.b32.xlu0 %v3833, 256
  %v3836 = vpop.permute.xlu0 %3835
  %s3838 = sor.u32 256, 8
  %3839 = vbcast.lane.b32.xlu0 %v3833, %s3838
  %v3840 = vpop.permute.xlu0 %3839
  %s3842 = sor.u32 256, 16
  %3843 = vbcast.lane.b32.xlu0 %v3833, %s3842
  %v3844 = vpop.permute.xlu0 %3843
  %s3846 = sor.u32 256, 24
  %3847 = vbcast.lane.b32.xlu0 %v3833, %s3846
  %v3848 = vpop.permute.xlu0 %3847
  %s3850 = sor.u32 256, 32
  %3851 = vbcast.lane.b32.xlu0 %v3833, %s3850
  %v3852 = vpop.permute.xlu0 %3851
  %s3854 = sor.u32 256, 40
  %3855 = vbcast.lane.b32.xlu0 %v3833, %s3854
  %v3856 = vpop.permute.xlu0 %3855
  %s3858 = sor.u32 256, 48
  %3859 = vbcast.lane.b32.xlu0 %v3833, %s3858
  %v3860 = vpop.permute.xlu0 %3859
  %s3862 = sor.u32 256, 56
  %3863 = vbcast.lane.b32.xlu0 %v3833, %s3862
  %v3864 = vpop.permute.xlu0 %3863
  %s3866 = sor.u32 256, 64
  %3867 = vbcast.lane.b32.xlu0 %v3833, %s3866
  %v3868 = vpop.permute.xlu0 %3867
  %s3870 = sor.u32 256, 72
  %3871 = vbcast.lane.b32.xlu0 %v3833, %s3870
  %v3872 = vpop.permute.xlu0 %3871
  %s3874 = sor.u32 256, 80
  %3875 = vbcast.lane.b32.xlu0 %v3833, %s3874
  %v3876 = vpop.permute.xlu0 %3875
  %s3878 = sor.u32 256, 88
  %3879 = vbcast.lane.b32.xlu0 %v3833, %s3878
  %v3880 = vpop.permute.xlu0 %3879
  %s3882 = sor.u32 256, 96
  %3883 = vbcast.lane.b32.xlu0 %v3833, %s3882
  %v3884 = vpop.permute.xlu0 %3883
  %s3886 = sor.u32 256, 104
  %3887 = vbcast.lane.b32.xlu0 %v3833, %s3886
  %v3888 = vpop.permute.xlu0 %3887
  %s3890 = sor.u32 256, 112
  %3891 = vbcast.lane.b32.xlu0 %v3833, %s3890
  %v3892 = vpop.permute.xlu0 %3891
  %s3894 = sor.u32 256, 120
  %3895 = vbcast.lane.b32.xlu0 %v3833, %s3894
  %v3896 = vpop.permute.xlu0 %3895
  %v3897 = vlaneseq
  %v3898 = vshrl.u32 %v3897, 7
  %v3899 = vsub.s32 5, %v3898
  %v3900 = vrot.slane %v3560, %v3899
  %3902 = vbcast.lane.b32.xlu0 %v3900, 256
  %v3903 = vpop.permute.xlu0 %3902
  %s3905 = sor.u32 256, 8
  %3906 = vbcast.lane.b32.xlu0 %v3900, %s3905
  %v3907 = vpop.permute.xlu0 %3906
  %s3909 = sor.u32 256, 16
  %3910 = vbcast.lane.b32.xlu0 %v3900, %s3909
  %v3911 = vpop.permute.xlu0 %3910
  %s3913 = sor.u32 256, 24
  %3914 = vbcast.lane.b32.xlu0 %v3900, %s3913
  %v3915 = vpop.permute.xlu0 %3914
  %s3917 = sor.u32 256, 32
  %3918 = vbcast.lane.b32.xlu0 %v3900, %s3917
  %v3919 = vpop.permute.xlu0 %3918
  %s3921 = sor.u32 256, 40
  %3922 = vbcast.lane.b32.xlu0 %v3900, %s3921
  %v3923 = vpop.permute.xlu0 %3922
  %s3925 = sor.u32 256, 48
  %3926 = vbcast.lane.b32.xlu0 %v3900, %s3925
  %v3927 = vpop.permute.xlu0 %3926
  %s3929 = sor.u32 256, 56
  %3930 = vbcast.lane.b32.xlu0 %v3900, %s3929
  %v3931 = vpop.permute.xlu0 %3930
  %s3933 = sor.u32 256, 64
  %3934 = vbcast.lane.b32.xlu0 %v3900, %s3933
  %v3935 = vpop.permute.xlu0 %3934
  %s3937 = sor.u32 256, 72
  %3938 = vbcast.lane.b32.xlu0 %v3900, %s3937
  %v3939 = vpop.permute.xlu0 %3938
  %s3941 = sor.u32 256, 80
  %3942 = vbcast.lane.b32.xlu0 %v3900, %s3941
  %v3943 = vpop.permute.xlu0 %3942
  %s3945 = sor.u32 256, 88
  %3946 = vbcast.lane.b32.xlu0 %v3900, %s3945
  %v3947 = vpop.permute.xlu0 %3946
  %s3949 = sor.u32 256, 96
  %3950 = vbcast.lane.b32.xlu0 %v3900, %s3949
  %v3951 = vpop.permute.xlu0 %3950
  %s3953 = sor.u32 256, 104
  %3954 = vbcast.lane.b32.xlu0 %v3900, %s3953
  %v3955 = vpop.permute.xlu0 %3954
  %s3957 = sor.u32 256, 112
  %3958 = vbcast.lane.b32.xlu0 %v3900, %s3957
  %v3959 = vpop.permute.xlu0 %3958
  %s3961 = sor.u32 256, 120
  %3962 = vbcast.lane.b32.xlu0 %v3900, %s3961
  %v3963 = vpop.permute.xlu0 %3962
  %v3964 = vlaneseq
  %v3965 = vshrl.u32 %v3964, 7
  %v3966 = vsub.s32 6, %v3965
  %v3967 = vrot.slane %v3560, %v3966
  %3969 = vbcast.lane.b32.xlu0 %v3967, 256
  %v3970 = vpop.permute.xlu0 %3969
  %s3972 = sor.u32 256, 8
  %3973 = vbcast.lane.b32.xlu0 %v3967, %s3972
  %v3974 = vpop.permute.xlu0 %3973
  %s3976 = sor.u32 256, 16
  %3977 = vbcast.lane.b32.xlu0 %v3967, %s3976
  %v3978 = vpop.permute.xlu0 %3977
  %s3980 = sor.u32 256, 24
  %3981 = vbcast.lane.b32.xlu0 %v3967, %s3980
  %v3982 = vpop.permute.xlu0 %3981
  %s3984 = sor.u32 256, 32
  %3985 = vbcast.lane.b32.xlu0 %v3967, %s3984
  %v3986 = vpop.permute.xlu0 %3985
  %s3988 = sor.u32 256, 40
  %3989 = vbcast.lane.b32.xlu0 %v3967, %s3988
  %v3990 = vpop.permute.xlu0 %3989
  %s3992 = sor.u32 256, 48
  %3993 = vbcast.lane.b32.xlu0 %v3967, %s3992
  %v3994 = vpop.permute.xlu0 %3993
  %s3996 = sor.u32 256, 56
  %3997 = vbcast.lane.b32.xlu0 %v3967, %s3996
  %v3998 = vpop.permute.xlu0 %3997
  %s4000 = sor.u32 256, 64
  %4001 = vbcast.lane.b32.xlu0 %v3967, %s4000
  %v4002 = vpop.permute.xlu0 %4001
  %s4004 = sor.u32 256, 72
  %4005 = vbcast.lane.b32.xlu0 %v3967, %s4004
  %v4006 = vpop.permute.xlu0 %4005
  %s4008 = sor.u32 256, 80
  %4009 = vbcast.lane.b32.xlu0 %v3967, %s4008
  %v4010 = vpop.permute.xlu0 %4009
  %s4012 = sor.u32 256, 88
  %4013 = vbcast.lane.b32.xlu0 %v3967, %s4012
  %v4014 = vpop.permute.xlu0 %4013
  %s4016 = sor.u32 256, 96
  %4017 = vbcast.lane.b32.xlu0 %v3967, %s4016
  %v4018 = vpop.permute.xlu0 %4017
  %s4020 = sor.u32 256, 104
  %4021 = vbcast.lane.b32.xlu0 %v3967, %s4020
  %v4022 = vpop.permute.xlu0 %4021
  %s4024 = sor.u32 256, 112
  %4025 = vbcast.lane.b32.xlu0 %v3967, %s4024
  %v4026 = vpop.permute.xlu0 %4025
  %s4028 = sor.u32 256, 120
  %4029 = vbcast.lane.b32.xlu0 %v3967, %s4028
  %v4030 = vpop.permute.xlu0 %4029
  %v4031 = vlaneseq
  %v4032 = vshrl.u32 %v4031, 7
  %v4033 = vsub.s32 7, %v4032
  %v4034 = vrot.slane %v3560, %v4033
  %4036 = vbcast.lane.b32.xlu0 %v4034, 256
  %v4037 = vpop.permute.xlu0 %4036
  %s4039 = sor.u32 256, 8
  %4040 = vbcast.lane.b32.xlu0 %v4034, %s4039
  %v4041 = vpop.permute.xlu0 %4040
  %s4043 = sor.u32 256, 16
  %4044 = vbcast.lane.b32.xlu0 %v4034, %s4043
  %v4045 = vpop.permute.xlu0 %4044
  %s4047 = sor.u32 256, 24
  %4048 = vbcast.lane.b32.xlu0 %v4034, %s4047
  %v4049 = vpop.permute.xlu0 %4048
  %s4051 = sor.u32 256, 32
  %4052 = vbcast.lane.b32.xlu0 %v4034, %s4051
  %v4053 = vpop.permute.xlu0 %4052
  %s4055 = sor.u32 256, 40
  %4056 = vbcast.lane.b32.xlu0 %v4034, %s4055
  %v4057 = vpop.permute.xlu0 %4056
  %s4059 = sor.u32 256, 48
  %4060 = vbcast.lane.b32.xlu0 %v4034, %s4059
  %v4061 = vpop.permute.xlu0 %4060
  %s4063 = sor.u32 256, 56
  %4064 = vbcast.lane.b32.xlu0 %v4034, %s4063
  %v4065 = vpop.permute.xlu0 %4064
  %s4067 = sor.u32 256, 64
  %4068 = vbcast.lane.b32.xlu0 %v4034, %s4067
  %v4069 = vpop.permute.xlu0 %4068
  %s4071 = sor.u32 256, 72
  %4072 = vbcast.lane.b32.xlu0 %v4034, %s4071
  %v4073 = vpop.permute.xlu0 %4072
  %s4075 = sor.u32 256, 80
  %4076 = vbcast.lane.b32.xlu0 %v4034, %s4075
  %v4077 = vpop.permute.xlu0 %4076
  %s4079 = sor.u32 256, 88
  %4080 = vbcast.lane.b32.xlu0 %v4034, %s4079
  %v4081 = vpop.permute.xlu0 %4080
  %s4083 = sor.u32 256, 96
  %4084 = vbcast.lane.b32.xlu0 %v4034, %s4083
  %v4085 = vpop.permute.xlu0 %4084
  %s4087 = sor.u32 256, 104
  %4088 = vbcast.lane.b32.xlu0 %v4034, %s4087
  %v4089 = vpop.permute.xlu0 %4088
  %s4091 = sor.u32 256, 112
  %4092 = vbcast.lane.b32.xlu0 %v4034, %s4091
  %v4093 = vpop.permute.xlu0 %4092
  %s4095 = sor.u32 256, 120
  %4096 = vbcast.lane.b32.xlu0 %v4034, %s4095
  %v4097 = vpop.permute.xlu0 %4096
  %v4226 = vmul.f32 %v1311, %v3568
  %v4227 = vmul.f32 %v1313, %v3572
  %v4228 = vmul.f32 %v1315, %v3576
  %v4229 = vmul.f32 %v1317, %v3580
  %v4230 = vmul.f32 %v1319, %v3584
  %v4231 = vmul.f32 %v1321, %v3588
  %v4232 = vmul.f32 %v1323, %v3592
  %v4233 = vmul.f32 %v1325, %v3596
  %v4234 = vmul.f32 %v1327, %v3600
  %v4235 = vmul.f32 %v1329, %v3604
  %v4236 = vmul.f32 %v1331, %v3608
  %v4237 = vmul.f32 %v1333, %v3612
  %v4238 = vmul.f32 %v1335, %v3616
  %v4239 = vmul.f32 %v1337, %v3620
  %v4240 = vmul.f32 %v1339, %v3624
  %v4241 = vmul.f32 %v1341, %v3628
  %v4242 = vmul.f32 %v1343, %v3635
  %v4243 = vmul.f32 %v1345, %v3639
  %v4244 = vmul.f32 %v1347, %v3643
  %v4245 = vmul.f32 %v1349, %v3647
  %v4246 = vmul.f32 %v1351, %v3651
  %v4247 = vmul.f32 %v1353, %v3655
  %v4248 = vmul.f32 %v1355, %v3659
  %v4249 = vmul.f32 %v1357, %v3663
  %v4250 = vmul.f32 %v1359, %v3667
  %v4251 = vmul.f32 %v1361, %v3671
  %v4252 = vmul.f32 %v1363, %v3675
  %v4253 = vmul.f32 %v1365, %v3679
  %v4254 = vmul.f32 %v1367, %v3683
  %v4255 = vmul.f32 %v1369, %v3687
  %v4256 = vmul.f32 %v1371, %v3691
  %v4257 = vmul.f32 %v1373, %v3695
  %v4258 = vmul.f32 %v1375, %v3702
  %v4259 = vmul.f32 %v1377, %v3706
  %v4260 = vmul.f32 %v1379, %v3710
  %v4261 = vmul.f32 %v1381, %v3714
  %v4262 = vmul.f32 %v1383, %v3718
  %v4263 = vmul.f32 %v1385, %v3722
  %v4264 = vmul.f32 %v1387, %v3726
  %v4265 = vmul.f32 %v1389, %v3730
  %v4266 = vmul.f32 %v1391, %v3734
  %v4267 = vmul.f32 %v1393, %v3738
  %v4268 = vmul.f32 %v1395, %v3742
  %v4269 = vmul.f32 %v1397, %v3746
  %v4270 = vmul.f32 %v1399, %v3750
  %v4271 = vmul.f32 %v1401, %v3754
  %v4272 = vmul.f32 %v1403, %v3758
  %v4273 = vmul.f32 %v1405, %v3762
  %v4274 = vmul.f32 %v1407, %v3769
  %v4275 = vmul.f32 %v1409, %v3773
  %v4276 = vmul.f32 %v1411, %v3777
  %v4277 = vmul.f32 %v1413, %v3781
  %v4278 = vmul.f32 %v1415, %v3785
  %v4279 = vmul.f32 %v1417, %v3789
  %v4280 = vmul.f32 %v1419, %v3793
  %v4281 = vmul.f32 %v1421, %v3797
  %v4282 = vmul.f32 %v1423, %v3801
  %v4283 = vmul.f32 %v1425, %v3805
  %v4284 = vmul.f32 %v1427, %v3809
  %v4285 = vmul.f32 %v1429, %v3813
  %v4286 = vmul.f32 %v1431, %v3817
  %v4287 = vmul.f32 %v1433, %v3821
  %v4288 = vmul.f32 %v1435, %v3825
  %v4289 = vmul.f32 %v1437, %v3829
  %v4290 = vmul.f32 %v1439, %v3836
  %v4291 = vmul.f32 %v1441, %v3840
  %v4292 = vmul.f32 %v1443, %v3844
  %v4293 = vmul.f32 %v1445, %v3848
  %v4294 = vmul.f32 %v1447, %v3852
  %v4295 = vmul.f32 %v1449, %v3856
  %v4296 = vmul.f32 %v1451, %v3860
  %v4297 = vmul.f32 %v1453, %v3864
  %v4298 = vmul.f32 %v1455, %v3868
  %v4299 = vmul.f32 %v1457, %v3872
  %v4300 = vmul.f32 %v1459, %v3876
  %v4301 = vmul.f32 %v1461, %v3880
  %v4302 = vmul.f32 %v1463, %v3884
  %v4303 = vmul.f32 %v1465, %v3888
  %v4304 = vmul.f32 %v1467, %v3892
  %v4305 = vmul.f32 %v1469, %v3896
  %v4306 = vmul.f32 %v1471, %v3903
  %v4307 = vmul.f32 %v1473, %v3907
  %v4308 = vmul.f32 %v1475, %v3911
  %v4309 = vmul.f32 %v1477, %v3915
  %v4310 = vmul.f32 %v1479, %v3919
  %v4311 = vmul.f32 %v1481, %v3923
  %v4312 = vmul.f32 %v1483, %v3927
  %v4313 = vmul.f32 %v1485, %v3931
  %v4314 = vmul.f32 %v1487, %v3935
  %v4315 = vmul.f32 %v1489, %v3939
  %v4316 = vmul.f32 %v1491, %v3943
  %v4317 = vmul.f32 %v1493, %v3947
  %v4318 = vmul.f32 %v1495, %v3951
  %v4319 = vmul.f32 %v1497, %v3955
  %v4320 = vmul.f32 %v1499, %v3959
  %v4321 = vmul.f32 %v1501, %v3963
  %v4322 = vmul.f32 %v1503, %v3970
  %v4323 = vmul.f32 %v1505, %v3974
  %v4324 = vmul.f32 %v1507, %v3978
  %v4325 = vmul.f32 %v1509, %v3982
  %v4326 = vmul.f32 %v1511, %v3986
  %v4327 = vmul.f32 %v1513, %v3990
  %v4328 = vmul.f32 %v1515, %v3994
  %v4329 = vmul.f32 %v1517, %v3998
  %v4330 = vmul.f32 %v1519, %v4002
  %v4331 = vmul.f32 %v1521, %v4006
  %v4332 = vmul.f32 %v1523, %v4010
  %v4333 = vmul.f32 %v1525, %v4014
  %v4334 = vmul.f32 %v1527, %v4018
  %v4335 = vmul.f32 %v1529, %v4022
  %v4336 = vmul.f32 %v1531, %v4026
  %v4337 = vmul.f32 %v1533, %v4030
  %v4338 = vmul.f32 %v1535, %v4037
  %v4339 = vmul.f32 %v1537, %v4041
  %v4340 = vmul.f32 %v1539, %v4045
  %v4341 = vmul.f32 %v1541, %v4049
  %v4342 = vmul.f32 %v1543, %v4053
  %v4343 = vmul.f32 %v1545, %v4057
  %v4344 = vmul.f32 %v1547, %v4061
  %v4345 = vmul.f32 %v1549, %v4065
  %v4346 = vmul.f32 %v1551, %v4069
  %v4347 = vmul.f32 %v1553, %v4073
  %v4348 = vmul.f32 %v1555, %v4077
  %v4349 = vmul.f32 %v1557, %v4081
  %v4350 = vmul.f32 %v1559, %v4085
  %v4351 = vmul.f32 %v1561, %v4089
  %v4352 = vmul.f32 %v1563, %v4093
  %v4353 = vmul.f32 %v1565, %v4097
  %4482 = vset.pattern.permute.xlu0 0
  %4483 = vperm.xlu0 %4482, %v4226
  %v4484 = vpop.permute.xlu0 %4483
  %4485 = vset.pattern.permute.xlu0 0
  %4486 = vperm.xlu0 %4485, %v4227
  %v4487 = vpop.permute.xlu0 %4486
  %4488 = vset.pattern.permute.xlu0 0
  %4489 = vperm.xlu0 %4488, %v4228
  %v4490 = vpop.permute.xlu0 %4489
  %4491 = vset.pattern.permute.xlu0 0
  %4492 = vperm.xlu0 %4491, %v4229
  %v4493 = vpop.permute.xlu0 %4492
  %4494 = vset.pattern.permute.xlu0 0
  %4495 = vperm.xlu0 %4494, %v4230
  %v4496 = vpop.permute.xlu0 %4495
  %4497 = vset.pattern.permute.xlu0 0
  %4498 = vperm.xlu0 %4497, %v4231
  %v4499 = vpop.permute.xlu0 %4498
  %4500 = vset.pattern.permute.xlu0 0
  %4501 = vperm.xlu0 %4500, %v4232
  %v4502 = vpop.permute.xlu0 %4501
  %4503 = vset.pattern.permute.xlu0 0
  %4504 = vperm.xlu0 %4503, %v4233
  %v4505 = vpop.permute.xlu0 %4504
  %4506 = vset.pattern.permute.xlu0 0
  %4507 = vperm.xlu0 %4506, %v4234
  %v4508 = vpop.permute.xlu0 %4507
  %4509 = vset.pattern.permute.xlu0 0
  %4510 = vperm.xlu0 %4509, %v4235
  %v4511 = vpop.permute.xlu0 %4510
  %4512 = vset.pattern.permute.xlu0 0
  %4513 = vperm.xlu0 %4512, %v4236
  %v4514 = vpop.permute.xlu0 %4513
  %4515 = vset.pattern.permute.xlu0 0
  %4516 = vperm.xlu0 %4515, %v4237
  %v4517 = vpop.permute.xlu0 %4516
  %4518 = vset.pattern.permute.xlu0 0
  %4519 = vperm.xlu0 %4518, %v4238
  %v4520 = vpop.permute.xlu0 %4519
  %4521 = vset.pattern.permute.xlu0 0
  %4522 = vperm.xlu0 %4521, %v4239
  %v4523 = vpop.permute.xlu0 %4522
  %4524 = vset.pattern.permute.xlu0 0
  %4525 = vperm.xlu0 %4524, %v4240
  %v4526 = vpop.permute.xlu0 %4525
  %4527 = vset.pattern.permute.xlu0 0
  %4528 = vperm.xlu0 %4527, %v4241
  %v4529 = vpop.permute.xlu0 %4528
  %4530 = vset.pattern.permute.xlu0 0
  %4531 = vperm.xlu0 %4530, %v4242
  %v4532 = vpop.permute.xlu0 %4531
  %4533 = vset.pattern.permute.xlu0 0
  %4534 = vperm.xlu0 %4533, %v4243
  %v4535 = vpop.permute.xlu0 %4534
  %4536 = vset.pattern.permute.xlu0 0
  %4537 = vperm.xlu0 %4536, %v4244
  %v4538 = vpop.permute.xlu0 %4537
  %4539 = vset.pattern.permute.xlu0 0
  %4540 = vperm.xlu0 %4539, %v4245
  %v4541 = vpop.permute.xlu0 %4540
  %4542 = vset.pattern.permute.xlu0 0
  %4543 = vperm.xlu0 %4542, %v4246
  %v4544 = vpop.permute.xlu0 %4543
  %4545 = vset.pattern.permute.xlu0 0
  %4546 = vperm.xlu0 %4545, %v4247
  %v4547 = vpop.permute.xlu0 %4546
  %4548 = vset.pattern.permute.xlu0 0
  %4549 = vperm.xlu0 %4548, %v4248
  %v4550 = vpop.permute.xlu0 %4549
  %4551 = vset.pattern.permute.xlu0 0
  %4552 = vperm.xlu0 %4551, %v4249
  %v4553 = vpop.permute.xlu0 %4552
  %4554 = vset.pattern.permute.xlu0 0
  %4555 = vperm.xlu0 %4554, %v4250
  %v4556 = vpop.permute.xlu0 %4555
  %4557 = vset.pattern.permute.xlu0 0
  %4558 = vperm.xlu0 %4557, %v4251
  %v4559 = vpop.permute.xlu0 %4558
  %4560 = vset.pattern.permute.xlu0 0
  %4561 = vperm.xlu0 %4560, %v4252
  %v4562 = vpop.permute.xlu0 %4561
  %4563 = vset.pattern.permute.xlu0 0
  %4564 = vperm.xlu0 %4563, %v4253
  %v4565 = vpop.permute.xlu0 %4564
  %4566 = vset.pattern.permute.xlu0 0
  %4567 = vperm.xlu0 %4566, %v4254
  %v4568 = vpop.permute.xlu0 %4567
  %4569 = vset.pattern.permute.xlu0 0
  %4570 = vperm.xlu0 %4569, %v4255
  %v4571 = vpop.permute.xlu0 %4570
  %4572 = vset.pattern.permute.xlu0 0
  %4573 = vperm.xlu0 %4572, %v4256
  %v4574 = vpop.permute.xlu0 %4573
  %4575 = vset.pattern.permute.xlu0 0
  %4576 = vperm.xlu0 %4575, %v4257
  %v4577 = vpop.permute.xlu0 %4576
  %4578 = vset.pattern.permute.xlu0 0
  %4579 = vperm.xlu0 %4578, %v4258
  %v4580 = vpop.permute.xlu0 %4579
  %4581 = vset.pattern.permute.xlu0 0
  %4582 = vperm.xlu0 %4581, %v4259
  %v4583 = vpop.permute.xlu0 %4582
  %4584 = vset.pattern.permute.xlu0 0
  %4585 = vperm.xlu0 %4584, %v4260
  %v4586 = vpop.permute.xlu0 %4585
  %4587 = vset.pattern.permute.xlu0 0
  %4588 = vperm.xlu0 %4587, %v4261
  %v4589 = vpop.permute.xlu0 %4588
  %4590 = vset.pattern.permute.xlu0 0
  %4591 = vperm.xlu0 %4590, %v4262
  %v4592 = vpop.permute.xlu0 %4591
  %4593 = vset.pattern.permute.xlu0 0
  %4594 = vperm.xlu0 %4593, %v4263
  %v4595 = vpop.permute.xlu0 %4594
  %4596 = vset.pattern.permute.xlu0 0
  %4597 = vperm.xlu0 %4596, %v4264
  %v4598 = vpop.permute.xlu0 %4597
  %4599 = vset.pattern.permute.xlu0 0
  %4600 = vperm.xlu0 %4599, %v4265
  %v4601 = vpop.permute.xlu0 %4600
  %4602 = vset.pattern.permute.xlu0 0
  %4603 = vperm.xlu0 %4602, %v4266
  %v4604 = vpop.permute.xlu0 %4603
  %4605 = vset.pattern.permute.xlu0 0
  %4606 = vperm.xlu0 %4605, %v4267
  %v4607 = vpop.permute.xlu0 %4606
  %4608 = vset.pattern.permute.xlu0 0
  %4609 = vperm.xlu0 %4608, %v4268
  %v4610 = vpop.permute.xlu0 %4609
  %4611 = vset.pattern.permute.xlu0 0
  %4612 = vperm.xlu0 %4611, %v4269
  %v4613 = vpop.permute.xlu0 %4612
  %4614 = vset.pattern.permute.xlu0 0
  %4615 = vperm.xlu0 %4614, %v4270
  %v4616 = vpop.permute.xlu0 %4615
  %4617 = vset.pattern.permute.xlu0 0
  %4618 = vperm.xlu0 %4617, %v4271
  %v4619 = vpop.permute.xlu0 %4618
  %4620 = vset.pattern.permute.xlu0 0
  %4621 = vperm.xlu0 %4620, %v4272
  %v4622 = vpop.permute.xlu0 %4621
  %4623 = vset.pattern.permute.xlu0 0
  %4624 = vperm.xlu0 %4623, %v4273
  %v4625 = vpop.permute.xlu0 %4624
  %4626 = vset.pattern.permute.xlu0 0
  %4627 = vperm.xlu0 %4626, %v4274
  %v4628 = vpop.permute.xlu0 %4627
  %4629 = vset.pattern.permute.xlu0 0
  %4630 = vperm.xlu0 %4629, %v4275
  %v4631 = vpop.permute.xlu0 %4630
  %4632 = vset.pattern.permute.xlu0 0
  %4633 = vperm.xlu0 %4632, %v4276
  %v4634 = vpop.permute.xlu0 %4633
  %4635 = vset.pattern.permute.xlu0 0
  %4636 = vperm.xlu0 %4635, %v4277
  %v4637 = vpop.permute.xlu0 %4636
  %4638 = vset.pattern.permute.xlu0 0
  %4639 = vperm.xlu0 %4638, %v4278
  %v4640 = vpop.permute.xlu0 %4639
  %4641 = vset.pattern.permute.xlu0 0
  %4642 = vperm.xlu0 %4641, %v4279
  %v4643 = vpop.permute.xlu0 %4642
  %4644 = vset.pattern.permute.xlu0 0
  %4645 = vperm.xlu0 %4644, %v4280
  %v4646 = vpop.permute.xlu0 %4645
  %4647 = vset.pattern.permute.xlu0 0
  %4648 = vperm.xlu0 %4647, %v4281
  %v4649 = vpop.permute.xlu0 %4648
  %4650 = vset.pattern.permute.xlu0 0
  %4651 = vperm.xlu0 %4650, %v4282
  %v4652 = vpop.permute.xlu0 %4651
  %4653 = vset.pattern.permute.xlu0 0
  %4654 = vperm.xlu0 %4653, %v4283
  %v4655 = vpop.permute.xlu0 %4654
  %4656 = vset.pattern.permute.xlu0 0
  %4657 = vperm.xlu0 %4656, %v4284
  %v4658 = vpop.permute.xlu0 %4657
  %4659 = vset.pattern.permute.xlu0 0
  %4660 = vperm.xlu0 %4659, %v4285
  %v4661 = vpop.permute.xlu0 %4660
  %4662 = vset.pattern.permute.xlu0 0
  %4663 = vperm.xlu0 %4662, %v4286
  %v4664 = vpop.permute.xlu0 %4663
  %4665 = vset.pattern.permute.xlu0 0
  %4666 = vperm.xlu0 %4665, %v4287
  %v4667 = vpop.permute.xlu0 %4666
  %4668 = vset.pattern.permute.xlu0 0
  %4669 = vperm.xlu0 %4668, %v4288
  %v4670 = vpop.permute.xlu0 %4669
  %4671 = vset.pattern.permute.xlu0 0
  %4672 = vperm.xlu0 %4671, %v4289
  %v4673 = vpop.permute.xlu0 %4672
  %4674 = vset.pattern.permute.xlu0 0
  %4675 = vperm.xlu0 %4674, %v4290
  %v4676 = vpop.permute.xlu0 %4675
  %4677 = vset.pattern.permute.xlu0 0
  %4678 = vperm.xlu0 %4677, %v4291
  %v4679 = vpop.permute.xlu0 %4678
  %4680 = vset.pattern.permute.xlu0 0
  %4681 = vperm.xlu0 %4680, %v4292
  %v4682 = vpop.permute.xlu0 %4681
  %4683 = vset.pattern.permute.xlu0 0
  %4684 = vperm.xlu0 %4683, %v4293
  %v4685 = vpop.permute.xlu0 %4684
  %4686 = vset.pattern.permute.xlu0 0
  %4687 = vperm.xlu0 %4686, %v4294
  %v4688 = vpop.permute.xlu0 %4687
  %4689 = vset.pattern.permute.xlu0 0
  %4690 = vperm.xlu0 %4689, %v4295
  %v4691 = vpop.permute.xlu0 %4690
  %4692 = vset.pattern.permute.xlu0 0
  %4693 = vperm.xlu0 %4692, %v4296
  %v4694 = vpop.permute.xlu0 %4693
  %4695 = vset.pattern.permute.xlu0 0
  %4696 = vperm.xlu0 %4695, %v4297
  %v4697 = vpop.permute.xlu0 %4696
  %4698 = vset.pattern.permute.xlu0 0
  %4699 = vperm.xlu0 %4698, %v4298
  %v4700 = vpop.permute.xlu0 %4699
  %4701 = vset.pattern.permute.xlu0 0
  %4702 = vperm.xlu0 %4701, %v4299
  %v4703 = vpop.permute.xlu0 %4702
  %4704 = vset.pattern.permute.xlu0 0
  %4705 = vperm.xlu0 %4704, %v4300
  %v4706 = vpop.permute.xlu0 %4705
  %4707 = vset.pattern.permute.xlu0 0
  %4708 = vperm.xlu0 %4707, %v4301
  %v4709 = vpop.permute.xlu0 %4708
  %4710 = vset.pattern.permute.xlu0 0
  %4711 = vperm.xlu0 %4710, %v4302
  %v4712 = vpop.permute.xlu0 %4711
  %4713 = vset.pattern.permute.xlu0 0
  %4714 = vperm.xlu0 %4713, %v4303
  %v4715 = vpop.permute.xlu0 %4714
  %4716 = vset.pattern.permute.xlu0 0
  %4717 = vperm.xlu0 %4716, %v4304
  %v4718 = vpop.permute.xlu0 %4717
  %4719 = vset.pattern.permute.xlu0 0
  %4720 = vperm.xlu0 %4719, %v4305
  %v4721 = vpop.permute.xlu0 %4720
  %4722 = vset.pattern.permute.xlu0 0
  %4723 = vperm.xlu0 %4722, %v4306
  %v4724 = vpop.permute.xlu0 %4723
  %4725 = vset.pattern.permute.xlu0 0
  %4726 = vperm.xlu0 %4725, %v4307
  %v4727 = vpop.permute.xlu0 %4726
  %4728 = vset.pattern.permute.xlu0 0
  %4729 = vperm.xlu0 %4728, %v4308
  %v4730 = vpop.permute.xlu0 %4729
  %4731 = vset.pattern.permute.xlu0 0
  %4732 = vperm.xlu0 %4731, %v4309
  %v4733 = vpop.permute.xlu0 %4732
  %4734 = vset.pattern.permute.xlu0 0
  %4735 = vperm.xlu0 %4734, %v4310
  %v4736 = vpop.permute.xlu0 %4735
  %4737 = vset.pattern.permute.xlu0 0
  %4738 = vperm.xlu0 %4737, %v4311
  %v4739 = vpop.permute.xlu0 %4738
  %4740 = vset.pattern.permute.xlu0 0
  %4741 = vperm.xlu0 %4740, %v4312
  %v4742 = vpop.permute.xlu0 %4741
  %4743 = vset.pattern.permute.xlu0 0
  %4744 = vperm.xlu0 %4743, %v4313
  %v4745 = vpop.permute.xlu0 %4744
  %4746 = vset.pattern.permute.xlu0 0
  %4747 = vperm.xlu0 %4746, %v4314
  %v4748 = vpop.permute.xlu0 %4747
  %4749 = vset.pattern.permute.xlu0 0
  %4750 = vperm.xlu0 %4749, %v4315
  %v4751 = vpop.permute.xlu0 %4750
  %4752 = vset.pattern.permute.xlu0 0
  %4753 = vperm.xlu0 %4752, %v4316
  %v4754 = vpop.permute.xlu0 %4753
  %4755 = vset.pattern.permute.xlu0 0
  %4756 = vperm.xlu0 %4755, %v4317
  %v4757 = vpop.permute.xlu0 %4756
  %4758 = vset.pattern.permute.xlu0 0
  %4759 = vperm.xlu0 %4758, %v4318
  %v4760 = vpop.permute.xlu0 %4759
  %4761 = vset.pattern.permute.xlu0 0
  %4762 = vperm.xlu0 %4761, %v4319
  %v4763 = vpop.permute.xlu0 %4762
  %4764 = vset.pattern.permute.xlu0 0
  %4765 = vperm.xlu0 %4764, %v4320
  %v4766 = vpop.permute.xlu0 %4765
  %4767 = vset.pattern.permute.xlu0 0
  %4768 = vperm.xlu0 %4767, %v4321
  %v4769 = vpop.permute.xlu0 %4768
  %4770 = vset.pattern.permute.xlu0 0
  %4771 = vperm.xlu0 %4770, %v4322
  %v4772 = vpop.permute.xlu0 %4771
  %4773 = vset.pattern.permute.xlu0 0
  %4774 = vperm.xlu0 %4773, %v4323
  %v4775 = vpop.permute.xlu0 %4774
  %4776 = vset.pattern.permute.xlu0 0
  %4777 = vperm.xlu0 %4776, %v4324
  %v4778 = vpop.permute.xlu0 %4777
  %4779 = vset.pattern.permute.xlu0 0
  %4780 = vperm.xlu0 %4779, %v4325
  %v4781 = vpop.permute.xlu0 %4780
  %4782 = vset.pattern.permute.xlu0 0
  %4783 = vperm.xlu0 %4782, %v4326
  %v4784 = vpop.permute.xlu0 %4783
  %4785 = vset.pattern.permute.xlu0 0
  %4786 = vperm.xlu0 %4785, %v4327
  %v4787 = vpop.permute.xlu0 %4786
  %4788 = vset.pattern.permute.xlu0 0
  %4789 = vperm.xlu0 %4788, %v4328
  %v4790 = vpop.permute.xlu0 %4789
  %4791 = vset.pattern.permute.xlu0 0
  %4792 = vperm.xlu0 %4791, %v4329
  %v4793 = vpop.permute.xlu0 %4792
  %4794 = vset.pattern.permute.xlu0 0
  %4795 = vperm.xlu0 %4794, %v4330
  %v4796 = vpop.permute.xlu0 %4795
  %4797 = vset.pattern.permute.xlu0 0
  %4798 = vperm.xlu0 %4797, %v4331
  %v4799 = vpop.permute.xlu0 %4798
  %4800 = vset.pattern.permute.xlu0 0
  %4801 = vperm.xlu0 %4800, %v4332
  %v4802 = vpop.permute.xlu0 %4801
  %4803 = vset.pattern.permute.xlu0 0
  %4804 = vperm.xlu0 %4803, %v4333
  %v4805 = vpop.permute.xlu0 %4804
  %4806 = vset.pattern.permute.xlu0 0
  %4807 = vperm.xlu0 %4806, %v4334
  %v4808 = vpop.permute.xlu0 %4807
  %4809 = vset.pattern.permute.xlu0 0
  %4810 = vperm.xlu0 %4809, %v4335
  %v4811 = vpop.permute.xlu0 %4810
  %4812 = vset.pattern.permute.xlu0 0
  %4813 = vperm.xlu0 %4812, %v4336
  %v4814 = vpop.permute.xlu0 %4813
  %4815 = vset.pattern.permute.xlu0 0
  %4816 = vperm.xlu0 %4815, %v4337
  %v4817 = vpop.permute.xlu0 %4816
  %4818 = vset.pattern.permute.xlu0 0
  %4819 = vperm.xlu0 %4818, %v4338
  %v4820 = vpop.permute.xlu0 %4819
  %4821 = vset.pattern.permute.xlu0 0
  %4822 = vperm.xlu0 %4821, %v4339
  %v4823 = vpop.permute.xlu0 %4822
  %4824 = vset.pattern.permute.xlu0 0
  %4825 = vperm.xlu0 %4824, %v4340
  %v4826 = vpop.permute.xlu0 %4825
  %4827 = vset.pattern.permute.xlu0 0
  %4828 = vperm.xlu0 %4827, %v4341
  %v4829 = vpop.permute.xlu0 %4828
  %4830 = vset.pattern.permute.xlu0 0
  %4831 = vperm.xlu0 %4830, %v4342
  %v4832 = vpop.permute.xlu0 %4831
  %4833 = vset.pattern.permute.xlu0 0
  %4834 = vperm.xlu0 %4833, %v4343
  %v4835 = vpop.permute.xlu0 %4834
  %4836 = vset.pattern.permute.xlu0 0
  %4837 = vperm.xlu0 %4836, %v4344
  %v4838 = vpop.permute.xlu0 %4837
  %4839 = vset.pattern.permute.xlu0 0
  %4840 = vperm.xlu0 %4839, %v4345
  %v4841 = vpop.permute.xlu0 %4840
  %4842 = vset.pattern.permute.xlu0 0
  %4843 = vperm.xlu0 %4842, %v4346
  %v4844 = vpop.permute.xlu0 %4843
  %4845 = vset.pattern.permute.xlu0 0
  %4846 = vperm.xlu0 %4845, %v4347
  %v4847 = vpop.permute.xlu0 %4846
  %4848 = vset.pattern.permute.xlu0 0
  %4849 = vperm.xlu0 %4848, %v4348
  %v4850 = vpop.permute.xlu0 %4849
  %4851 = vset.pattern.permute.xlu0 0
  %4852 = vperm.xlu0 %4851, %v4349
  %v4853 = vpop.permute.xlu0 %4852
  %4854 = vset.pattern.permute.xlu0 0
  %4855 = vperm.xlu0 %4854, %v4350
  %v4856 = vpop.permute.xlu0 %4855
  %4857 = vset.pattern.permute.xlu0 0
  %4858 = vperm.xlu0 %4857, %v4351
  %v4859 = vpop.permute.xlu0 %4858
  %4860 = vset.pattern.permute.xlu0 0
  %4861 = vperm.xlu0 %4860, %v4352
  %v4862 = vpop.permute.xlu0 %4861
  %4863 = vset.pattern.permute.xlu0 0
  %4864 = vperm.xlu0 %4863, %v4353
  %v4865 = vpop.permute.xlu0 %4864
  %v4866 = vlaneseq
  %v4867 = vshrl.u32 %v4866, 7
  %v4868 = vsub.s32 %v2879, %v4867
  %v4869 = vrot.slane %v4484, %v4868
  %v4870 = vlaneseq
  %v4871 = vshrl.u32 %v4870, 7
  %v4872 = vsub.s32 %v2884, %v4871
  %v4873 = vrot.slane %v4487, %v4872
  %v4874 = vsel %vm2889, %v4873, %v4869
  %v4875 = vlaneseq
  %v4876 = vshrl.u32 %v4875, 7
  %v4877 = vsub.s32 %v2891, %v4876
  %v4878 = vrot.slane %v4490, %v4877
  %v4879 = vsel %vm2896, %v4878, %v4874
  %v4880 = vlaneseq
  %v4881 = vshrl.u32 %v4880, 7
  %v4882 = vsub.s32 %v2898, %v4881
  %v4883 = vrot.slane %v4493, %v4882
  %v4884 = vsel %vm2903, %v4883, %v4879
  %v4885 = vlaneseq
  %v4886 = vshrl.u32 %v4885, 7
  %v4887 = vsub.s32 %v2905, %v4886
  %v4888 = vrot.slane %v4496, %v4887
  %v4889 = vsel %vm2910, %v4888, %v4884
  %v4890 = vlaneseq
  %v4891 = vshrl.u32 %v4890, 7
  %v4892 = vsub.s32 %v2912, %v4891
  %v4893 = vrot.slane %v4499, %v4892
  %v4894 = vsel %vm2917, %v4893, %v4889
  %v4895 = vlaneseq
  %v4896 = vshrl.u32 %v4895, 7
  %v4897 = vsub.s32 %v2919, %v4896
  %v4898 = vrot.slane %v4502, %v4897
  %v4899 = vsel %vm2924, %v4898, %v4894
  %v4900 = vlaneseq
  %v4901 = vshrl.u32 %v4900, 7
  %v4902 = vsub.s32 %v2926, %v4901
  %v4903 = vrot.slane %v4505, %v4902
  %v4904 = vsel %vm2931, %v4903, %v4899
  %v4905 = vlaneseq
  %v4906 = vshrl.u32 %v4905, 7
  %v4907 = vsub.s32 %v2933, %v4906
  %v4908 = vrot.slane %v4508, %v4907
  %v4909 = vsel %vm2938, %v4908, %v4904
  %v4910 = vlaneseq
  %v4911 = vshrl.u32 %v4910, 7
  %v4912 = vsub.s32 %v2940, %v4911
  %v4913 = vrot.slane %v4511, %v4912
  %v4914 = vsel %vm2945, %v4913, %v4909
  %v4915 = vlaneseq
  %v4916 = vshrl.u32 %v4915, 7
  %v4917 = vsub.s32 %v2947, %v4916
  %v4918 = vrot.slane %v4514, %v4917
  %v4919 = vsel %vm2952, %v4918, %v4914
  %v4920 = vlaneseq
  %v4921 = vshrl.u32 %v4920, 7
  %v4922 = vsub.s32 %v2954, %v4921
  %v4923 = vrot.slane %v4517, %v4922
  %v4924 = vsel %vm2959, %v4923, %v4919
  %v4925 = vlaneseq
  %v4926 = vshrl.u32 %v4925, 7
  %v4927 = vsub.s32 %v2961, %v4926
  %v4928 = vrot.slane %v4520, %v4927
  %v4929 = vsel %vm2966, %v4928, %v4924
  %v4930 = vlaneseq
  %v4931 = vshrl.u32 %v4930, 7
  %v4932 = vsub.s32 %v2968, %v4931
  %v4933 = vrot.slane %v4523, %v4932
  %v4934 = vsel %vm2973, %v4933, %v4929
  %v4935 = vlaneseq
  %v4936 = vshrl.u32 %v4935, 7
  %v4937 = vsub.s32 %v2975, %v4936
  %v4938 = vrot.slane %v4526, %v4937
  %v4939 = vsel %vm2980, %v4938, %v4934
  %v4940 = vlaneseq
  %v4941 = vshrl.u32 %v4940, 7
  %v4942 = vsub.s32 %v2982, %v4941
  %v4943 = vrot.slane %v4529, %v4942
  %v4944 = vsel %vm2987, %v4943, %v4939
  %v4945 = vlaneseq
  %v4946 = vshrl.u32 %v4945, 7
  %v4947 = vsub.s32 %v2879, %v4946
  %v4948 = vrot.slane %v4532, %v4947
  %v4949 = vlaneseq
  %v4950 = vshrl.u32 %v4949, 7
  %v4951 = vsub.s32 %v2884, %v4950
  %v4952 = vrot.slane %v4535, %v4951
  %v4953 = vsel %vm2889, %v4952, %v4948
  %v4954 = vlaneseq
  %v4955 = vshrl.u32 %v4954, 7
  %v4956 = vsub.s32 %v2891, %v4955
  %v4957 = vrot.slane %v4538, %v4956
  %v4958 = vsel %vm2896, %v4957, %v4953
  %v4959 = vlaneseq
  %v4960 = vshrl.u32 %v4959, 7
  %v4961 = vsub.s32 %v2898, %v4960
  %v4962 = vrot.slane %v4541, %v4961
  %v4963 = vsel %vm2903, %v4962, %v4958
  %v4964 = vlaneseq
  %v4965 = vshrl.u32 %v4964, 7
  %v4966 = vsub.s32 %v2905, %v4965
  %v4967 = vrot.slane %v4544, %v4966
  %v4968 = vsel %vm2910, %v4967, %v4963
  %v4969 = vlaneseq
  %v4970 = vshrl.u32 %v4969, 7
  %v4971 = vsub.s32 %v2912, %v4970
  %v4972 = vrot.slane %v4547, %v4971
  %v4973 = vsel %vm2917, %v4972, %v4968
  %v4974 = vlaneseq
  %v4975 = vshrl.u32 %v4974, 7
  %v4976 = vsub.s32 %v2919, %v4975
  %v4977 = vrot.slane %v4550, %v4976
  %v4978 = vsel %vm2924, %v4977, %v4973
  %v4979 = vlaneseq
  %v4980 = vshrl.u32 %v4979, 7
  %v4981 = vsub.s32 %v2926, %v4980
  %v4982 = vrot.slane %v4553, %v4981
  %v4983 = vsel %vm2931, %v4982, %v4978
  %v4984 = vlaneseq
  %v4985 = vshrl.u32 %v4984, 7
  %v4986 = vsub.s32 %v2933, %v4985
  %v4987 = vrot.slane %v4556, %v4986
  %v4988 = vsel %vm2938, %v4987, %v4983
  %v4989 = vlaneseq
  %v4990 = vshrl.u32 %v4989, 7
  %v4991 = vsub.s32 %v2940, %v4990
  %v4992 = vrot.slane %v4559, %v4991
  %v4993 = vsel %vm2945, %v4992, %v4988
  %v4994 = vlaneseq
  %v4995 = vshrl.u32 %v4994, 7
  %v4996 = vsub.s32 %v2947, %v4995
  %v4997 = vrot.slane %v4562, %v4996
  %v4998 = vsel %vm2952, %v4997, %v4993
  %v4999 = vlaneseq
  %v5000 = vshrl.u32 %v4999, 7
  %v5001 = vsub.s32 %v2954, %v5000
  %v5002 = vrot.slane %v4565, %v5001
  %v5003 = vsel %vm2959, %v5002, %v4998
  %v5004 = vlaneseq
  %v5005 = vshrl.u32 %v5004, 7
  %v5006 = vsub.s32 %v2961, %v5005
  %v5007 = vrot.slane %v4568, %v5006
  %v5008 = vsel %vm2966, %v5007, %v5003
  %v5009 = vlaneseq
  %v5010 = vshrl.u32 %v5009, 7
  %v5011 = vsub.s32 %v2968, %v5010
  %v5012 = vrot.slane %v4571, %v5011
  %v5013 = vsel %vm2973, %v5012, %v5008
  %v5014 = vlaneseq
  %v5015 = vshrl.u32 %v5014, 7
  %v5016 = vsub.s32 %v2975, %v5015
  %v5017 = vrot.slane %v4574, %v5016
  %v5018 = vsel %vm2980, %v5017, %v5013
  %v5019 = vlaneseq
  %v5020 = vshrl.u32 %v5019, 7
  %v5021 = vsub.s32 %v2982, %v5020
  %v5022 = vrot.slane %v4577, %v5021
  %v5023 = vsel %vm2987, %v5022, %v5018
  %v5024 = vlaneseq
  %v5025 = vshrl.u32 %v5024, 7
  %v5026 = vsub.s32 %v2879, %v5025
  %v5027 = vrot.slane %v4580, %v5026
  %v5028 = vlaneseq
  %v5029 = vshrl.u32 %v5028, 7
  %v5030 = vsub.s32 %v2884, %v5029
  %v5031 = vrot.slane %v4583, %v5030
  %v5032 = vsel %vm2889, %v5031, %v5027
  %v5033 = vlaneseq
  %v5034 = vshrl.u32 %v5033, 7
  %v5035 = vsub.s32 %v2891, %v5034
  %v5036 = vrot.slane %v4586, %v5035
  %v5037 = vsel %vm2896, %v5036, %v5032
  %v5038 = vlaneseq
  %v5039 = vshrl.u32 %v5038, 7
  %v5040 = vsub.s32 %v2898, %v5039
  %v5041 = vrot.slane %v4589, %v5040
  %v5042 = vsel %vm2903, %v5041, %v5037
  %v5043 = vlaneseq
  %v5044 = vshrl.u32 %v5043, 7
  %v5045 = vsub.s32 %v2905, %v5044
  %v5046 = vrot.slane %v4592, %v5045
  %v5047 = vsel %vm2910, %v5046, %v5042
  %v5048 = vlaneseq
  %v5049 = vshrl.u32 %v5048, 7
  %v5050 = vsub.s32 %v2912, %v5049
  %v5051 = vrot.slane %v4595, %v5050
  %v5052 = vsel %vm2917, %v5051, %v5047
  %v5053 = vlaneseq
  %v5054 = vshrl.u32 %v5053, 7
  %v5055 = vsub.s32 %v2919, %v5054
  %v5056 = vrot.slane %v4598, %v5055
  %v5057 = vsel %vm2924, %v5056, %v5052
  %v5058 = vlaneseq
  %v5059 = vshrl.u32 %v5058, 7
  %v5060 = vsub.s32 %v2926, %v5059
  %v5061 = vrot.slane %v4601, %v5060
  %v5062 = vsel %vm2931, %v5061, %v5057
  %v5063 = vlaneseq
  %v5064 = vshrl.u32 %v5063, 7
  %v5065 = vsub.s32 %v2933, %v5064
  %v5066 = vrot.slane %v4604, %v5065
  %v5067 = vsel %vm2938, %v5066, %v5062
  %v5068 = vlaneseq
  %v5069 = vshrl.u32 %v5068, 7
  %v5070 = vsub.s32 %v2940, %v5069
  %v5071 = vrot.slane %v4607, %v5070
  %v5072 = vsel %vm2945, %v5071, %v5067
  %v5073 = vlaneseq
  %v5074 = vshrl.u32 %v5073, 7
  %v5075 = vsub.s32 %v2947, %v5074
  %v5076 = vrot.slane %v4610, %v5075
  %v5077 = vsel %vm2952, %v5076, %v5072
  %v5078 = vlaneseq
  %v5079 = vshrl.u32 %v5078, 7
  %v5080 = vsub.s32 %v2954, %v5079
  %v5081 = vrot.slane %v4613, %v5080
  %v5082 = vsel %vm2959, %v5081, %v5077
  %v5083 = vlaneseq
  %v5084 = vshrl.u32 %v5083, 7
  %v5085 = vsub.s32 %v2961, %v5084
  %v5086 = vrot.slane %v4616, %v5085
  %v5087 = vsel %vm2966, %v5086, %v5082
  %v5088 = vlaneseq
  %v5089 = vshrl.u32 %v5088, 7
  %v5090 = vsub.s32 %v2968, %v5089
  %v5091 = vrot.slane %v4619, %v5090
  %v5092 = vsel %vm2973, %v5091, %v5087
  %v5093 = vlaneseq
  %v5094 = vshrl.u32 %v5093, 7
  %v5095 = vsub.s32 %v2975, %v5094
  %v5096 = vrot.slane %v4622, %v5095
  %v5097 = vsel %vm2980, %v5096, %v5092
  %v5098 = vlaneseq
  %v5099 = vshrl.u32 %v5098, 7
  %v5100 = vsub.s32 %v2982, %v5099
  %v5101 = vrot.slane %v4625, %v5100
  %v5102 = vsel %vm2987, %v5101, %v5097
  %v5103 = vlaneseq
  %v5104 = vshrl.u32 %v5103, 7
  %v5105 = vsub.s32 %v2879, %v5104
  %v5106 = vrot.slane %v4628, %v5105
  %v5107 = vlaneseq
  %v5108 = vshrl.u32 %v5107, 7
  %v5109 = vsub.s32 %v2884, %v5108
  %v5110 = vrot.slane %v4631, %v5109
  %v5111 = vsel %vm2889, %v5110, %v5106
  %v5112 = vlaneseq
  %v5113 = vshrl.u32 %v5112, 7
  %v5114 = vsub.s32 %v2891, %v5113
  %v5115 = vrot.slane %v4634, %v5114
  %v5116 = vsel %vm2896, %v5115, %v5111
  %v5117 = vlaneseq
  %v5118 = vshrl.u32 %v5117, 7
  %v5119 = vsub.s32 %v2898, %v5118
  %v5120 = vrot.slane %v4637, %v5119
  %v5121 = vsel %vm2903, %v5120, %v5116
  %v5122 = vlaneseq
  %v5123 = vshrl.u32 %v5122, 7
  %v5124 = vsub.s32 %v2905, %v5123
  %v5125 = vrot.slane %v4640, %v5124
  %v5126 = vsel %vm2910, %v5125, %v5121
  %v5127 = vlaneseq
  %v5128 = vshrl.u32 %v5127, 7
  %v5129 = vsub.s32 %v2912, %v5128
  %v5130 = vrot.slane %v4643, %v5129
  %v5131 = vsel %vm2917, %v5130, %v5126
  %v5132 = vlaneseq
  %v5133 = vshrl.u32 %v5132, 7
  %v5134 = vsub.s32 %v2919, %v5133
  %v5135 = vrot.slane %v4646, %v5134
  %v5136 = vsel %vm2924, %v5135, %v5131
  %v5137 = vlaneseq
  %v5138 = vshrl.u32 %v5137, 7
  %v5139 = vsub.s32 %v2926, %v5138
  %v5140 = vrot.slane %v4649, %v5139
  %v5141 = vsel %vm2931, %v5140, %v5136
  %v5142 = vlaneseq
  %v5143 = vshrl.u32 %v5142, 7
  %v5144 = vsub.s32 %v2933, %v5143
  %v5145 = vrot.slane %v4652, %v5144
  %v5146 = vsel %vm2938, %v5145, %v5141
  %v5147 = vlaneseq
  %v5148 = vshrl.u32 %v5147, 7
  %v5149 = vsub.s32 %v2940, %v5148
  %v5150 = vrot.slane %v4655, %v5149
  %v5151 = vsel %vm2945, %v5150, %v5146
  %v5152 = vlaneseq
  %v5153 = vshrl.u32 %v5152, 7
  %v5154 = vsub.s32 %v2947, %v5153
  %v5155 = vrot.slane %v4658, %v5154
  %v5156 = vsel %vm2952, %v5155, %v5151
  %v5157 = vlaneseq
  %v5158 = vshrl.u32 %v5157, 7
  %v5159 = vsub.s32 %v2954, %v5158
  %v5160 = vrot.slane %v4661, %v5159
  %v5161 = vsel %vm2959, %v5160, %v5156
  %v5162 = vlaneseq
  %v5163 = vshrl.u32 %v5162, 7
  %v5164 = vsub.s32 %v2961, %v5163
  %v5165 = vrot.slane %v4664, %v5164
  %v5166 = vsel %vm2966, %v5165, %v5161
  %v5167 = vlaneseq
  %v5168 = vshrl.u32 %v5167, 7
  %v5169 = vsub.s32 %v2968, %v5168
  %v5170 = vrot.slane %v4667, %v5169
  %v5171 = vsel %vm2973, %v5170, %v5166
  %v5172 = vlaneseq
  %v5173 = vshrl.u32 %v5172, 7
  %v5174 = vsub.s32 %v2975, %v5173
  %v5175 = vrot.slane %v4670, %v5174
  %v5176 = vsel %vm2980, %v5175, %v5171
  %v5177 = vlaneseq
  %v5178 = vshrl.u32 %v5177, 7
  %v5179 = vsub.s32 %v2982, %v5178
  %v5180 = vrot.slane %v4673, %v5179
  %v5181 = vsel %vm2987, %v5180, %v5176
  %v5182 = vlaneseq
  %v5183 = vshrl.u32 %v5182, 7
  %v5184 = vsub.s32 %v2879, %v5183
  %v5185 = vrot.slane %v4676, %v5184
  %v5186 = vlaneseq
  %v5187 = vshrl.u32 %v5186, 7
  %v5188 = vsub.s32 %v2884, %v5187
  %v5189 = vrot.slane %v4679, %v5188
  %v5190 = vsel %vm2889, %v5189, %v5185
  %v5191 = vlaneseq
  %v5192 = vshrl.u32 %v5191, 7
  %v5193 = vsub.s32 %v2891, %v5192
  %v5194 = vrot.slane %v4682, %v5193
  %v5195 = vsel %vm2896, %v5194, %v5190
  %v5196 = vlaneseq
  %v5197 = vshrl.u32 %v5196, 7
  %v5198 = vsub.s32 %v2898, %v5197
  %v5199 = vrot.slane %v4685, %v5198
  %v5200 = vsel %vm2903, %v5199, %v5195
  %v5201 = vlaneseq
  %v5202 = vshrl.u32 %v5201, 7
  %v5203 = vsub.s32 %v2905, %v5202
  %v5204 = vrot.slane %v4688, %v5203
  %v5205 = vsel %vm2910, %v5204, %v5200
  %v5206 = vlaneseq
  %v5207 = vshrl.u32 %v5206, 7
  %v5208 = vsub.s32 %v2912, %v5207
  %v5209 = vrot.slane %v4691, %v5208
  %v5210 = vsel %vm2917, %v5209, %v5205
  %v5211 = vlaneseq
  %v5212 = vshrl.u32 %v5211, 7
  %v5213 = vsub.s32 %v2919, %v5212
  %v5214 = vrot.slane %v4694, %v5213
  %v5215 = vsel %vm2924, %v5214, %v5210
  %v5216 = vlaneseq
  %v5217 = vshrl.u32 %v5216, 7
  %v5218 = vsub.s32 %v2926, %v5217
  %v5219 = vrot.slane %v4697, %v5218
  %v5220 = vsel %vm2931, %v5219, %v5215
  %v5221 = vlaneseq
  %v5222 = vshrl.u32 %v5221, 7
  %v5223 = vsub.s32 %v2933, %v5222
  %v5224 = vrot.slane %v4700, %v5223
  %v5225 = vsel %vm2938, %v5224, %v5220
  %v5226 = vlaneseq
  %v5227 = vshrl.u32 %v5226, 7
  %v5228 = vsub.s32 %v2940, %v5227
  %v5229 = vrot.slane %v4703, %v5228
  %v5230 = vsel %vm2945, %v5229, %v5225
  %v5231 = vlaneseq
  %v5232 = vshrl.u32 %v5231, 7
  %v5233 = vsub.s32 %v2947, %v5232
  %v5234 = vrot.slane %v4706, %v5233
  %v5235 = vsel %vm2952, %v5234, %v5230
  %v5236 = vlaneseq
  %v5237 = vshrl.u32 %v5236, 7
  %v5238 = vsub.s32 %v2954, %v5237
  %v5239 = vrot.slane %v4709, %v5238
  %v5240 = vsel %vm2959, %v5239, %v5235
  %v5241 = vlaneseq
  %v5242 = vshrl.u32 %v5241, 7
  %v5243 = vsub.s32 %v2961, %v5242
  %v5244 = vrot.slane %v4712, %v5243
  %v5245 = vsel %vm2966, %v5244, %v5240
  %v5246 = vlaneseq
  %v5247 = vshrl.u32 %v5246, 7
  %v5248 = vsub.s32 %v2968, %v5247
  %v5249 = vrot.slane %v4715, %v5248
  %v5250 = vsel %vm2973, %v5249, %v5245
  %v5251 = vlaneseq
  %v5252 = vshrl.u32 %v5251, 7
  %v5253 = vsub.s32 %v2975, %v5252
  %v5254 = vrot.slane %v4718, %v5253
  %v5255 = vsel %vm2980, %v5254, %v5250
  %v5256 = vlaneseq
  %v5257 = vshrl.u32 %v5256, 7
  %v5258 = vsub.s32 %v2982, %v5257
  %v5259 = vrot.slane %v4721, %v5258
  %v5260 = vsel %vm2987, %v5259, %v5255
  %v5261 = vlaneseq
  %v5262 = vshrl.u32 %v5261, 7
  %v5263 = vsub.s32 %v2879, %v5262
  %v5264 = vrot.slane %v4724, %v5263
  %v5265 = vlaneseq
  %v5266 = vshrl.u32 %v5265, 7
  %v5267 = vsub.s32 %v2884, %v5266
  %v5268 = vrot.slane %v4727, %v5267
  %v5269 = vsel %vm2889, %v5268, %v5264
  %v5270 = vlaneseq
  %v5271 = vshrl.u32 %v5270, 7
  %v5272 = vsub.s32 %v2891, %v5271
  %v5273 = vrot.slane %v4730, %v5272
  %v5274 = vsel %vm2896, %v5273, %v5269
  %v5275 = vlaneseq
  %v5276 = vshrl.u32 %v5275, 7
  %v5277 = vsub.s32 %v2898, %v5276
  %v5278 = vrot.slane %v4733, %v5277
  %v5279 = vsel %vm2903, %v5278, %v5274
  %v5280 = vlaneseq
  %v5281 = vshrl.u32 %v5280, 7
  %v5282 = vsub.s32 %v2905, %v5281
  %v5283 = vrot.slane %v4736, %v5282
  %v5284 = vsel %vm2910, %v5283, %v5279
  %v5285 = vlaneseq
  %v5286 = vshrl.u32 %v5285, 7
  %v5287 = vsub.s32 %v2912, %v5286
  %v5288 = vrot.slane %v4739, %v5287
  %v5289 = vsel %vm2917, %v5288, %v5284
  %v5290 = vlaneseq
  %v5291 = vshrl.u32 %v5290, 7
  %v5292 = vsub.s32 %v2919, %v5291
  %v5293 = vrot.slane %v4742, %v5292
  %v5294 = vsel %vm2924, %v5293, %v5289
  %v5295 = vlaneseq
  %v5296 = vshrl.u32 %v5295, 7
  %v5297 = vsub.s32 %v2926, %v5296
  %v5298 = vrot.slane %v4745, %v5297
  %v5299 = vsel %vm2931, %v5298, %v5294
  %v5300 = vlaneseq
  %v5301 = vshrl.u32 %v5300, 7
  %v5302 = vsub.s32 %v2933, %v5301
  %v5303 = vrot.slane %v4748, %v5302
  %v5304 = vsel %vm2938, %v5303, %v5299
  %v5305 = vlaneseq
  %v5306 = vshrl.u32 %v5305, 7
  %v5307 = vsub.s32 %v2940, %v5306
  %v5308 = vrot.slane %v4751, %v5307
  %v5309 = vsel %vm2945, %v5308, %v5304
  %v5310 = vlaneseq
  %v5311 = vshrl.u32 %v5310, 7
  %v5312 = vsub.s32 %v2947, %v5311
  %v5313 = vrot.slane %v4754, %v5312
  %v5314 = vsel %vm2952, %v5313, %v5309
  %v5315 = vlaneseq
  %v5316 = vshrl.u32 %v5315, 7
  %v5317 = vsub.s32 %v2954, %v5316
  %v5318 = vrot.slane %v4757, %v5317
  %v5319 = vsel %vm2959, %v5318, %v5314
  %v5320 = vlaneseq
  %v5321 = vshrl.u32 %v5320, 7
  %v5322 = vsub.s32 %v2961, %v5321
  %v5323 = vrot.slane %v4760, %v5322
  %v5324 = vsel %vm2966, %v5323, %v5319
  %v5325 = vlaneseq
  %v5326 = vshrl.u32 %v5325, 7
  %v5327 = vsub.s32 %v2968, %v5326
  %v5328 = vrot.slane %v4763, %v5327
  %v5329 = vsel %vm2973, %v5328, %v5324
  %v5330 = vlaneseq
  %v5331 = vshrl.u32 %v5330, 7
  %v5332 = vsub.s32 %v2975, %v5331
  %v5333 = vrot.slane %v4766, %v5332
  %v5334 = vsel %vm2980, %v5333, %v5329
  %v5335 = vlaneseq
  %v5336 = vshrl.u32 %v5335, 7
  %v5337 = vsub.s32 %v2982, %v5336
  %v5338 = vrot.slane %v4769, %v5337
  %v5339 = vsel %vm2987, %v5338, %v5334
  %v5340 = vlaneseq
  %v5341 = vshrl.u32 %v5340, 7
  %v5342 = vsub.s32 %v2879, %v5341
  %v5343 = vrot.slane %v4772, %v5342
  %v5344 = vlaneseq
  %v5345 = vshrl.u32 %v5344, 7
  %v5346 = vsub.s32 %v2884, %v5345
  %v5347 = vrot.slane %v4775, %v5346
  %v5348 = vsel %vm2889, %v5347, %v5343
  %v5349 = vlaneseq
  %v5350 = vshrl.u32 %v5349, 7
  %v5351 = vsub.s32 %v2891, %v5350
  %v5352 = vrot.slane %v4778, %v5351
  %v5353 = vsel %vm2896, %v5352, %v5348
  %v5354 = vlaneseq
  %v5355 = vshrl.u32 %v5354, 7
  %v5356 = vsub.s32 %v2898, %v5355
  %v5357 = vrot.slane %v4781, %v5356
  %v5358 = vsel %vm2903, %v5357, %v5353
  %v5359 = vlaneseq
  %v5360 = vshrl.u32 %v5359, 7
  %v5361 = vsub.s32 %v2905, %v5360
  %v5362 = vrot.slane %v4784, %v5361
  %v5363 = vsel %vm2910, %v5362, %v5358
  %v5364 = vlaneseq
  %v5365 = vshrl.u32 %v5364, 7
  %v5366 = vsub.s32 %v2912, %v5365
  %v5367 = vrot.slane %v4787, %v5366
  %v5368 = vsel %vm2917, %v5367, %v5363
  %v5369 = vlaneseq
  %v5370 = vshrl.u32 %v5369, 7
  %v5371 = vsub.s32 %v2919, %v5370
  %v5372 = vrot.slane %v4790, %v5371
  %v5373 = vsel %vm2924, %v5372, %v5368
  %v5374 = vlaneseq
  %v5375 = vshrl.u32 %v5374, 7
  %v5376 = vsub.s32 %v2926, %v5375
  %v5377 = vrot.slane %v4793, %v5376
  %v5378 = vsel %vm2931, %v5377, %v5373
  %v5379 = vlaneseq
  %v5380 = vshrl.u32 %v5379, 7
  %v5381 = vsub.s32 %v2933, %v5380
  %v5382 = vrot.slane %v4796, %v5381
  %v5383 = vsel %vm2938, %v5382, %v5378
  %v5384 = vlaneseq
  %v5385 = vshrl.u32 %v5384, 7
  %v5386 = vsub.s32 %v2940, %v5385
  %v5387 = vrot.slane %v4799, %v5386
  %v5388 = vsel %vm2945, %v5387, %v5383
  %v5389 = vlaneseq
  %v5390 = vshrl.u32 %v5389, 7
  %v5391 = vsub.s32 %v2947, %v5390
  %v5392 = vrot.slane %v4802, %v5391
  %v5393 = vsel %vm2952, %v5392, %v5388
  %v5394 = vlaneseq
  %v5395 = vshrl.u32 %v5394, 7
  %v5396 = vsub.s32 %v2954, %v5395
  %v5397 = vrot.slane %v4805, %v5396
  %v5398 = vsel %vm2959, %v5397, %v5393
  %v5399 = vlaneseq
  %v5400 = vshrl.u32 %v5399, 7
  %v5401 = vsub.s32 %v2961, %v5400
  %v5402 = vrot.slane %v4808, %v5401
  %v5403 = vsel %vm2966, %v5402, %v5398
  %v5404 = vlaneseq
  %v5405 = vshrl.u32 %v5404, 7
  %v5406 = vsub.s32 %v2968, %v5405
  %v5407 = vrot.slane %v4811, %v5406
  %v5408 = vsel %vm2973, %v5407, %v5403
  %v5409 = vlaneseq
  %v5410 = vshrl.u32 %v5409, 7
  %v5411 = vsub.s32 %v2975, %v5410
  %v5412 = vrot.slane %v4814, %v5411
  %v5413 = vsel %vm2980, %v5412, %v5408
  %v5414 = vlaneseq
  %v5415 = vshrl.u32 %v5414, 7
  %v5416 = vsub.s32 %v2982, %v5415
  %v5417 = vrot.slane %v4817, %v5416
  %v5418 = vsel %vm2987, %v5417, %v5413
  %v5419 = vlaneseq
  %v5420 = vshrl.u32 %v5419, 7
  %v5421 = vsub.s32 %v2879, %v5420
  %v5422 = vrot.slane %v4820, %v5421
  %v5423 = vlaneseq
  %v5424 = vshrl.u32 %v5423, 7
  %v5425 = vsub.s32 %v2884, %v5424
  %v5426 = vrot.slane %v4823, %v5425
  %v5427 = vsel %vm2889, %v5426, %v5422
  %v5428 = vlaneseq
  %v5429 = vshrl.u32 %v5428, 7
  %v5430 = vsub.s32 %v2891, %v5429
  %v5431 = vrot.slane %v4826, %v5430
  %v5432 = vsel %vm2896, %v5431, %v5427
  %v5433 = vlaneseq
  %v5434 = vshrl.u32 %v5433, 7
  %v5435 = vsub.s32 %v2898, %v5434
  %v5436 = vrot.slane %v4829, %v5435
  %v5437 = vsel %vm2903, %v5436, %v5432
  %v5438 = vlaneseq
  %v5439 = vshrl.u32 %v5438, 7
  %v5440 = vsub.s32 %v2905, %v5439
  %v5441 = vrot.slane %v4832, %v5440
  %v5442 = vsel %vm2910, %v5441, %v5437
  %v5443 = vlaneseq
  %v5444 = vshrl.u32 %v5443, 7
  %v5445 = vsub.s32 %v2912, %v5444
  %v5446 = vrot.slane %v4835, %v5445
  %v5447 = vsel %vm2917, %v5446, %v5442
  %v5448 = vlaneseq
  %v5449 = vshrl.u32 %v5448, 7
  %v5450 = vsub.s32 %v2919, %v5449
  %v5451 = vrot.slane %v4838, %v5450
  %v5452 = vsel %vm2924, %v5451, %v5447
  %v5453 = vlaneseq
  %v5454 = vshrl.u32 %v5453, 7
  %v5455 = vsub.s32 %v2926, %v5454
  %v5456 = vrot.slane %v4841, %v5455
  %v5457 = vsel %vm2931, %v5456, %v5452
  %v5458 = vlaneseq
  %v5459 = vshrl.u32 %v5458, 7
  %v5460 = vsub.s32 %v2933, %v5459
  %v5461 = vrot.slane %v4844, %v5460
  %v5462 = vsel %vm2938, %v5461, %v5457
  %v5463 = vlaneseq
  %v5464 = vshrl.u32 %v5463, 7
  %v5465 = vsub.s32 %v2940, %v5464
  %v5466 = vrot.slane %v4847, %v5465
  %v5467 = vsel %vm2945, %v5466, %v5462
  %v5468 = vlaneseq
  %v5469 = vshrl.u32 %v5468, 7
  %v5470 = vsub.s32 %v2947, %v5469
  %v5471 = vrot.slane %v4850, %v5470
  %v5472 = vsel %vm2952, %v5471, %v5467
  %v5473 = vlaneseq
  %v5474 = vshrl.u32 %v5473, 7
  %v5475 = vsub.s32 %v2954, %v5474
  %v5476 = vrot.slane %v4853, %v5475
  %v5477 = vsel %vm2959, %v5476, %v5472
  %v5478 = vlaneseq
  %v5479 = vshrl.u32 %v5478, 7
  %v5480 = vsub.s32 %v2961, %v5479
  %v5481 = vrot.slane %v4856, %v5480
  %v5482 = vsel %vm2966, %v5481, %v5477
  %v5483 = vlaneseq
  %v5484 = vshrl.u32 %v5483, 7
  %v5485 = vsub.s32 %v2968, %v5484
  %v5486 = vrot.slane %v4859, %v5485
  %v5487 = vsel %vm2973, %v5486, %v5482
  %v5488 = vlaneseq
  %v5489 = vshrl.u32 %v5488, 7
  %v5490 = vsub.s32 %v2975, %v5489
  %v5491 = vrot.slane %v4862, %v5490
  %v5492 = vsel %vm2980, %v5491, %v5487
  %v5493 = vlaneseq
  %v5494 = vshrl.u32 %v5493, 7
  %v5495 = vsub.s32 %v2982, %v5494
  %v5496 = vrot.slane %v4865, %v5495
  %v5497 = vsel %vm2987, %v5496, %v5492
  %v5498 = vsel %vm3542, %v5023, %v4944
  %v5499 = vsel %vm3544, %v5102, %v5498
  %v5500 = vsel %vm3546, %v5181, %v5499
  %v5501 = vsel %vm3548, %v5260, %v5500
  %v5502 = vsel %vm3550, %v5339, %v5501
  %v5503 = vsel %vm3552, %v5418, %v5502
  %v5504 = vsel %vm3554, %v5497, %v5503
  %v5506 = vadd.f32 %v1566, %v5504
  %v5507 = vsub.f32 1.0, %v5506
  %v5508 = vmul.f32 %v3559, %v5507
  %v5509 = vadd.f32 %v1570, %v5508
  %v5510 = vmul.f32 %v3559, %v5509
  %v5511 = vadd.f32 %v5506, %v5510
  %v5512 = vadd.f32 %v1572, %v3560
  %v5513 = vadd.f32 %v5512, %v3559
  %v5515 = vlaneseq
  %v5516 = vshrl.u32 %v5515, 7
  %v5517 = vsub.s32 0, %v5516
  %v5518 = vrot.slane %v5510, %v5517
  %5520 = vbcast.lane.b32.xlu0 %v5518, 256
  %v5521 = vpop.permute.xlu0 %5520
  %s5523 = sor.u32 256, 8
  %5524 = vbcast.lane.b32.xlu0 %v5518, %s5523
  %v5525 = vpop.permute.xlu0 %5524
  %s5527 = sor.u32 256, 16
  %5528 = vbcast.lane.b32.xlu0 %v5518, %s5527
  %v5529 = vpop.permute.xlu0 %5528
  %s5531 = sor.u32 256, 24
  %5532 = vbcast.lane.b32.xlu0 %v5518, %s5531
  %v5533 = vpop.permute.xlu0 %5532
  %s5535 = sor.u32 256, 32
  %5536 = vbcast.lane.b32.xlu0 %v5518, %s5535
  %v5537 = vpop.permute.xlu0 %5536
  %s5539 = sor.u32 256, 40
  %5540 = vbcast.lane.b32.xlu0 %v5518, %s5539
  %v5541 = vpop.permute.xlu0 %5540
  %s5543 = sor.u32 256, 48
  %5544 = vbcast.lane.b32.xlu0 %v5518, %s5543
  %v5545 = vpop.permute.xlu0 %5544
  %s5547 = sor.u32 256, 56
  %5548 = vbcast.lane.b32.xlu0 %v5518, %s5547
  %v5549 = vpop.permute.xlu0 %5548
  %s5551 = sor.u32 256, 64
  %5552 = vbcast.lane.b32.xlu0 %v5518, %s5551
  %v5553 = vpop.permute.xlu0 %5552
  %s5555 = sor.u32 256, 72
  %5556 = vbcast.lane.b32.xlu0 %v5518, %s5555
  %v5557 = vpop.permute.xlu0 %5556
  %s5559 = sor.u32 256, 80
  %5560 = vbcast.lane.b32.xlu0 %v5518, %s5559
  %v5561 = vpop.permute.xlu0 %5560
  %s5563 = sor.u32 256, 88
  %5564 = vbcast.lane.b32.xlu0 %v5518, %s5563
  %v5565 = vpop.permute.xlu0 %5564
  %s5567 = sor.u32 256, 96
  %5568 = vbcast.lane.b32.xlu0 %v5518, %s5567
  %v5569 = vpop.permute.xlu0 %5568
  %s5571 = sor.u32 256, 104
  %5572 = vbcast.lane.b32.xlu0 %v5518, %s5571
  %v5573 = vpop.permute.xlu0 %5572
  %s5575 = sor.u32 256, 112
  %5576 = vbcast.lane.b32.xlu0 %v5518, %s5575
  %v5577 = vpop.permute.xlu0 %5576
  %s5579 = sor.u32 256, 120
  %5580 = vbcast.lane.b32.xlu0 %v5518, %s5579
  %v5581 = vpop.permute.xlu0 %5580
  %v5582 = vlaneseq
  %v5583 = vshrl.u32 %v5582, 7
  %v5584 = vsub.s32 1, %v5583
  %v5585 = vrot.slane %v5510, %v5584
  %5587 = vbcast.lane.b32.xlu0 %v5585, 256
  %v5588 = vpop.permute.xlu0 %5587
  %s5590 = sor.u32 256, 8
  %5591 = vbcast.lane.b32.xlu0 %v5585, %s5590
  %v5592 = vpop.permute.xlu0 %5591
  %s5594 = sor.u32 256, 16
  %5595 = vbcast.lane.b32.xlu0 %v5585, %s5594
  %v5596 = vpop.permute.xlu0 %5595
  %s5598 = sor.u32 256, 24
  %5599 = vbcast.lane.b32.xlu0 %v5585, %s5598
  %v5600 = vpop.permute.xlu0 %5599
  %s5602 = sor.u32 256, 32
  %5603 = vbcast.lane.b32.xlu0 %v5585, %s5602
  %v5604 = vpop.permute.xlu0 %5603
  %s5606 = sor.u32 256, 40
  %5607 = vbcast.lane.b32.xlu0 %v5585, %s5606
  %v5608 = vpop.permute.xlu0 %5607
  %s5610 = sor.u32 256, 48
  %5611 = vbcast.lane.b32.xlu0 %v5585, %s5610
  %v5612 = vpop.permute.xlu0 %5611
  %s5614 = sor.u32 256, 56
  %5615 = vbcast.lane.b32.xlu0 %v5585, %s5614
  %v5616 = vpop.permute.xlu0 %5615
  %s5618 = sor.u32 256, 64
  %5619 = vbcast.lane.b32.xlu0 %v5585, %s5618
  %v5620 = vpop.permute.xlu0 %5619
  %s5622 = sor.u32 256, 72
  %5623 = vbcast.lane.b32.xlu0 %v5585, %s5622
  %v5624 = vpop.permute.xlu0 %5623
  %s5626 = sor.u32 256, 80
  %5627 = vbcast.lane.b32.xlu0 %v5585, %s5626
  %v5628 = vpop.permute.xlu0 %5627
  %s5630 = sor.u32 256, 88
  %5631 = vbcast.lane.b32.xlu0 %v5585, %s5630
  %v5632 = vpop.permute.xlu0 %5631
  %s5634 = sor.u32 256, 96
  %5635 = vbcast.lane.b32.xlu0 %v5585, %s5634
  %v5636 = vpop.permute.xlu0 %5635
  %s5638 = sor.u32 256, 104
  %5639 = vbcast.lane.b32.xlu0 %v5585, %s5638
  %v5640 = vpop.permute.xlu0 %5639
  %s5642 = sor.u32 256, 112
  %5643 = vbcast.lane.b32.xlu0 %v5585, %s5642
  %v5644 = vpop.permute.xlu0 %5643
  %s5646 = sor.u32 256, 120
  %5647 = vbcast.lane.b32.xlu0 %v5585, %s5646
  %v5648 = vpop.permute.xlu0 %5647
  %v5649 = vlaneseq
  %v5650 = vshrl.u32 %v5649, 7
  %v5651 = vsub.s32 2, %v5650
  %v5652 = vrot.slane %v5510, %v5651
  %5654 = vbcast.lane.b32.xlu0 %v5652, 256
  %v5655 = vpop.permute.xlu0 %5654
  %s5657 = sor.u32 256, 8
  %5658 = vbcast.lane.b32.xlu0 %v5652, %s5657
  %v5659 = vpop.permute.xlu0 %5658
  %s5661 = sor.u32 256, 16
  %5662 = vbcast.lane.b32.xlu0 %v5652, %s5661
  %v5663 = vpop.permute.xlu0 %5662
  %s5665 = sor.u32 256, 24
  %5666 = vbcast.lane.b32.xlu0 %v5652, %s5665
  %v5667 = vpop.permute.xlu0 %5666
  %s5669 = sor.u32 256, 32
  %5670 = vbcast.lane.b32.xlu0 %v5652, %s5669
  %v5671 = vpop.permute.xlu0 %5670
  %s5673 = sor.u32 256, 40
  %5674 = vbcast.lane.b32.xlu0 %v5652, %s5673
  %v5675 = vpop.permute.xlu0 %5674
  %s5677 = sor.u32 256, 48
  %5678 = vbcast.lane.b32.xlu0 %v5652, %s5677
  %v5679 = vpop.permute.xlu0 %5678
  %s5681 = sor.u32 256, 56
  %5682 = vbcast.lane.b32.xlu0 %v5652, %s5681
  %v5683 = vpop.permute.xlu0 %5682
  %s5685 = sor.u32 256, 64
  %5686 = vbcast.lane.b32.xlu0 %v5652, %s5685
  %v5687 = vpop.permute.xlu0 %5686
  %s5689 = sor.u32 256, 72
  %5690 = vbcast.lane.b32.xlu0 %v5652, %s5689
  %v5691 = vpop.permute.xlu0 %5690
  %s5693 = sor.u32 256, 80
  %5694 = vbcast.lane.b32.xlu0 %v5652, %s5693
  %v5695 = vpop.permute.xlu0 %5694
  %s5697 = sor.u32 256, 88
  %5698 = vbcast.lane.b32.xlu0 %v5652, %s5697
  %v5699 = vpop.permute.xlu0 %5698
  %s5701 = sor.u32 256, 96
  %5702 = vbcast.lane.b32.xlu0 %v5652, %s5701
  %v5703 = vpop.permute.xlu0 %5702
  %s5705 = sor.u32 256, 104
  %5706 = vbcast.lane.b32.xlu0 %v5652, %s5705
  %v5707 = vpop.permute.xlu0 %5706
  %s5709 = sor.u32 256, 112
  %5710 = vbcast.lane.b32.xlu0 %v5652, %s5709
  %v5711 = vpop.permute.xlu0 %5710
  %s5713 = sor.u32 256, 120
  %5714 = vbcast.lane.b32.xlu0 %v5652, %s5713
  %v5715 = vpop.permute.xlu0 %5714
  %v5716 = vlaneseq
  %v5717 = vshrl.u32 %v5716, 7
  %v5718 = vsub.s32 3, %v5717
  %v5719 = vrot.slane %v5510, %v5718
  %5721 = vbcast.lane.b32.xlu0 %v5719, 256
  %v5722 = vpop.permute.xlu0 %5721
  %s5724 = sor.u32 256, 8
  %5725 = vbcast.lane.b32.xlu0 %v5719, %s5724
  %v5726 = vpop.permute.xlu0 %5725
  %s5728 = sor.u32 256, 16
  %5729 = vbcast.lane.b32.xlu0 %v5719, %s5728
  %v5730 = vpop.permute.xlu0 %5729
  %s5732 = sor.u32 256, 24
  %5733 = vbcast.lane.b32.xlu0 %v5719, %s5732
  %v5734 = vpop.permute.xlu0 %5733
  %s5736 = sor.u32 256, 32
  %5737 = vbcast.lane.b32.xlu0 %v5719, %s5736
  %v5738 = vpop.permute.xlu0 %5737
  %s5740 = sor.u32 256, 40
  %5741 = vbcast.lane.b32.xlu0 %v5719, %s5740
  %v5742 = vpop.permute.xlu0 %5741
  %s5744 = sor.u32 256, 48
  %5745 = vbcast.lane.b32.xlu0 %v5719, %s5744
  %v5746 = vpop.permute.xlu0 %5745
  %s5748 = sor.u32 256, 56
  %5749 = vbcast.lane.b32.xlu0 %v5719, %s5748
  %v5750 = vpop.permute.xlu0 %5749
  %s5752 = sor.u32 256, 64
  %5753 = vbcast.lane.b32.xlu0 %v5719, %s5752
  %v5754 = vpop.permute.xlu0 %5753
  %s5756 = sor.u32 256, 72
  %5757 = vbcast.lane.b32.xlu0 %v5719, %s5756
  %v5758 = vpop.permute.xlu0 %5757
  %s5760 = sor.u32 256, 80
  %5761 = vbcast.lane.b32.xlu0 %v5719, %s5760
  %v5762 = vpop.permute.xlu0 %5761
  %s5764 = sor.u32 256, 88
  %5765 = vbcast.lane.b32.xlu0 %v5719, %s5764
  %v5766 = vpop.permute.xlu0 %5765
  %s5768 = sor.u32 256, 96
  %5769 = vbcast.lane.b32.xlu0 %v5719, %s5768
  %v5770 = vpop.permute.xlu0 %5769
  %s5772 = sor.u32 256, 104
  %5773 = vbcast.lane.b32.xlu0 %v5719, %s5772
  %v5774 = vpop.permute.xlu0 %5773
  %s5776 = sor.u32 256, 112
  %5777 = vbcast.lane.b32.xlu0 %v5719, %s5776
  %v5778 = vpop.permute.xlu0 %5777
  %s5780 = sor.u32 256, 120
  %5781 = vbcast.lane.b32.xlu0 %v5719, %s5780
  %v5782 = vpop.permute.xlu0 %5781
  %v5783 = vlaneseq
  %v5784 = vshrl.u32 %v5783, 7
  %v5785 = vsub.s32 4, %v5784
  %v5786 = vrot.slane %v5510, %v5785
  %5788 = vbcast.lane.b32.xlu0 %v5786, 256
  %v5789 = vpop.permute.xlu0 %5788
  %s5791 = sor.u32 256, 8
  %5792 = vbcast.lane.b32.xlu0 %v5786, %s5791
  %v5793 = vpop.permute.xlu0 %5792
  %s5795 = sor.u32 256, 16
  %5796 = vbcast.lane.b32.xlu0 %v5786, %s5795
  %v5797 = vpop.permute.xlu0 %5796
  %s5799 = sor.u32 256, 24
  %5800 = vbcast.lane.b32.xlu0 %v5786, %s5799
  %v5801 = vpop.permute.xlu0 %5800
  %s5803 = sor.u32 256, 32
  %5804 = vbcast.lane.b32.xlu0 %v5786, %s5803
  %v5805 = vpop.permute.xlu0 %5804
  %s5807 = sor.u32 256, 40
  %5808 = vbcast.lane.b32.xlu0 %v5786, %s5807
  %v5809 = vpop.permute.xlu0 %5808
  %s5811 = sor.u32 256, 48
  %5812 = vbcast.lane.b32.xlu0 %v5786, %s5811
  %v5813 = vpop.permute.xlu0 %5812
  %s5815 = sor.u32 256, 56
  %5816 = vbcast.lane.b32.xlu0 %v5786, %s5815
  %v5817 = vpop.permute.xlu0 %5816
  %s5819 = sor.u32 256, 64
  %5820 = vbcast.lane.b32.xlu0 %v5786, %s5819
  %v5821 = vpop.permute.xlu0 %5820
  %s5823 = sor.u32 256, 72
  %5824 = vbcast.lane.b32.xlu0 %v5786, %s5823
  %v5825 = vpop.permute.xlu0 %5824
  %s5827 = sor.u32 256, 80
  %5828 = vbcast.lane.b32.xlu0 %v5786, %s5827
  %v5829 = vpop.permute.xlu0 %5828
  %s5831 = sor.u32 256, 88
  %5832 = vbcast.lane.b32.xlu0 %v5786, %s5831
  %v5833 = vpop.permute.xlu0 %5832
  %s5835 = sor.u32 256, 96
  %5836 = vbcast.lane.b32.xlu0 %v5786, %s5835
  %v5837 = vpop.permute.xlu0 %5836
  %s5839 = sor.u32 256, 104
  %5840 = vbcast.lane.b32.xlu0 %v5786, %s5839
  %v5841 = vpop.permute.xlu0 %5840
  %s5843 = sor.u32 256, 112
  %5844 = vbcast.lane.b32.xlu0 %v5786, %s5843
  %v5845 = vpop.permute.xlu0 %5844
  %s5847 = sor.u32 256, 120
  %5848 = vbcast.lane.b32.xlu0 %v5786, %s5847
  %v5849 = vpop.permute.xlu0 %5848
  %v5850 = vlaneseq
  %v5851 = vshrl.u32 %v5850, 7
  %v5852 = vsub.s32 5, %v5851
  %v5853 = vrot.slane %v5510, %v5852
  %5855 = vbcast.lane.b32.xlu0 %v5853, 256
  %v5856 = vpop.permute.xlu0 %5855
  %s5858 = sor.u32 256, 8
  %5859 = vbcast.lane.b32.xlu0 %v5853, %s5858
  %v5860 = vpop.permute.xlu0 %5859
  %s5862 = sor.u32 256, 16
  %5863 = vbcast.lane.b32.xlu0 %v5853, %s5862
  %v5864 = vpop.permute.xlu0 %5863
  %s5866 = sor.u32 256, 24
  %5867 = vbcast.lane.b32.xlu0 %v5853, %s5866
  %v5868 = vpop.permute.xlu0 %5867
  %s5870 = sor.u32 256, 32
  %5871 = vbcast.lane.b32.xlu0 %v5853, %s5870
  %v5872 = vpop.permute.xlu0 %5871
  %s5874 = sor.u32 256, 40
  %5875 = vbcast.lane.b32.xlu0 %v5853, %s5874
  %v5876 = vpop.permute.xlu0 %5875
  %s5878 = sor.u32 256, 48
  %5879 = vbcast.lane.b32.xlu0 %v5853, %s5878
  %v5880 = vpop.permute.xlu0 %5879
  %s5882 = sor.u32 256, 56
  %5883 = vbcast.lane.b32.xlu0 %v5853, %s5882
  %v5884 = vpop.permute.xlu0 %5883
  %s5886 = sor.u32 256, 64
  %5887 = vbcast.lane.b32.xlu0 %v5853, %s5886
  %v5888 = vpop.permute.xlu0 %5887
  %s5890 = sor.u32 256, 72
  %5891 = vbcast.lane.b32.xlu0 %v5853, %s5890
  %v5892 = vpop.permute.xlu0 %5891
  %s5894 = sor.u32 256, 80
  %5895 = vbcast.lane.b32.xlu0 %v5853, %s5894
  %v5896 = vpop.permute.xlu0 %5895
  %s5898 = sor.u32 256, 88
  %5899 = vbcast.lane.b32.xlu0 %v5853, %s5898
  %v5900 = vpop.permute.xlu0 %5899
  %s5902 = sor.u32 256, 96
  %5903 = vbcast.lane.b32.xlu0 %v5853, %s5902
  %v5904 = vpop.permute.xlu0 %5903
  %s5906 = sor.u32 256, 104
  %5907 = vbcast.lane.b32.xlu0 %v5853, %s5906
  %v5908 = vpop.permute.xlu0 %5907
  %s5910 = sor.u32 256, 112
  %5911 = vbcast.lane.b32.xlu0 %v5853, %s5910
  %v5912 = vpop.permute.xlu0 %5911
  %s5914 = sor.u32 256, 120
  %5915 = vbcast.lane.b32.xlu0 %v5853, %s5914
  %v5916 = vpop.permute.xlu0 %5915
  %v5917 = vlaneseq
  %v5918 = vshrl.u32 %v5917, 7
  %v5919 = vsub.s32 6, %v5918
  %v5920 = vrot.slane %v5510, %v5919
  %5922 = vbcast.lane.b32.xlu0 %v5920, 256
  %v5923 = vpop.permute.xlu0 %5922
  %s5925 = sor.u32 256, 8
  %5926 = vbcast.lane.b32.xlu0 %v5920, %s5925
  %v5927 = vpop.permute.xlu0 %5926
  %s5929 = sor.u32 256, 16
  %5930 = vbcast.lane.b32.xlu0 %v5920, %s5929
  %v5931 = vpop.permute.xlu0 %5930
  %s5933 = sor.u32 256, 24
  %5934 = vbcast.lane.b32.xlu0 %v5920, %s5933
  %v5935 = vpop.permute.xlu0 %5934
  %s5937 = sor.u32 256, 32
  %5938 = vbcast.lane.b32.xlu0 %v5920, %s5937
  %v5939 = vpop.permute.xlu0 %5938
  %s5941 = sor.u32 256, 40
  %5942 = vbcast.lane.b32.xlu0 %v5920, %s5941
  %v5943 = vpop.permute.xlu0 %5942
  %s5945 = sor.u32 256, 48
  %5946 = vbcast.lane.b32.xlu0 %v5920, %s5945
  %v5947 = vpop.permute.xlu0 %5946
  %s5949 = sor.u32 256, 56
  %5950 = vbcast.lane.b32.xlu0 %v5920, %s5949
  %v5951 = vpop.permute.xlu0 %5950
  %s5953 = sor.u32 256, 64
  %5954 = vbcast.lane.b32.xlu0 %v5920, %s5953
  %v5955 = vpop.permute.xlu0 %5954
  %s5957 = sor.u32 256, 72
  %5958 = vbcast.lane.b32.xlu0 %v5920, %s5957
  %v5959 = vpop.permute.xlu0 %5958
  %s5961 = sor.u32 256, 80
  %5962 = vbcast.lane.b32.xlu0 %v5920, %s5961
  %v5963 = vpop.permute.xlu0 %5962
  %s5965 = sor.u32 256, 88
  %5966 = vbcast.lane.b32.xlu0 %v5920, %s5965
  %v5967 = vpop.permute.xlu0 %5966
  %s5969 = sor.u32 256, 96
  %5970 = vbcast.lane.b32.xlu0 %v5920, %s5969
  %v5971 = vpop.permute.xlu0 %5970
  %s5973 = sor.u32 256, 104
  %5974 = vbcast.lane.b32.xlu0 %v5920, %s5973
  %v5975 = vpop.permute.xlu0 %5974
  %s5977 = sor.u32 256, 112
  %5978 = vbcast.lane.b32.xlu0 %v5920, %s5977
  %v5979 = vpop.permute.xlu0 %5978
  %s5981 = sor.u32 256, 120
  %5982 = vbcast.lane.b32.xlu0 %v5920, %s5981
  %v5983 = vpop.permute.xlu0 %5982
  %v5984 = vlaneseq
  %v5985 = vshrl.u32 %v5984, 7
  %v5986 = vsub.s32 7, %v5985
  %v5987 = vrot.slane %v5510, %v5986
  %5989 = vbcast.lane.b32.xlu0 %v5987, 256
  %v5990 = vpop.permute.xlu0 %5989
  %s5992 = sor.u32 256, 8
  %5993 = vbcast.lane.b32.xlu0 %v5987, %s5992
  %v5994 = vpop.permute.xlu0 %5993
  %s5996 = sor.u32 256, 16
  %5997 = vbcast.lane.b32.xlu0 %v5987, %s5996
  %v5998 = vpop.permute.xlu0 %5997
  %s6000 = sor.u32 256, 24
  %6001 = vbcast.lane.b32.xlu0 %v5987, %s6000
  %v6002 = vpop.permute.xlu0 %6001
  %s6004 = sor.u32 256, 32
  %6005 = vbcast.lane.b32.xlu0 %v5987, %s6004
  %v6006 = vpop.permute.xlu0 %6005
  %s6008 = sor.u32 256, 40
  %6009 = vbcast.lane.b32.xlu0 %v5987, %s6008
  %v6010 = vpop.permute.xlu0 %6009
  %s6012 = sor.u32 256, 48
  %6013 = vbcast.lane.b32.xlu0 %v5987, %s6012
  %v6014 = vpop.permute.xlu0 %6013
  %s6016 = sor.u32 256, 56
  %6017 = vbcast.lane.b32.xlu0 %v5987, %s6016
  %v6018 = vpop.permute.xlu0 %6017
  %s6020 = sor.u32 256, 64
  %6021 = vbcast.lane.b32.xlu0 %v5987, %s6020
  %v6022 = vpop.permute.xlu0 %6021
  %s6024 = sor.u32 256, 72
  %6025 = vbcast.lane.b32.xlu0 %v5987, %s6024
  %v6026 = vpop.permute.xlu0 %6025
  %s6028 = sor.u32 256, 80
  %6029 = vbcast.lane.b32.xlu0 %v5987, %s6028
  %v6030 = vpop.permute.xlu0 %6029
  %s6032 = sor.u32 256, 88
  %6033 = vbcast.lane.b32.xlu0 %v5987, %s6032
  %v6034 = vpop.permute.xlu0 %6033
  %s6036 = sor.u32 256, 96
  %6037 = vbcast.lane.b32.xlu0 %v5987, %s6036
  %v6038 = vpop.permute.xlu0 %6037
  %s6040 = sor.u32 256, 104
  %6041 = vbcast.lane.b32.xlu0 %v5987, %s6040
  %v6042 = vpop.permute.xlu0 %6041
  %s6044 = sor.u32 256, 112
  %6045 = vbcast.lane.b32.xlu0 %v5987, %s6044
  %v6046 = vpop.permute.xlu0 %6045
  %s6048 = sor.u32 256, 120
  %6049 = vbcast.lane.b32.xlu0 %v5987, %s6048
  %v6050 = vpop.permute.xlu0 %6049
  %v6179 = vadd.f32 %v4226, %v5521
  %v6180 = vadd.f32 %v4227, %v5525
  %v6181 = vadd.f32 %v4228, %v5529
  %v6182 = vadd.f32 %v4229, %v5533
  %v6183 = vadd.f32 %v4230, %v5537
  %v6184 = vadd.f32 %v4231, %v5541
  %v6185 = vadd.f32 %v4232, %v5545
  %v6186 = vadd.f32 %v4233, %v5549
  %v6187 = vadd.f32 %v4234, %v5553
  %v6188 = vadd.f32 %v4235, %v5557
  %v6189 = vadd.f32 %v4236, %v5561
  %v6190 = vadd.f32 %v4237, %v5565
  %v6191 = vadd.f32 %v4238, %v5569
  %v6192 = vadd.f32 %v4239, %v5573
  %v6193 = vadd.f32 %v4240, %v5577
  %v6194 = vadd.f32 %v4241, %v5581
  %v6195 = vadd.f32 %v4242, %v5588
  %v6196 = vadd.f32 %v4243, %v5592
  %v6197 = vadd.f32 %v4244, %v5596
  %v6198 = vadd.f32 %v4245, %v5600
  %v6199 = vadd.f32 %v4246, %v5604
  %v6200 = vadd.f32 %v4247, %v5608
  %v6201 = vadd.f32 %v4248, %v5612
  %v6202 = vadd.f32 %v4249, %v5616
  %v6203 = vadd.f32 %v4250, %v5620
  %v6204 = vadd.f32 %v4251, %v5624
  %v6205 = vadd.f32 %v4252, %v5628
  %v6206 = vadd.f32 %v4253, %v5632
  %v6207 = vadd.f32 %v4254, %v5636
  %v6208 = vadd.f32 %v4255, %v5640
  %v6209 = vadd.f32 %v4256, %v5644
  %v6210 = vadd.f32 %v4257, %v5648
  %v6211 = vadd.f32 %v4258, %v5655
  %v6212 = vadd.f32 %v4259, %v5659
  %v6213 = vadd.f32 %v4260, %v5663
  %v6214 = vadd.f32 %v4261, %v5667
  %v6215 = vadd.f32 %v4262, %v5671
  %v6216 = vadd.f32 %v4263, %v5675
  %v6217 = vadd.f32 %v4264, %v5679
  %v6218 = vadd.f32 %v4265, %v5683
  %v6219 = vadd.f32 %v4266, %v5687
  %v6220 = vadd.f32 %v4267, %v5691
  %v6221 = vadd.f32 %v4268, %v5695
  %v6222 = vadd.f32 %v4269, %v5699
  %v6223 = vadd.f32 %v4270, %v5703
  %v6224 = vadd.f32 %v4271, %v5707
  %v6225 = vadd.f32 %v4272, %v5711
  %v6226 = vadd.f32 %v4273, %v5715
  %v6227 = vadd.f32 %v4274, %v5722
  %v6228 = vadd.f32 %v4275, %v5726
  %v6229 = vadd.f32 %v4276, %v5730
  %v6230 = vadd.f32 %v4277, %v5734
  %v6231 = vadd.f32 %v4278, %v5738
  %v6232 = vadd.f32 %v4279, %v5742
  %v6233 = vadd.f32 %v4280, %v5746
  %v6234 = vadd.f32 %v4281, %v5750
  %v6235 = vadd.f32 %v4282, %v5754
  %v6236 = vadd.f32 %v4283, %v5758
  %v6237 = vadd.f32 %v4284, %v5762
  %v6238 = vadd.f32 %v4285, %v5766
  %v6239 = vadd.f32 %v4286, %v5770
  %v6240 = vadd.f32 %v4287, %v5774
  %v6241 = vadd.f32 %v4288, %v5778
  %v6242 = vadd.f32 %v4289, %v5782
  %v6243 = vadd.f32 %v4290, %v5789
  %v6244 = vadd.f32 %v4291, %v5793
  %v6245 = vadd.f32 %v4292, %v5797
  %v6246 = vadd.f32 %v4293, %v5801
  %v6247 = vadd.f32 %v4294, %v5805
  %v6248 = vadd.f32 %v4295, %v5809
  %v6249 = vadd.f32 %v4296, %v5813
  %v6250 = vadd.f32 %v4297, %v5817
  %v6251 = vadd.f32 %v4298, %v5821
  %v6252 = vadd.f32 %v4299, %v5825
  %v6253 = vadd.f32 %v4300, %v5829
  %v6254 = vadd.f32 %v4301, %v5833
  %v6255 = vadd.f32 %v4302, %v5837
  %v6256 = vadd.f32 %v4303, %v5841
  %v6257 = vadd.f32 %v4304, %v5845
  %v6258 = vadd.f32 %v4305, %v5849
  %v6259 = vadd.f32 %v4306, %v5856
  %v6260 = vadd.f32 %v4307, %v5860
  %v6261 = vadd.f32 %v4308, %v5864
  %v6262 = vadd.f32 %v4309, %v5868
  %v6263 = vadd.f32 %v4310, %v5872
  %v6264 = vadd.f32 %v4311, %v5876
  %v6265 = vadd.f32 %v4312, %v5880
  %v6266 = vadd.f32 %v4313, %v5884
  %v6267 = vadd.f32 %v4314, %v5888
  %v6268 = vadd.f32 %v4315, %v5892
  %v6269 = vadd.f32 %v4316, %v5896
  %v6270 = vadd.f32 %v4317, %v5900
  %v6271 = vadd.f32 %v4318, %v5904
  %v6272 = vadd.f32 %v4319, %v5908
  %v6273 = vadd.f32 %v4320, %v5912
  %v6274 = vadd.f32 %v4321, %v5916
  %v6275 = vadd.f32 %v4322, %v5923
  %v6276 = vadd.f32 %v4323, %v5927
  %v6277 = vadd.f32 %v4324, %v5931
  %v6278 = vadd.f32 %v4325, %v5935
  %v6279 = vadd.f32 %v4326, %v5939
  %v6280 = vadd.f32 %v4327, %v5943
  %v6281 = vadd.f32 %v4328, %v5947
  %v6282 = vadd.f32 %v4329, %v5951
  %v6283 = vadd.f32 %v4330, %v5955
  %v6284 = vadd.f32 %v4331, %v5959
  %v6285 = vadd.f32 %v4332, %v5963
  %v6286 = vadd.f32 %v4333, %v5967
  %v6287 = vadd.f32 %v4334, %v5971
  %v6288 = vadd.f32 %v4335, %v5975
  %v6289 = vadd.f32 %v4336, %v5979
  %v6290 = vadd.f32 %v4337, %v5983
  %v6291 = vadd.f32 %v4338, %v5990
  %v6292 = vadd.f32 %v4339, %v5994
  %v6293 = vadd.f32 %v4340, %v5998
  %v6294 = vadd.f32 %v4341, %v6002
  %v6295 = vadd.f32 %v4342, %v6006
  %v6296 = vadd.f32 %v4343, %v6010
  %v6297 = vadd.f32 %v4344, %v6014
  %v6298 = vadd.f32 %v4345, %v6018
  %v6299 = vadd.f32 %v4346, %v6022
  %v6300 = vadd.f32 %v4347, %v6026
  %v6301 = vadd.f32 %v4348, %v6030
  %v6302 = vadd.f32 %v4349, %v6034
  %v6303 = vadd.f32 %v4350, %v6038
  %v6304 = vadd.f32 %v4351, %v6042
  %v6305 = vadd.f32 %v4352, %v6046
  %v6306 = vadd.f32 %v4353, %v6050
  %6435 = vset.pattern.permute.xlu0 0
  %6436 = vperm.xlu0 %6435, %v6179
  %v6437 = vpop.permute.xlu0 %6436
  %6438 = vset.pattern.permute.xlu0 0
  %6439 = vperm.xlu0 %6438, %v6180
  %v6440 = vpop.permute.xlu0 %6439
  %6441 = vset.pattern.permute.xlu0 0
  %6442 = vperm.xlu0 %6441, %v6181
  %v6443 = vpop.permute.xlu0 %6442
  %6444 = vset.pattern.permute.xlu0 0
  %6445 = vperm.xlu0 %6444, %v6182
  %v6446 = vpop.permute.xlu0 %6445
  %6447 = vset.pattern.permute.xlu0 0
  %6448 = vperm.xlu0 %6447, %v6183
  %v6449 = vpop.permute.xlu0 %6448
  %6450 = vset.pattern.permute.xlu0 0
  %6451 = vperm.xlu0 %6450, %v6184
  %v6452 = vpop.permute.xlu0 %6451
  %6453 = vset.pattern.permute.xlu0 0
  %6454 = vperm.xlu0 %6453, %v6185
  %v6455 = vpop.permute.xlu0 %6454
  %6456 = vset.pattern.permute.xlu0 0
  %6457 = vperm.xlu0 %6456, %v6186
  %v6458 = vpop.permute.xlu0 %6457
  %6459 = vset.pattern.permute.xlu0 0
  %6460 = vperm.xlu0 %6459, %v6187
  %v6461 = vpop.permute.xlu0 %6460
  %6462 = vset.pattern.permute.xlu0 0
  %6463 = vperm.xlu0 %6462, %v6188
  %v6464 = vpop.permute.xlu0 %6463
  %6465 = vset.pattern.permute.xlu0 0
  %6466 = vperm.xlu0 %6465, %v6189
  %v6467 = vpop.permute.xlu0 %6466
  %6468 = vset.pattern.permute.xlu0 0
  %6469 = vperm.xlu0 %6468, %v6190
  %v6470 = vpop.permute.xlu0 %6469
  %6471 = vset.pattern.permute.xlu0 0
  %6472 = vperm.xlu0 %6471, %v6191
  %v6473 = vpop.permute.xlu0 %6472
  %6474 = vset.pattern.permute.xlu0 0
  %6475 = vperm.xlu0 %6474, %v6192
  %v6476 = vpop.permute.xlu0 %6475
  %6477 = vset.pattern.permute.xlu0 0
  %6478 = vperm.xlu0 %6477, %v6193
  %v6479 = vpop.permute.xlu0 %6478
  %6480 = vset.pattern.permute.xlu0 0
  %6481 = vperm.xlu0 %6480, %v6194
  %v6482 = vpop.permute.xlu0 %6481
  %6483 = vset.pattern.permute.xlu0 0
  %6484 = vperm.xlu0 %6483, %v6195
  %v6485 = vpop.permute.xlu0 %6484
  %6486 = vset.pattern.permute.xlu0 0
  %6487 = vperm.xlu0 %6486, %v6196
  %v6488 = vpop.permute.xlu0 %6487
  %6489 = vset.pattern.permute.xlu0 0
  %6490 = vperm.xlu0 %6489, %v6197
  %v6491 = vpop.permute.xlu0 %6490
  %6492 = vset.pattern.permute.xlu0 0
  %6493 = vperm.xlu0 %6492, %v6198
  %v6494 = vpop.permute.xlu0 %6493
  %6495 = vset.pattern.permute.xlu0 0
  %6496 = vperm.xlu0 %6495, %v6199
  %v6497 = vpop.permute.xlu0 %6496
  %6498 = vset.pattern.permute.xlu0 0
  %6499 = vperm.xlu0 %6498, %v6200
  %v6500 = vpop.permute.xlu0 %6499
  %6501 = vset.pattern.permute.xlu0 0
  %6502 = vperm.xlu0 %6501, %v6201
  %v6503 = vpop.permute.xlu0 %6502
  %6504 = vset.pattern.permute.xlu0 0
  %6505 = vperm.xlu0 %6504, %v6202
  %v6506 = vpop.permute.xlu0 %6505
  %6507 = vset.pattern.permute.xlu0 0
  %6508 = vperm.xlu0 %6507, %v6203
  %v6509 = vpop.permute.xlu0 %6508
  %6510 = vset.pattern.permute.xlu0 0
  %6511 = vperm.xlu0 %6510, %v6204
  %v6512 = vpop.permute.xlu0 %6511
  %6513 = vset.pattern.permute.xlu0 0
  %6514 = vperm.xlu0 %6513, %v6205
  %v6515 = vpop.permute.xlu0 %6514
  %6516 = vset.pattern.permute.xlu0 0
  %6517 = vperm.xlu0 %6516, %v6206
  %v6518 = vpop.permute.xlu0 %6517
  %6519 = vset.pattern.permute.xlu0 0
  %6520 = vperm.xlu0 %6519, %v6207
  %v6521 = vpop.permute.xlu0 %6520
  %6522 = vset.pattern.permute.xlu0 0
  %6523 = vperm.xlu0 %6522, %v6208
  %v6524 = vpop.permute.xlu0 %6523
  %6525 = vset.pattern.permute.xlu0 0
  %6526 = vperm.xlu0 %6525, %v6209
  %v6527 = vpop.permute.xlu0 %6526
  %6528 = vset.pattern.permute.xlu0 0
  %6529 = vperm.xlu0 %6528, %v6210
  %v6530 = vpop.permute.xlu0 %6529
  %6531 = vset.pattern.permute.xlu0 0
  %6532 = vperm.xlu0 %6531, %v6211
  %v6533 = vpop.permute.xlu0 %6532
  %6534 = vset.pattern.permute.xlu0 0
  %6535 = vperm.xlu0 %6534, %v6212
  %v6536 = vpop.permute.xlu0 %6535
  %6537 = vset.pattern.permute.xlu0 0
  %6538 = vperm.xlu0 %6537, %v6213
  %v6539 = vpop.permute.xlu0 %6538
  %6540 = vset.pattern.permute.xlu0 0
  %6541 = vperm.xlu0 %6540, %v6214
  %v6542 = vpop.permute.xlu0 %6541
  %6543 = vset.pattern.permute.xlu0 0
  %6544 = vperm.xlu0 %6543, %v6215
  %v6545 = vpop.permute.xlu0 %6544
  %6546 = vset.pattern.permute.xlu0 0
  %6547 = vperm.xlu0 %6546, %v6216
  %v6548 = vpop.permute.xlu0 %6547
  %6549 = vset.pattern.permute.xlu0 0
  %6550 = vperm.xlu0 %6549, %v6217
  %v6551 = vpop.permute.xlu0 %6550
  %6552 = vset.pattern.permute.xlu0 0
  %6553 = vperm.xlu0 %6552, %v6218
  %v6554 = vpop.permute.xlu0 %6553
  %6555 = vset.pattern.permute.xlu0 0
  %6556 = vperm.xlu0 %6555, %v6219
  %v6557 = vpop.permute.xlu0 %6556
  %6558 = vset.pattern.permute.xlu0 0
  %6559 = vperm.xlu0 %6558, %v6220
  %v6560 = vpop.permute.xlu0 %6559
  %6561 = vset.pattern.permute.xlu0 0
  %6562 = vperm.xlu0 %6561, %v6221
  %v6563 = vpop.permute.xlu0 %6562
  %6564 = vset.pattern.permute.xlu0 0
  %6565 = vperm.xlu0 %6564, %v6222
  %v6566 = vpop.permute.xlu0 %6565
  %6567 = vset.pattern.permute.xlu0 0
  %6568 = vperm.xlu0 %6567, %v6223
  %v6569 = vpop.permute.xlu0 %6568
  %6570 = vset.pattern.permute.xlu0 0
  %6571 = vperm.xlu0 %6570, %v6224
  %v6572 = vpop.permute.xlu0 %6571
  %6573 = vset.pattern.permute.xlu0 0
  %6574 = vperm.xlu0 %6573, %v6225
  %v6575 = vpop.permute.xlu0 %6574
  %6576 = vset.pattern.permute.xlu0 0
  %6577 = vperm.xlu0 %6576, %v6226
  %v6578 = vpop.permute.xlu0 %6577
  %6579 = vset.pattern.permute.xlu0 0
  %6580 = vperm.xlu0 %6579, %v6227
  %v6581 = vpop.permute.xlu0 %6580
  %6582 = vset.pattern.permute.xlu0 0
  %6583 = vperm.xlu0 %6582, %v6228
  %v6584 = vpop.permute.xlu0 %6583
  %6585 = vset.pattern.permute.xlu0 0
  %6586 = vperm.xlu0 %6585, %v6229
  %v6587 = vpop.permute.xlu0 %6586
  %6588 = vset.pattern.permute.xlu0 0
  %6589 = vperm.xlu0 %6588, %v6230
  %v6590 = vpop.permute.xlu0 %6589
  %6591 = vset.pattern.permute.xlu0 0
  %6592 = vperm.xlu0 %6591, %v6231
  %v6593 = vpop.permute.xlu0 %6592
  %6594 = vset.pattern.permute.xlu0 0
  %6595 = vperm.xlu0 %6594, %v6232
  %v6596 = vpop.permute.xlu0 %6595
  %6597 = vset.pattern.permute.xlu0 0
  %6598 = vperm.xlu0 %6597, %v6233
  %v6599 = vpop.permute.xlu0 %6598
  %6600 = vset.pattern.permute.xlu0 0
  %6601 = vperm.xlu0 %6600, %v6234
  %v6602 = vpop.permute.xlu0 %6601
  %6603 = vset.pattern.permute.xlu0 0
  %6604 = vperm.xlu0 %6603, %v6235
  %v6605 = vpop.permute.xlu0 %6604
  %6606 = vset.pattern.permute.xlu0 0
  %6607 = vperm.xlu0 %6606, %v6236
  %v6608 = vpop.permute.xlu0 %6607
  %6609 = vset.pattern.permute.xlu0 0
  %6610 = vperm.xlu0 %6609, %v6237
  %v6611 = vpop.permute.xlu0 %6610
  %6612 = vset.pattern.permute.xlu0 0
  %6613 = vperm.xlu0 %6612, %v6238
  %v6614 = vpop.permute.xlu0 %6613
  %6615 = vset.pattern.permute.xlu0 0
  %6616 = vperm.xlu0 %6615, %v6239
  %v6617 = vpop.permute.xlu0 %6616
  %6618 = vset.pattern.permute.xlu0 0
  %6619 = vperm.xlu0 %6618, %v6240
  %v6620 = vpop.permute.xlu0 %6619
  %6621 = vset.pattern.permute.xlu0 0
  %6622 = vperm.xlu0 %6621, %v6241
  %v6623 = vpop.permute.xlu0 %6622
  %6624 = vset.pattern.permute.xlu0 0
  %6625 = vperm.xlu0 %6624, %v6242
  %v6626 = vpop.permute.xlu0 %6625
  %6627 = vset.pattern.permute.xlu0 0
  %6628 = vperm.xlu0 %6627, %v6243
  %v6629 = vpop.permute.xlu0 %6628
  %6630 = vset.pattern.permute.xlu0 0
  %6631 = vperm.xlu0 %6630, %v6244
  %v6632 = vpop.permute.xlu0 %6631
  %6633 = vset.pattern.permute.xlu0 0
  %6634 = vperm.xlu0 %6633, %v6245
  %v6635 = vpop.permute.xlu0 %6634
  %6636 = vset.pattern.permute.xlu0 0
  %6637 = vperm.xlu0 %6636, %v6246
  %v6638 = vpop.permute.xlu0 %6637
  %6639 = vset.pattern.permute.xlu0 0
  %6640 = vperm.xlu0 %6639, %v6247
  %v6641 = vpop.permute.xlu0 %6640
  %6642 = vset.pattern.permute.xlu0 0
  %6643 = vperm.xlu0 %6642, %v6248
  %v6644 = vpop.permute.xlu0 %6643
  %6645 = vset.pattern.permute.xlu0 0
  %6646 = vperm.xlu0 %6645, %v6249
  %v6647 = vpop.permute.xlu0 %6646
  %6648 = vset.pattern.permute.xlu0 0
  %6649 = vperm.xlu0 %6648, %v6250
  %v6650 = vpop.permute.xlu0 %6649
  %6651 = vset.pattern.permute.xlu0 0
  %6652 = vperm.xlu0 %6651, %v6251
  %v6653 = vpop.permute.xlu0 %6652
  %6654 = vset.pattern.permute.xlu0 0
  %6655 = vperm.xlu0 %6654, %v6252
  %v6656 = vpop.permute.xlu0 %6655
  %6657 = vset.pattern.permute.xlu0 0
  %6658 = vperm.xlu0 %6657, %v6253
  %v6659 = vpop.permute.xlu0 %6658
  %6660 = vset.pattern.permute.xlu0 0
  %6661 = vperm.xlu0 %6660, %v6254
  %v6662 = vpop.permute.xlu0 %6661
  %6663 = vset.pattern.permute.xlu0 0
  %6664 = vperm.xlu0 %6663, %v6255
  %v6665 = vpop.permute.xlu0 %6664
  %6666 = vset.pattern.permute.xlu0 0
  %6667 = vperm.xlu0 %6666, %v6256
  %v6668 = vpop.permute.xlu0 %6667
  %6669 = vset.pattern.permute.xlu0 0
  %6670 = vperm.xlu0 %6669, %v6257
  %v6671 = vpop.permute.xlu0 %6670
  %6672 = vset.pattern.permute.xlu0 0
  %6673 = vperm.xlu0 %6672, %v6258
  %v6674 = vpop.permute.xlu0 %6673
  %6675 = vset.pattern.permute.xlu0 0
  %6676 = vperm.xlu0 %6675, %v6259
  %v6677 = vpop.permute.xlu0 %6676
  %6678 = vset.pattern.permute.xlu0 0
  %6679 = vperm.xlu0 %6678, %v6260
  %v6680 = vpop.permute.xlu0 %6679
  %6681 = vset.pattern.permute.xlu0 0
  %6682 = vperm.xlu0 %6681, %v6261
  %v6683 = vpop.permute.xlu0 %6682
  %6684 = vset.pattern.permute.xlu0 0
  %6685 = vperm.xlu0 %6684, %v6262
  %v6686 = vpop.permute.xlu0 %6685
  %6687 = vset.pattern.permute.xlu0 0
  %6688 = vperm.xlu0 %6687, %v6263
  %v6689 = vpop.permute.xlu0 %6688
  %6690 = vset.pattern.permute.xlu0 0
  %6691 = vperm.xlu0 %6690, %v6264
  %v6692 = vpop.permute.xlu0 %6691
  %6693 = vset.pattern.permute.xlu0 0
  %6694 = vperm.xlu0 %6693, %v6265
  %v6695 = vpop.permute.xlu0 %6694
  %6696 = vset.pattern.permute.xlu0 0
  %6697 = vperm.xlu0 %6696, %v6266
  %v6698 = vpop.permute.xlu0 %6697
  %6699 = vset.pattern.permute.xlu0 0
  %6700 = vperm.xlu0 %6699, %v6267
  %v6701 = vpop.permute.xlu0 %6700
  %6702 = vset.pattern.permute.xlu0 0
  %6703 = vperm.xlu0 %6702, %v6268
  %v6704 = vpop.permute.xlu0 %6703
  %6705 = vset.pattern.permute.xlu0 0
  %6706 = vperm.xlu0 %6705, %v6269
  %v6707 = vpop.permute.xlu0 %6706
  %6708 = vset.pattern.permute.xlu0 0
  %6709 = vperm.xlu0 %6708, %v6270
  %v6710 = vpop.permute.xlu0 %6709
  %6711 = vset.pattern.permute.xlu0 0
  %6712 = vperm.xlu0 %6711, %v6271
  %v6713 = vpop.permute.xlu0 %6712
  %6714 = vset.pattern.permute.xlu0 0
  %6715 = vperm.xlu0 %6714, %v6272
  %v6716 = vpop.permute.xlu0 %6715
  %6717 = vset.pattern.permute.xlu0 0
  %6718 = vperm.xlu0 %6717, %v6273
  %v6719 = vpop.permute.xlu0 %6718
  %6720 = vset.pattern.permute.xlu0 0
  %6721 = vperm.xlu0 %6720, %v6274
  %v6722 = vpop.permute.xlu0 %6721
  %6723 = vset.pattern.permute.xlu0 0
  %6724 = vperm.xlu0 %6723, %v6275
  %v6725 = vpop.permute.xlu0 %6724
  %6726 = vset.pattern.permute.xlu0 0
  %6727 = vperm.xlu0 %6726, %v6276
  %v6728 = vpop.permute.xlu0 %6727
  %6729 = vset.pattern.permute.xlu0 0
  %6730 = vperm.xlu0 %6729, %v6277
  %v6731 = vpop.permute.xlu0 %6730
  %6732 = vset.pattern.permute.xlu0 0
  %6733 = vperm.xlu0 %6732, %v6278
  %v6734 = vpop.permute.xlu0 %6733
  %6735 = vset.pattern.permute.xlu0 0
  %6736 = vperm.xlu0 %6735, %v6279
  %v6737 = vpop.permute.xlu0 %6736
  %6738 = vset.pattern.permute.xlu0 0
  %6739 = vperm.xlu0 %6738, %v6280
  %v6740 = vpop.permute.xlu0 %6739
  %6741 = vset.pattern.permute.xlu0 0
  %6742 = vperm.xlu0 %6741, %v6281
  %v6743 = vpop.permute.xlu0 %6742
  %6744 = vset.pattern.permute.xlu0 0
  %6745 = vperm.xlu0 %6744, %v6282
  %v6746 = vpop.permute.xlu0 %6745
  %6747 = vset.pattern.permute.xlu0 0
  %6748 = vperm.xlu0 %6747, %v6283
  %v6749 = vpop.permute.xlu0 %6748
  %6750 = vset.pattern.permute.xlu0 0
  %6751 = vperm.xlu0 %6750, %v6284
  %v6752 = vpop.permute.xlu0 %6751
  %6753 = vset.pattern.permute.xlu0 0
  %6754 = vperm.xlu0 %6753, %v6285
  %v6755 = vpop.permute.xlu0 %6754
  %6756 = vset.pattern.permute.xlu0 0
  %6757 = vperm.xlu0 %6756, %v6286
  %v6758 = vpop.permute.xlu0 %6757
  %6759 = vset.pattern.permute.xlu0 0
  %6760 = vperm.xlu0 %6759, %v6287
  %v6761 = vpop.permute.xlu0 %6760
  %6762 = vset.pattern.permute.xlu0 0
  %6763 = vperm.xlu0 %6762, %v6288
  %v6764 = vpop.permute.xlu0 %6763
  %6765 = vset.pattern.permute.xlu0 0
  %6766 = vperm.xlu0 %6765, %v6289
  %v6767 = vpop.permute.xlu0 %6766
  %6768 = vset.pattern.permute.xlu0 0
  %6769 = vperm.xlu0 %6768, %v6290
  %v6770 = vpop.permute.xlu0 %6769
  %6771 = vset.pattern.permute.xlu0 0
  %6772 = vperm.xlu0 %6771, %v6291
  %v6773 = vpop.permute.xlu0 %6772
  %6774 = vset.pattern.permute.xlu0 0
  %6775 = vperm.xlu0 %6774, %v6292
  %v6776 = vpop.permute.xlu0 %6775
  %6777 = vset.pattern.permute.xlu0 0
  %6778 = vperm.xlu0 %6777, %v6293
  %v6779 = vpop.permute.xlu0 %6778
  %6780 = vset.pattern.permute.xlu0 0
  %6781 = vperm.xlu0 %6780, %v6294
  %v6782 = vpop.permute.xlu0 %6781
  %6783 = vset.pattern.permute.xlu0 0
  %6784 = vperm.xlu0 %6783, %v6295
  %v6785 = vpop.permute.xlu0 %6784
  %6786 = vset.pattern.permute.xlu0 0
  %6787 = vperm.xlu0 %6786, %v6296
  %v6788 = vpop.permute.xlu0 %6787
  %6789 = vset.pattern.permute.xlu0 0
  %6790 = vperm.xlu0 %6789, %v6297
  %v6791 = vpop.permute.xlu0 %6790
  %6792 = vset.pattern.permute.xlu0 0
  %6793 = vperm.xlu0 %6792, %v6298
  %v6794 = vpop.permute.xlu0 %6793
  %6795 = vset.pattern.permute.xlu0 0
  %6796 = vperm.xlu0 %6795, %v6299
  %v6797 = vpop.permute.xlu0 %6796
  %6798 = vset.pattern.permute.xlu0 0
  %6799 = vperm.xlu0 %6798, %v6300
  %v6800 = vpop.permute.xlu0 %6799
  %6801 = vset.pattern.permute.xlu0 0
  %6802 = vperm.xlu0 %6801, %v6301
  %v6803 = vpop.permute.xlu0 %6802
  %6804 = vset.pattern.permute.xlu0 0
  %6805 = vperm.xlu0 %6804, %v6302
  %v6806 = vpop.permute.xlu0 %6805
  %6807 = vset.pattern.permute.xlu0 0
  %6808 = vperm.xlu0 %6807, %v6303
  %v6809 = vpop.permute.xlu0 %6808
  %6810 = vset.pattern.permute.xlu0 0
  %6811 = vperm.xlu0 %6810, %v6304
  %v6812 = vpop.permute.xlu0 %6811
  %6813 = vset.pattern.permute.xlu0 0
  %6814 = vperm.xlu0 %6813, %v6305
  %v6815 = vpop.permute.xlu0 %6814
  %6816 = vset.pattern.permute.xlu0 0
  %6817 = vperm.xlu0 %6816, %v6306
  %v6818 = vpop.permute.xlu0 %6817
  %v6819 = vlaneseq
  %v6820 = vshrl.u32 %v6819, 7
  %v6821 = vsub.s32 %v2879, %v6820
  %v6822 = vrot.slane %v6437, %v6821
  %v6823 = vlaneseq
  %v6824 = vshrl.u32 %v6823, 7
  %v6825 = vsub.s32 %v2884, %v6824
  %v6826 = vrot.slane %v6440, %v6825
  %v6827 = vsel %vm2889, %v6826, %v6822
  %v6828 = vlaneseq
  %v6829 = vshrl.u32 %v6828, 7
  %v6830 = vsub.s32 %v2891, %v6829
  %v6831 = vrot.slane %v6443, %v6830
  %v6832 = vsel %vm2896, %v6831, %v6827
  %v6833 = vlaneseq
  %v6834 = vshrl.u32 %v6833, 7
  %v6835 = vsub.s32 %v2898, %v6834
  %v6836 = vrot.slane %v6446, %v6835
  %v6837 = vsel %vm2903, %v6836, %v6832
  %v6838 = vlaneseq
  %v6839 = vshrl.u32 %v6838, 7
  %v6840 = vsub.s32 %v2905, %v6839
  %v6841 = vrot.slane %v6449, %v6840
  %v6842 = vsel %vm2910, %v6841, %v6837
  %v6843 = vlaneseq
  %v6844 = vshrl.u32 %v6843, 7
  %v6845 = vsub.s32 %v2912, %v6844
  %v6846 = vrot.slane %v6452, %v6845
  %v6847 = vsel %vm2917, %v6846, %v6842
  %v6848 = vlaneseq
  %v6849 = vshrl.u32 %v6848, 7
  %v6850 = vsub.s32 %v2919, %v6849
  %v6851 = vrot.slane %v6455, %v6850
  %v6852 = vsel %vm2924, %v6851, %v6847
  %v6853 = vlaneseq
  %v6854 = vshrl.u32 %v6853, 7
  %v6855 = vsub.s32 %v2926, %v6854
  %v6856 = vrot.slane %v6458, %v6855
  %v6857 = vsel %vm2931, %v6856, %v6852
  %v6858 = vlaneseq
  %v6859 = vshrl.u32 %v6858, 7
  %v6860 = vsub.s32 %v2933, %v6859
  %v6861 = vrot.slane %v6461, %v6860
  %v6862 = vsel %vm2938, %v6861, %v6857
  %v6863 = vlaneseq
  %v6864 = vshrl.u32 %v6863, 7
  %v6865 = vsub.s32 %v2940, %v6864
  %v6866 = vrot.slane %v6464, %v6865
  %v6867 = vsel %vm2945, %v6866, %v6862
  %v6868 = vlaneseq
  %v6869 = vshrl.u32 %v6868, 7
  %v6870 = vsub.s32 %v2947, %v6869
  %v6871 = vrot.slane %v6467, %v6870
  %v6872 = vsel %vm2952, %v6871, %v6867
  %v6873 = vlaneseq
  %v6874 = vshrl.u32 %v6873, 7
  %v6875 = vsub.s32 %v2954, %v6874
  %v6876 = vrot.slane %v6470, %v6875
  %v6877 = vsel %vm2959, %v6876, %v6872
  %v6878 = vlaneseq
  %v6879 = vshrl.u32 %v6878, 7
  %v6880 = vsub.s32 %v2961, %v6879
  %v6881 = vrot.slane %v6473, %v6880
  %v6882 = vsel %vm2966, %v6881, %v6877
  %v6883 = vlaneseq
  %v6884 = vshrl.u32 %v6883, 7
  %v6885 = vsub.s32 %v2968, %v6884
  %v6886 = vrot.slane %v6476, %v6885
  %v6887 = vsel %vm2973, %v6886, %v6882
  %v6888 = vlaneseq
  %v6889 = vshrl.u32 %v6888, 7
  %v6890 = vsub.s32 %v2975, %v6889
  %v6891 = vrot.slane %v6479, %v6890
  %v6892 = vsel %vm2980, %v6891, %v6887
  %v6893 = vlaneseq
  %v6894 = vshrl.u32 %v6893, 7
  %v6895 = vsub.s32 %v2982, %v6894
  %v6896 = vrot.slane %v6482, %v6895
  %v6897 = vsel %vm2987, %v6896, %v6892
  %v6898 = vlaneseq
  %v6899 = vshrl.u32 %v6898, 7
  %v6900 = vsub.s32 %v2879, %v6899
  %v6901 = vrot.slane %v6485, %v6900
  %v6902 = vlaneseq
  %v6903 = vshrl.u32 %v6902, 7
  %v6904 = vsub.s32 %v2884, %v6903
  %v6905 = vrot.slane %v6488, %v6904
  %v6906 = vsel %vm2889, %v6905, %v6901
  %v6907 = vlaneseq
  %v6908 = vshrl.u32 %v6907, 7
  %v6909 = vsub.s32 %v2891, %v6908
  %v6910 = vrot.slane %v6491, %v6909
  %v6911 = vsel %vm2896, %v6910, %v6906
  %v6912 = vlaneseq
  %v6913 = vshrl.u32 %v6912, 7
  %v6914 = vsub.s32 %v2898, %v6913
  %v6915 = vrot.slane %v6494, %v6914
  %v6916 = vsel %vm2903, %v6915, %v6911
  %v6917 = vlaneseq
  %v6918 = vshrl.u32 %v6917, 7
  %v6919 = vsub.s32 %v2905, %v6918
  %v6920 = vrot.slane %v6497, %v6919
  %v6921 = vsel %vm2910, %v6920, %v6916
  %v6922 = vlaneseq
  %v6923 = vshrl.u32 %v6922, 7
  %v6924 = vsub.s32 %v2912, %v6923
  %v6925 = vrot.slane %v6500, %v6924
  %v6926 = vsel %vm2917, %v6925, %v6921
  %v6927 = vlaneseq
  %v6928 = vshrl.u32 %v6927, 7
  %v6929 = vsub.s32 %v2919, %v6928
  %v6930 = vrot.slane %v6503, %v6929
  %v6931 = vsel %vm2924, %v6930, %v6926
  %v6932 = vlaneseq
  %v6933 = vshrl.u32 %v6932, 7
  %v6934 = vsub.s32 %v2926, %v6933
  %v6935 = vrot.slane %v6506, %v6934
  %v6936 = vsel %vm2931, %v6935, %v6931
  %v6937 = vlaneseq
  %v6938 = vshrl.u32 %v6937, 7
  %v6939 = vsub.s32 %v2933, %v6938
  %v6940 = vrot.slane %v6509, %v6939
  %v6941 = vsel %vm2938, %v6940, %v6936
  %v6942 = vlaneseq
  %v6943 = vshrl.u32 %v6942, 7
  %v6944 = vsub.s32 %v2940, %v6943
  %v6945 = vrot.slane %v6512, %v6944
  %v6946 = vsel %vm2945, %v6945, %v6941
  %v6947 = vlaneseq
  %v6948 = vshrl.u32 %v6947, 7
  %v6949 = vsub.s32 %v2947, %v6948
  %v6950 = vrot.slane %v6515, %v6949
  %v6951 = vsel %vm2952, %v6950, %v6946
  %v6952 = vlaneseq
  %v6953 = vshrl.u32 %v6952, 7
  %v6954 = vsub.s32 %v2954, %v6953
  %v6955 = vrot.slane %v6518, %v6954
  %v6956 = vsel %vm2959, %v6955, %v6951
  %v6957 = vlaneseq
  %v6958 = vshrl.u32 %v6957, 7
  %v6959 = vsub.s32 %v2961, %v6958
  %v6960 = vrot.slane %v6521, %v6959
  %v6961 = vsel %vm2966, %v6960, %v6956
  %v6962 = vlaneseq
  %v6963 = vshrl.u32 %v6962, 7
  %v6964 = vsub.s32 %v2968, %v6963
  %v6965 = vrot.slane %v6524, %v6964
  %v6966 = vsel %vm2973, %v6965, %v6961
  %v6967 = vlaneseq
  %v6968 = vshrl.u32 %v6967, 7
  %v6969 = vsub.s32 %v2975, %v6968
  %v6970 = vrot.slane %v6527, %v6969
  %v6971 = vsel %vm2980, %v6970, %v6966
  %v6972 = vlaneseq
  %v6973 = vshrl.u32 %v6972, 7
  %v6974 = vsub.s32 %v2982, %v6973
  %v6975 = vrot.slane %v6530, %v6974
  %v6976 = vsel %vm2987, %v6975, %v6971
  %v6977 = vlaneseq
  %v6978 = vshrl.u32 %v6977, 7
  %v6979 = vsub.s32 %v2879, %v6978
  %v6980 = vrot.slane %v6533, %v6979
  %v6981 = vlaneseq
  %v6982 = vshrl.u32 %v6981, 7
  %v6983 = vsub.s32 %v2884, %v6982
  %v6984 = vrot.slane %v6536, %v6983
  %v6985 = vsel %vm2889, %v6984, %v6980
  %v6986 = vlaneseq
  %v6987 = vshrl.u32 %v6986, 7
  %v6988 = vsub.s32 %v2891, %v6987
  %v6989 = vrot.slane %v6539, %v6988
  %v6990 = vsel %vm2896, %v6989, %v6985
  %v6991 = vlaneseq
  %v6992 = vshrl.u32 %v6991, 7
  %v6993 = vsub.s32 %v2898, %v6992
  %v6994 = vrot.slane %v6542, %v6993
  %v6995 = vsel %vm2903, %v6994, %v6990
  %v6996 = vlaneseq
  %v6997 = vshrl.u32 %v6996, 7
  %v6998 = vsub.s32 %v2905, %v6997
  %v6999 = vrot.slane %v6545, %v6998
  %v7000 = vsel %vm2910, %v6999, %v6995
  %v7001 = vlaneseq
  %v7002 = vshrl.u32 %v7001, 7
  %v7003 = vsub.s32 %v2912, %v7002
  %v7004 = vrot.slane %v6548, %v7003
  %v7005 = vsel %vm2917, %v7004, %v7000
  %v7006 = vlaneseq
  %v7007 = vshrl.u32 %v7006, 7
  %v7008 = vsub.s32 %v2919, %v7007
  %v7009 = vrot.slane %v6551, %v7008
  %v7010 = vsel %vm2924, %v7009, %v7005
  %v7011 = vlaneseq
  %v7012 = vshrl.u32 %v7011, 7
  %v7013 = vsub.s32 %v2926, %v7012
  %v7014 = vrot.slane %v6554, %v7013
  %v7015 = vsel %vm2931, %v7014, %v7010
  %v7016 = vlaneseq
  %v7017 = vshrl.u32 %v7016, 7
  %v7018 = vsub.s32 %v2933, %v7017
  %v7019 = vrot.slane %v6557, %v7018
  %v7020 = vsel %vm2938, %v7019, %v7015
  %v7021 = vlaneseq
  %v7022 = vshrl.u32 %v7021, 7
  %v7023 = vsub.s32 %v2940, %v7022
  %v7024 = vrot.slane %v6560, %v7023
  %v7025 = vsel %vm2945, %v7024, %v7020
  %v7026 = vlaneseq
  %v7027 = vshrl.u32 %v7026, 7
  %v7028 = vsub.s32 %v2947, %v7027
  %v7029 = vrot.slane %v6563, %v7028
  %v7030 = vsel %vm2952, %v7029, %v7025
  %v7031 = vlaneseq
  %v7032 = vshrl.u32 %v7031, 7
  %v7033 = vsub.s32 %v2954, %v7032
  %v7034 = vrot.slane %v6566, %v7033
  %v7035 = vsel %vm2959, %v7034, %v7030
  %v7036 = vlaneseq
  %v7037 = vshrl.u32 %v7036, 7
  %v7038 = vsub.s32 %v2961, %v7037
  %v7039 = vrot.slane %v6569, %v7038
  %v7040 = vsel %vm2966, %v7039, %v7035
  %v7041 = vlaneseq
  %v7042 = vshrl.u32 %v7041, 7
  %v7043 = vsub.s32 %v2968, %v7042
  %v7044 = vrot.slane %v6572, %v7043
  %v7045 = vsel %vm2973, %v7044, %v7040
  %v7046 = vlaneseq
  %v7047 = vshrl.u32 %v7046, 7
  %v7048 = vsub.s32 %v2975, %v7047
  %v7049 = vrot.slane %v6575, %v7048
  %v7050 = vsel %vm2980, %v7049, %v7045
  %v7051 = vlaneseq
  %v7052 = vshrl.u32 %v7051, 7
  %v7053 = vsub.s32 %v2982, %v7052
  %v7054 = vrot.slane %v6578, %v7053
  %v7055 = vsel %vm2987, %v7054, %v7050
  %v7056 = vlaneseq
  %v7057 = vshrl.u32 %v7056, 7
  %v7058 = vsub.s32 %v2879, %v7057
  %v7059 = vrot.slane %v6581, %v7058
  %v7060 = vlaneseq
  %v7061 = vshrl.u32 %v7060, 7
  %v7062 = vsub.s32 %v2884, %v7061
  %v7063 = vrot.slane %v6584, %v7062
  %v7064 = vsel %vm2889, %v7063, %v7059
  %v7065 = vlaneseq
  %v7066 = vshrl.u32 %v7065, 7
  %v7067 = vsub.s32 %v2891, %v7066
  %v7068 = vrot.slane %v6587, %v7067
  %v7069 = vsel %vm2896, %v7068, %v7064
  %v7070 = vlaneseq
  %v7071 = vshrl.u32 %v7070, 7
  %v7072 = vsub.s32 %v2898, %v7071
  %v7073 = vrot.slane %v6590, %v7072
  %v7074 = vsel %vm2903, %v7073, %v7069
  %v7075 = vlaneseq
  %v7076 = vshrl.u32 %v7075, 7
  %v7077 = vsub.s32 %v2905, %v7076
  %v7078 = vrot.slane %v6593, %v7077
  %v7079 = vsel %vm2910, %v7078, %v7074
  %v7080 = vlaneseq
  %v7081 = vshrl.u32 %v7080, 7
  %v7082 = vsub.s32 %v2912, %v7081
  %v7083 = vrot.slane %v6596, %v7082
  %v7084 = vsel %vm2917, %v7083, %v7079
  %v7085 = vlaneseq
  %v7086 = vshrl.u32 %v7085, 7
  %v7087 = vsub.s32 %v2919, %v7086
  %v7088 = vrot.slane %v6599, %v7087
  %v7089 = vsel %vm2924, %v7088, %v7084
  %v7090 = vlaneseq
  %v7091 = vshrl.u32 %v7090, 7
  %v7092 = vsub.s32 %v2926, %v7091
  %v7093 = vrot.slane %v6602, %v7092
  %v7094 = vsel %vm2931, %v7093, %v7089
  %v7095 = vlaneseq
  %v7096 = vshrl.u32 %v7095, 7
  %v7097 = vsub.s32 %v2933, %v7096
  %v7098 = vrot.slane %v6605, %v7097
  %v7099 = vsel %vm2938, %v7098, %v7094
  %v7100 = vlaneseq
  %v7101 = vshrl.u32 %v7100, 7
  %v7102 = vsub.s32 %v2940, %v7101
  %v7103 = vrot.slane %v6608, %v7102
  %v7104 = vsel %vm2945, %v7103, %v7099
  %v7105 = vlaneseq
  %v7106 = vshrl.u32 %v7105, 7
  %v7107 = vsub.s32 %v2947, %v7106
  %v7108 = vrot.slane %v6611, %v7107
  %v7109 = vsel %vm2952, %v7108, %v7104
  %v7110 = vlaneseq
  %v7111 = vshrl.u32 %v7110, 7
  %v7112 = vsub.s32 %v2954, %v7111
  %v7113 = vrot.slane %v6614, %v7112
  %v7114 = vsel %vm2959, %v7113, %v7109
  %v7115 = vlaneseq
  %v7116 = vshrl.u32 %v7115, 7
  %v7117 = vsub.s32 %v2961, %v7116
  %v7118 = vrot.slane %v6617, %v7117
  %v7119 = vsel %vm2966, %v7118, %v7114
  %v7120 = vlaneseq
  %v7121 = vshrl.u32 %v7120, 7
  %v7122 = vsub.s32 %v2968, %v7121
  %v7123 = vrot.slane %v6620, %v7122
  %v7124 = vsel %vm2973, %v7123, %v7119
  %v7125 = vlaneseq
  %v7126 = vshrl.u32 %v7125, 7
  %v7127 = vsub.s32 %v2975, %v7126
  %v7128 = vrot.slane %v6623, %v7127
  %v7129 = vsel %vm2980, %v7128, %v7124
  %v7130 = vlaneseq
  %v7131 = vshrl.u32 %v7130, 7
  %v7132 = vsub.s32 %v2982, %v7131
  %v7133 = vrot.slane %v6626, %v7132
  %v7134 = vsel %vm2987, %v7133, %v7129
  %v7135 = vlaneseq
  %v7136 = vshrl.u32 %v7135, 7
  %v7137 = vsub.s32 %v2879, %v7136
  %v7138 = vrot.slane %v6629, %v7137
  %v7139 = vlaneseq
  %v7140 = vshrl.u32 %v7139, 7
  %v7141 = vsub.s32 %v2884, %v7140
  %v7142 = vrot.slane %v6632, %v7141
  %v7143 = vsel %vm2889, %v7142, %v7138
  %v7144 = vlaneseq
  %v7145 = vshrl.u32 %v7144, 7
  %v7146 = vsub.s32 %v2891, %v7145
  %v7147 = vrot.slane %v6635, %v7146
  %v7148 = vsel %vm2896, %v7147, %v7143
  %v7149 = vlaneseq
  %v7150 = vshrl.u32 %v7149, 7
  %v7151 = vsub.s32 %v2898, %v7150
  %v7152 = vrot.slane %v6638, %v7151
  %v7153 = vsel %vm2903, %v7152, %v7148
  %v7154 = vlaneseq
  %v7155 = vshrl.u32 %v7154, 7
  %v7156 = vsub.s32 %v2905, %v7155
  %v7157 = vrot.slane %v6641, %v7156
  %v7158 = vsel %vm2910, %v7157, %v7153
  %v7159 = vlaneseq
  %v7160 = vshrl.u32 %v7159, 7
  %v7161 = vsub.s32 %v2912, %v7160
  %v7162 = vrot.slane %v6644, %v7161
  %v7163 = vsel %vm2917, %v7162, %v7158
  %v7164 = vlaneseq
  %v7165 = vshrl.u32 %v7164, 7
  %v7166 = vsub.s32 %v2919, %v7165
  %v7167 = vrot.slane %v6647, %v7166
  %v7168 = vsel %vm2924, %v7167, %v7163
  %v7169 = vlaneseq
  %v7170 = vshrl.u32 %v7169, 7
  %v7171 = vsub.s32 %v2926, %v7170
  %v7172 = vrot.slane %v6650, %v7171
  %v7173 = vsel %vm2931, %v7172, %v7168
  %v7174 = vlaneseq
  %v7175 = vshrl.u32 %v7174, 7
  %v7176 = vsub.s32 %v2933, %v7175
  %v7177 = vrot.slane %v6653, %v7176
  %v7178 = vsel %vm2938, %v7177, %v7173
  %v7179 = vlaneseq
  %v7180 = vshrl.u32 %v7179, 7
  %v7181 = vsub.s32 %v2940, %v7180
  %v7182 = vrot.slane %v6656, %v7181
  %v7183 = vsel %vm2945, %v7182, %v7178
  %v7184 = vlaneseq
  %v7185 = vshrl.u32 %v7184, 7
  %v7186 = vsub.s32 %v2947, %v7185
  %v7187 = vrot.slane %v6659, %v7186
  %v7188 = vsel %vm2952, %v7187, %v7183
  %v7189 = vlaneseq
  %v7190 = vshrl.u32 %v7189, 7
  %v7191 = vsub.s32 %v2954, %v7190
  %v7192 = vrot.slane %v6662, %v7191
  %v7193 = vsel %vm2959, %v7192, %v7188
  %v7194 = vlaneseq
  %v7195 = vshrl.u32 %v7194, 7
  %v7196 = vsub.s32 %v2961, %v7195
  %v7197 = vrot.slane %v6665, %v7196
  %v7198 = vsel %vm2966, %v7197, %v7193
  %v7199 = vlaneseq
  %v7200 = vshrl.u32 %v7199, 7
  %v7201 = vsub.s32 %v2968, %v7200
  %v7202 = vrot.slane %v6668, %v7201
  %v7203 = vsel %vm2973, %v7202, %v7198
  %v7204 = vlaneseq
  %v7205 = vshrl.u32 %v7204, 7
  %v7206 = vsub.s32 %v2975, %v7205
  %v7207 = vrot.slane %v6671, %v7206
  %v7208 = vsel %vm2980, %v7207, %v7203
  %v7209 = vlaneseq
  %v7210 = vshrl.u32 %v7209, 7
  %v7211 = vsub.s32 %v2982, %v7210
  %v7212 = vrot.slane %v6674, %v7211
  %v7213 = vsel %vm2987, %v7212, %v7208
  %v7214 = vlaneseq
  %v7215 = vshrl.u32 %v7214, 7
  %v7216 = vsub.s32 %v2879, %v7215
  %v7217 = vrot.slane %v6677, %v7216
  %v7218 = vlaneseq
  %v7219 = vshrl.u32 %v7218, 7
  %v7220 = vsub.s32 %v2884, %v7219
  %v7221 = vrot.slane %v6680, %v7220
  %v7222 = vsel %vm2889, %v7221, %v7217
  %v7223 = vlaneseq
  %v7224 = vshrl.u32 %v7223, 7
  %v7225 = vsub.s32 %v2891, %v7224
  %v7226 = vrot.slane %v6683, %v7225
  %v7227 = vsel %vm2896, %v7226, %v7222
  %v7228 = vlaneseq
  %v7229 = vshrl.u32 %v7228, 7
  %v7230 = vsub.s32 %v2898, %v7229
  %v7231 = vrot.slane %v6686, %v7230
  %v7232 = vsel %vm2903, %v7231, %v7227
  %v7233 = vlaneseq
  %v7234 = vshrl.u32 %v7233, 7
  %v7235 = vsub.s32 %v2905, %v7234
  %v7236 = vrot.slane %v6689, %v7235
  %v7237 = vsel %vm2910, %v7236, %v7232
  %v7238 = vlaneseq
  %v7239 = vshrl.u32 %v7238, 7
  %v7240 = vsub.s32 %v2912, %v7239
  %v7241 = vrot.slane %v6692, %v7240
  %v7242 = vsel %vm2917, %v7241, %v7237
  %v7243 = vlaneseq
  %v7244 = vshrl.u32 %v7243, 7
  %v7245 = vsub.s32 %v2919, %v7244
  %v7246 = vrot.slane %v6695, %v7245
  %v7247 = vsel %vm2924, %v7246, %v7242
  %v7248 = vlaneseq
  %v7249 = vshrl.u32 %v7248, 7
  %v7250 = vsub.s32 %v2926, %v7249
  %v7251 = vrot.slane %v6698, %v7250
  %v7252 = vsel %vm2931, %v7251, %v7247
  %v7253 = vlaneseq
  %v7254 = vshrl.u32 %v7253, 7
  %v7255 = vsub.s32 %v2933, %v7254
  %v7256 = vrot.slane %v6701, %v7255
  %v7257 = vsel %vm2938, %v7256, %v7252
  %v7258 = vlaneseq
  %v7259 = vshrl.u32 %v7258, 7
  %v7260 = vsub.s32 %v2940, %v7259
  %v7261 = vrot.slane %v6704, %v7260
  %v7262 = vsel %vm2945, %v7261, %v7257
  %v7263 = vlaneseq
  %v7264 = vshrl.u32 %v7263, 7
  %v7265 = vsub.s32 %v2947, %v7264
  %v7266 = vrot.slane %v6707, %v7265
  %v7267 = vsel %vm2952, %v7266, %v7262
  %v7268 = vlaneseq
  %v7269 = vshrl.u32 %v7268, 7
  %v7270 = vsub.s32 %v2954, %v7269
  %v7271 = vrot.slane %v6710, %v7270
  %v7272 = vsel %vm2959, %v7271, %v7267
  %v7273 = vlaneseq
  %v7274 = vshrl.u32 %v7273, 7
  %v7275 = vsub.s32 %v2961, %v7274
  %v7276 = vrot.slane %v6713, %v7275
  %v7277 = vsel %vm2966, %v7276, %v7272
  %v7278 = vlaneseq
  %v7279 = vshrl.u32 %v7278, 7
  %v7280 = vsub.s32 %v2968, %v7279
  %v7281 = vrot.slane %v6716, %v7280
  %v7282 = vsel %vm2973, %v7281, %v7277
  %v7283 = vlaneseq
  %v7284 = vshrl.u32 %v7283, 7
  %v7285 = vsub.s32 %v2975, %v7284
  %v7286 = vrot.slane %v6719, %v7285
  %v7287 = vsel %vm2980, %v7286, %v7282
  %v7288 = vlaneseq
  %v7289 = vshrl.u32 %v7288, 7
  %v7290 = vsub.s32 %v2982, %v7289
  %v7291 = vrot.slane %v6722, %v7290
  %v7292 = vsel %vm2987, %v7291, %v7287
  %v7293 = vlaneseq
  %v7294 = vshrl.u32 %v7293, 7
  %v7295 = vsub.s32 %v2879, %v7294
  %v7296 = vrot.slane %v6725, %v7295
  %v7297 = vlaneseq
  %v7298 = vshrl.u32 %v7297, 7
  %v7299 = vsub.s32 %v2884, %v7298
  %v7300 = vrot.slane %v6728, %v7299
  %v7301 = vsel %vm2889, %v7300, %v7296
  %v7302 = vlaneseq
  %v7303 = vshrl.u32 %v7302, 7
  %v7304 = vsub.s32 %v2891, %v7303
  %v7305 = vrot.slane %v6731, %v7304
  %v7306 = vsel %vm2896, %v7305, %v7301
  %v7307 = vlaneseq
  %v7308 = vshrl.u32 %v7307, 7
  %v7309 = vsub.s32 %v2898, %v7308
  %v7310 = vrot.slane %v6734, %v7309
  %v7311 = vsel %vm2903, %v7310, %v7306
  %v7312 = vlaneseq
  %v7313 = vshrl.u32 %v7312, 7
  %v7314 = vsub.s32 %v2905, %v7313
  %v7315 = vrot.slane %v6737, %v7314
  %v7316 = vsel %vm2910, %v7315, %v7311
  %v7317 = vlaneseq
  %v7318 = vshrl.u32 %v7317, 7
  %v7319 = vsub.s32 %v2912, %v7318
  %v7320 = vrot.slane %v6740, %v7319
  %v7321 = vsel %vm2917, %v7320, %v7316
  %v7322 = vlaneseq
  %v7323 = vshrl.u32 %v7322, 7
  %v7324 = vsub.s32 %v2919, %v7323
  %v7325 = vrot.slane %v6743, %v7324
  %v7326 = vsel %vm2924, %v7325, %v7321
  %v7327 = vlaneseq
  %v7328 = vshrl.u32 %v7327, 7
  %v7329 = vsub.s32 %v2926, %v7328
  %v7330 = vrot.slane %v6746, %v7329
  %v7331 = vsel %vm2931, %v7330, %v7326
  %v7332 = vlaneseq
  %v7333 = vshrl.u32 %v7332, 7
  %v7334 = vsub.s32 %v2933, %v7333
  %v7335 = vrot.slane %v6749, %v7334
  %v7336 = vsel %vm2938, %v7335, %v7331
  %v7337 = vlaneseq
  %v7338 = vshrl.u32 %v7337, 7
  %v7339 = vsub.s32 %v2940, %v7338
  %v7340 = vrot.slane %v6752, %v7339
  %v7341 = vsel %vm2945, %v7340, %v7336
  %v7342 = vlaneseq
  %v7343 = vshrl.u32 %v7342, 7
  %v7344 = vsub.s32 %v2947, %v7343
  %v7345 = vrot.slane %v6755, %v7344
  %v7346 = vsel %vm2952, %v7345, %v7341
  %v7347 = vlaneseq
  %v7348 = vshrl.u32 %v7347, 7
  %v7349 = vsub.s32 %v2954, %v7348
  %v7350 = vrot.slane %v6758, %v7349
  %v7351 = vsel %vm2959, %v7350, %v7346
  %v7352 = vlaneseq
  %v7353 = vshrl.u32 %v7352, 7
  %v7354 = vsub.s32 %v2961, %v7353
  %v7355 = vrot.slane %v6761, %v7354
  %v7356 = vsel %vm2966, %v7355, %v7351
  %v7357 = vlaneseq
  %v7358 = vshrl.u32 %v7357, 7
  %v7359 = vsub.s32 %v2968, %v7358
  %v7360 = vrot.slane %v6764, %v7359
  %v7361 = vsel %vm2973, %v7360, %v7356
  %v7362 = vlaneseq
  %v7363 = vshrl.u32 %v7362, 7
  %v7364 = vsub.s32 %v2975, %v7363
  %v7365 = vrot.slane %v6767, %v7364
  %v7366 = vsel %vm2980, %v7365, %v7361
  %v7367 = vlaneseq
  %v7368 = vshrl.u32 %v7367, 7
  %v7369 = vsub.s32 %v2982, %v7368
  %v7370 = vrot.slane %v6770, %v7369
  %v7371 = vsel %vm2987, %v7370, %v7366
  %v7372 = vlaneseq
  %v7373 = vshrl.u32 %v7372, 7
  %v7374 = vsub.s32 %v2879, %v7373
  %v7375 = vrot.slane %v6773, %v7374
  %v7376 = vlaneseq
  %v7377 = vshrl.u32 %v7376, 7
  %v7378 = vsub.s32 %v2884, %v7377
  %v7379 = vrot.slane %v6776, %v7378
  %v7380 = vsel %vm2889, %v7379, %v7375
  %v7381 = vlaneseq
  %v7382 = vshrl.u32 %v7381, 7
  %v7383 = vsub.s32 %v2891, %v7382
  %v7384 = vrot.slane %v6779, %v7383
  %v7385 = vsel %vm2896, %v7384, %v7380
  %v7386 = vlaneseq
  %v7387 = vshrl.u32 %v7386, 7
  %v7388 = vsub.s32 %v2898, %v7387
  %v7389 = vrot.slane %v6782, %v7388
  %v7390 = vsel %vm2903, %v7389, %v7385
  %v7391 = vlaneseq
  %v7392 = vshrl.u32 %v7391, 7
  %v7393 = vsub.s32 %v2905, %v7392
  %v7394 = vrot.slane %v6785, %v7393
  %v7395 = vsel %vm2910, %v7394, %v7390
  %v7396 = vlaneseq
  %v7397 = vshrl.u32 %v7396, 7
  %v7398 = vsub.s32 %v2912, %v7397
  %v7399 = vrot.slane %v6788, %v7398
  %v7400 = vsel %vm2917, %v7399, %v7395
  %v7401 = vlaneseq
  %v7402 = vshrl.u32 %v7401, 7
  %v7403 = vsub.s32 %v2919, %v7402
  %v7404 = vrot.slane %v6791, %v7403
  %v7405 = vsel %vm2924, %v7404, %v7400
  %v7406 = vlaneseq
  %v7407 = vshrl.u32 %v7406, 7
  %v7408 = vsub.s32 %v2926, %v7407
  %v7409 = vrot.slane %v6794, %v7408
  %v7410 = vsel %vm2931, %v7409, %v7405
  %v7411 = vlaneseq
  %v7412 = vshrl.u32 %v7411, 7
  %v7413 = vsub.s32 %v2933, %v7412
  %v7414 = vrot.slane %v6797, %v7413
  %v7415 = vsel %vm2938, %v7414, %v7410
  %v7416 = vlaneseq
  %v7417 = vshrl.u32 %v7416, 7
  %v7418 = vsub.s32 %v2940, %v7417
  %v7419 = vrot.slane %v6800, %v7418
  %v7420 = vsel %vm2945, %v7419, %v7415
  %v7421 = vlaneseq
  %v7422 = vshrl.u32 %v7421, 7
  %v7423 = vsub.s32 %v2947, %v7422
  %v7424 = vrot.slane %v6803, %v7423
  %v7425 = vsel %vm2952, %v7424, %v7420
  %v7426 = vlaneseq
  %v7427 = vshrl.u32 %v7426, 7
  %v7428 = vsub.s32 %v2954, %v7427
  %v7429 = vrot.slane %v6806, %v7428
  %v7430 = vsel %vm2959, %v7429, %v7425
  %v7431 = vlaneseq
  %v7432 = vshrl.u32 %v7431, 7
  %v7433 = vsub.s32 %v2961, %v7432
  %v7434 = vrot.slane %v6809, %v7433
  %v7435 = vsel %vm2966, %v7434, %v7430
  %v7436 = vlaneseq
  %v7437 = vshrl.u32 %v7436, 7
  %v7438 = vsub.s32 %v2968, %v7437
  %v7439 = vrot.slane %v6812, %v7438
  %v7440 = vsel %vm2973, %v7439, %v7435
  %v7441 = vlaneseq
  %v7442 = vshrl.u32 %v7441, 7
  %v7443 = vsub.s32 %v2975, %v7442
  %v7444 = vrot.slane %v6815, %v7443
  %v7445 = vsel %vm2980, %v7444, %v7440
  %v7446 = vlaneseq
  %v7447 = vshrl.u32 %v7446, 7
  %v7448 = vsub.s32 %v2982, %v7447
  %v7449 = vrot.slane %v6818, %v7448
  %v7450 = vsel %vm2987, %v7449, %v7445
  %v7451 = vsel %vm3542, %v6976, %v6897
  %v7452 = vsel %vm3544, %v7055, %v7451
  %v7453 = vsel %vm3546, %v7134, %v7452
  %v7454 = vsel %vm3548, %v7213, %v7453
  %v7455 = vsel %vm3550, %v7292, %v7454
  %v7456 = vsel %vm3552, %v7371, %v7455
  %v7457 = vsel %vm3554, %v7450, %v7456
  %7459 = vst [vmem:[%s4] sm:$0xff] %v7457
  %7460 = vst [vmem:[%s5] sm:$0xff] %v5511
  %s7461 = scalar_lea.vmem %s5, 8
  %7462 = vst [vmem:[%s7461] sm:$0xff] %v3560
  %s7463 = scalar_lea.vmem %s5, 16
  %7464 = vst [vmem:[%s7463] sm:$0xff] %v5509
  %s7465 = scalar_lea.vmem %s5, 24
  %7466 = vst [vmem:[%s7465] sm:$0xff] %v5513
  // Predicated region
  $region18: #{adaptive_computation_time.1} parent=0 // pred_check
    _
  $region19: #{adaptive_computation_time.1} parent=0 // pred_check_branch
    %7468 = sbr.rel (0) target = $region21
  $region20: #{adaptive_computation_time.1} parent=0 // pred_region
    _
  $region21: #{adaptive_computation_time.1} parent=0 // pred_fallthru
    _
  // Predicated region
  $region22: #{adaptive_computation_time.1} parent=0 // pred_check
    _
  $region23: #{adaptive_computation_time.1} parent=0 // pred_check_branch
    %7470 = sbr.rel (0) target = $region25
  $region24: #{adaptive_computation_time.1} parent=0 // pred_region
    _
  $region25: #{adaptive_computation_time.1} parent=0 // pred_fallthru
    _
  // Predicated region
  $region26: #{adaptive_computation_time.1} parent=0 // pred_check
    _
  $region27: #{adaptive_computation_time.1} parent=0 // pred_check_branch
    %7472 = sbr.rel (0) target = $region29
  $region28: #{adaptive_computation_time.1} parent=0 // pred_region
    _
  $region29: #{adaptive_computation_time.1} parent=0 // pred_fallthru
    _
  // Predicated region
  $region30: #{adaptive_computation_time.1} parent=0 // pred_check
    _
  $region31: #{adaptive_computation_time.1} parent=0 // pred_check_branch
    %7474 = sbr.rel (0) target = $region33
  $region32: #{adaptive_computation_time.1} parent=0 // pred_region
    _
  $region33: #{adaptive_computation_time.1} parent=0 // pred_fallthru
    _

</llo_original>
